<compile_context>
chip_gen: v6e
topology: v6e:2x2x1
jax: 0.10.0
libtpu: 0.0.40
codegen_flags: <defaults>
</compile_context>

<pallas_src>
import numpy as np
import jax
import jax.numpy as jnp
from jax import lax
from jax.experimental import pallas as pl
from jax.experimental.pallas import tpu as pltpu

# ---- small, deterministic shapes ----
BATCH = 4
SEQ = 8
TEXT_IN, AUDIO_IN, VIDEO_IN = 16, 8, 8
TEXT_HIDDEN, AUDIO_HIDDEN, VIDEO_HIDDEN = 16, 8, 8
TEXT_OUT = 8
POST_FUSION_DIM = 32
FUSION_DIM = (TEXT_OUT + 1) * (VIDEO_HIDDEN + 1) * (AUDIO_HIDDEN + 1)  # 729
BN_EPS = 1e-5

_VMEM = pl.BlockSpec(memory_space=pltpu.MemorySpace.VMEM)


# --------------------------------------------------------------------------
# Fused kernel: SubNet x2 + packed-gate LSTM + tensor fusion + post-fusion MLP
# --------------------------------------------------------------------------
def _tfn_fused_kernel(
        text_ref, audio_ref, video_ref,                       # (S*B,Dt) (B,Da) (B,Dv)
        a_w1, a_b1, a_w2, a_b2, a_w3, a_b3,                   # audio SubNet (BN folded into w1/b1)
        v_w1, v_b1, v_w2, v_b2, v_w3, v_b3,                   # video SubNet (BN folded into w1/b1)
        t_wih, t_whh, t_b,                                     # LSTM: (Dt,4H) (H,4H) (1,4H)
        tl_w, tl_b, ev_rest, ev_one, ea_rest, ea_one,          # fusion expansion (text linear folded)
        p_w1, p_b1, p_w2, p_b2, p_w3, p_b3,                    # post-fusion MLP
        o_ref):                                                # (B, 1)
    f32 = jnp.float32

    def dense(x, w, b):
        return jnp.dot(x, w[...], preferred_element_type=f32) + b[...]

    def relu(x):
        return jnp.maximum(x, 0.0)

    def subnet(x, w1, b1, w2, b2, w3, b3):
        # BatchNorm(eval) is pre-folded into (w1, b1); Dropout is identity.
        y = relu(dense(x, w1, b1))
        y = relu(dense(y, w2, b2))
        return relu(dense(y, w3, b3))

    audio_h = subnet(audio_ref[...], a_w1, a_b1, a_w2, a_b2, a_w3, a_b3)   # (B, Ha)
    video_h = subnet(video_ref[...], v_w1, v_b1, v_w2, v_b2, v_w3, v_b3)   # (B, Hv)

    # ---- TextSubNet: LSTM with packed gates, hoisted input projection ----
    B = audio_ref.shape[0]
    H = t_whh.shape[0]
    S = text_ref.shape[0] // B
    # One (S*B, Dt) @ (Dt, 4H) matmul covers every timestep's input side; bias
    # is the combined b_ih + b_hh (PyTorch convention), gate order i,f,g,o.
    xg = jnp.dot(text_ref[...], t_wih[...], preferred_element_type=f32) + t_b[...]  # (S*B, 4H)
    whh = t_whh[...]
    h = jnp.zeros((B, H), f32)
    c = jnp.zeros((B, H), f32)
    for t in range(S):  # static unroll: S is small and fixed
        g = xg[t * B:(t + 1) * B, :] + jnp.dot(h, whh, preferred_element_type=f32)  # (B, 4H)
        i_g = jax.nn.sigmoid(g[:, 0 * H:1 * H])
        f_g = jax.nn.sigmoid(g[:, 1 * H:2 * H])
        c_g = jnp.tanh(g[:, 2 * H:3 * H])
        o_g = jax.nn.sigmoid(g[:, 3 * H:4 * H])
        c = f_g * c + i_g * c_g
        h = o_g * jnp.tanh(c)

    # ---- Tensor fusion, abl='lva': flatten([1;l] x [1;v] x [1;a]) in VMEM ----
    # fusion[b, (i*n1+j)*n2+k] = [1;l][b,i] * [1;v][b,j] * [1;a][b,k], built as
    # constant one-hot expansion matmuls (no in-kernel reshape, never hits HBM).
    # The text final Linear is pre-folded into (tl_w, tl_b) on the host.
    tl = jnp.dot(h, tl_w[...], preferred_element_type=f32) + tl_b[...]
    tv = jnp.dot(video_h, ev_rest[...], preferred_element_type=f32) + ev_one[...]
    ta = jnp.dot(audio_h, ea_rest[...], preferred_element_type=f32) + ea_one[...]
    fusion = tl * tv * ta                                      # (B, 729)

    # ---- Post-fusion MLP (dropout identity in eval); sigmoid*6 - 3 ----
    y1 = relu(dense(fusion, p_w1, p_b1))
    y2 = relu(dense(y1, p_w2, p_b2))
    z = dense(y2, p_w3, p_b3)
    o_ref[...] = jax.nn.sigmoid(z) * 6.0 - 3.0


# --------------------------------------------------------------------------
# Constant one-hot expansion matrices (index decomposition of the fusion dim)
# Built once with numpy -> true compile-time constants.
# --------------------------------------------------------------------------
def _expansion_matrices_np():
    n0, n1, n2 = TEXT_OUT + 1, VIDEO_HIDDEN + 1, AUDIO_HIDDEN + 1
    n = np.arange(n0 * n1 * n2)
    comps = (n // (n1 * n2), (n // n2) % n1, n % n2)   # text / video / audio index
    mats = []
    for comp, size in zip(comps, (n0, n1, n2)):
        e = (comp[None, :] == np.arange(size)[:, None]).astype(np.float32)   # (size, F)
        mats.append(e[0:1, :])   # contribution of the prepended "1"
        mats.append(e[1:, :])    # contribution of the hidden features
    return tuple(mats)           # (el_one, el_rest, ev_one, ev_rest, ea_one, ea_rest)


_EL_ONE, _EL_REST, _EV_ONE, _EV_REST, _EA_ONE, _EA_REST = _expansion_matrices_np()


# --------------------------------------------------------------------------
# Parameter init (deterministic, synthetic) — mirrors the PyTorch layout
# --------------------------------------------------------------------------
def init_params(key):
    keys = iter(jax.random.split(key, 64))

    def dense(din, dout, scale=0.1):
        w = jax.random.normal(next(keys), (din, dout), jnp.float32) * scale
        b = jax.random.normal(next(keys), (1, dout), jnp.float32) * scale
        return w, b

    def subnet(din, h):
        w1, b1 = dense(din, h)
        w2, b2 = dense(h, h)
        w3, b3 = dense(h, h)
        return dict(mean=jnp.zeros((1, din), jnp.float32),
                    var=jnp.ones((1, din), jnp.float32),
                    gamma=jnp.ones((1, din), jnp.float32),
                    beta=jnp.zeros((1, din), jnp.float32),
                    w1=w1, b1=b1, w2=w2, b2=b2, w3=w3, b3=b3)

    def lstm_text(din, h, dout):
        # Gates packed along the last dim in PyTorch order (i, f, g, o).
        wih = jax.random.normal(next(keys), (din, 4 * h), jnp.float32) * 0.1
        whh = jax.random.normal(next(keys), (h, 4 * h), jnp.float32) * 0.1
        b = jax.random.normal(next(keys), (1, 4 * h), jnp.float32) * 0.1   # b_ih + b_hh combined
        wl, bl = dense(h, dout)
        return dict(wih=wih, whh=whh, b=b, wl=wl, bl=bl)

    post = {}
    post['w1'], post['b1'] = dense(FUSION_DIM, POST_FUSION_DIM)
    post['w2'], post['b2'] = dense(POST_FUSION_DIM, POST_FUSION_DIM)
    post['w3'], post['b3'] = dense(POST_FUSION_DIM, 1)

    return dict(audio=subnet(AUDIO_IN, AUDIO_HIDDEN),
                video=subnet(VIDEO_IN, VIDEO_HIDDEN),
                text=lstm_text(TEXT_IN, TEXT_HIDDEN, TEXT_OUT),
                post=post)


# --------------------------------------------------------------------------
# One-time host-side parameter preparation (exact algebraic folds)
# --------------------------------------------------------------------------
def prepare_inference_params(params):
    def fold_bn(sp):
        # BN(eval): xn = (x - mean) * gamma / sqrt(var + eps) + beta
        # relu((xn) @ W1 + b1) == relu(x @ (scale * W1) + (shift @ W1 + b1))
        scale = sp['gamma'] * lax.rsqrt(sp['var'] + BN_EPS)            # (1, Din)
        shift = sp['beta'] - sp['mean'] * scale                        # (1, Din)
        w1 = sp['w1'] * scale.reshape(-1, 1)                           # (Din, H)
        b1 = sp['b1'] + shift @ sp['w1']                               # (1, H)
        return dict(w1=w1, b1=b1, w2=sp['w2'], b2=sp['b2'], w3=sp['w3'], b3=sp['b3'])

    tp = params['text']
    el_rest = jnp.asarray(_EL_REST)
    # text_h @ E_rest + E_one with text_h = h @ Wl + bl  ==>  h @ (Wl E_rest) + (bl E_rest + E_one)
    tl_w = tp['wl'] @ el_rest                                          # (H, F)
    tl_b = tp['bl'] @ el_rest + jnp.asarray(_EL_ONE)                   # (1, F)

    return dict(
        audio=fold_bn(params['audio']),
        video=fold_bn(params['video']),
        text=dict(wih=tp['wih'], whh=tp['whh'], b=tp['b'], tl_w=tl_w, tl_b=tl_b),
        expand=dict(ev_rest=jnp.asarray(_EV_REST), ev_one=jnp.asarray(_EV_ONE),
                    ea_rest=jnp.asarray(_EA_REST), ea_one=jnp.asarray(_EA_ONE)),
        post=params['post'])


# --------------------------------------------------------------------------
# Forward wrapper — one fused pallas_call
# --------------------------------------------------------------------------
def tfn_forward(inf_params, text_x, audio_x, video_x, control_x):
    del control_x  # with_control = False
    audio_x = jnp.squeeze(audio_x, axis=1)   # (B, audio_in)
    video_x = jnp.squeeze(video_x, axis=1)   # (B, video_in)
    B = audio_x.shape[0]
    S = text_x.shape[1]

    # Time-major flatten so the kernel's per-timestep rows are contiguous.
    # TODO(synk): this tiny (B,S,Dt)=2 KiB transpose stays as one XLA op; all
    # heavy work (matmuls, recurrence, fusion, MLP) runs inside the kernel.
    text_flat = jnp.transpose(text_x, (1, 0, 2)).reshape(S * B, TEXT_IN)

    ap, vp, tp = inf_params['audio'], inf_params['video'], inf_params['text']
    ep, pp = inf_params['expand'], inf_params['post']

    out = pl.pallas_call(
        _tfn_fused_kernel,
        out_shape=jax.ShapeDtypeStruct((B, 1), jnp.float32),
        in_specs=[_VMEM] * 30,
        out_specs=_VMEM,
    )(text_flat, audio_x, video_x,
      ap['w1'], ap['b1'], ap['w2'], ap['b2'], ap['w3'], ap['b3'],
      vp['w1'], vp['b1'], vp['w2'], vp['b2'], vp['w3'], vp['b3'],
      tp['wih'], tp['whh'], tp['b'],
      tp['tl_w'], tp['tl_b'], ep['ev_rest'], ep['ev_one'], ep['ea_rest'], ep['ea_one'],
      pp['w1'], pp['b1'], pp['w2'], pp['b2'], pp['w3'], pp['b3'])

    return {'M': out}


if __name__ == "__main__":
    key = jax.random.PRNGKey(0)
    k_p, k_t, k_a, k_v, k_c = jax.random.split(key, 5)

    params = init_params(k_p)
    inf_params = prepare_inference_params(params)   # one-time host-side fold

    text_x = jax.random.normal(k_t, (BATCH, SEQ, TEXT_IN), jnp.float32)
    audio_x = jax.random.normal(k_a, (BATCH, 1, AUDIO_IN), jnp.float32)
    video_x = jax.random.normal(k_v, (BATCH, 1, VIDEO_IN), jnp.float32)
    control_x = jax.random.normal(k_c, (BATCH,), jnp.float32)

    res = jax.jit(tfn_forward)(inf_params, text_x, audio_x, video_x, control_x)
    out = jax.block_until_ready(res['M'])

    assert out.shape == (BATCH, 1)
    assert bool(jnp.all(jnp.isfinite(out)))
    assert bool(jnp.all((out >= -3.0) & (out <= 3.0)))
    print("KERNEL_OK")
</pallas_src>

<mosaic_0001>
module attributes {stable_mosaic.version = 11 : i64} {
  func.func @_tfn_fused_kernel(%arg0: memref<32x16xf32, #tpu.memory_space<vmem>>, %arg1: memref<4x8xf32, #tpu.memory_space<vmem>>, %arg2: memref<4x8xf32, #tpu.memory_space<vmem>>, %arg3: memref<8x8xf32, #tpu.memory_space<vmem>>, %arg4: memref<1x8xf32, #tpu.memory_space<vmem>>, %arg5: memref<8x8xf32, #tpu.memory_space<vmem>>, %arg6: memref<1x8xf32, #tpu.memory_space<vmem>>, %arg7: memref<8x8xf32, #tpu.memory_space<vmem>>, %arg8: memref<1x8xf32, #tpu.memory_space<vmem>>, %arg9: memref<8x8xf32, #tpu.memory_space<vmem>>, %arg10: memref<1x8xf32, #tpu.memory_space<vmem>>, %arg11: memref<8x8xf32, #tpu.memory_space<vmem>>, %arg12: memref<1x8xf32, #tpu.memory_space<vmem>>, %arg13: memref<8x8xf32, #tpu.memory_space<vmem>>, %arg14: memref<1x8xf32, #tpu.memory_space<vmem>>, %arg15: memref<16x64xf32, #tpu.memory_space<vmem>>, %arg16: memref<16x64xf32, #tpu.memory_space<vmem>>, %arg17: memref<1x64xf32, #tpu.memory_space<vmem>>, %arg18: memref<16x729xf32, #tpu.memory_space<vmem>>, %arg19: memref<1x729xf32, #tpu.memory_space<vmem>>, %arg20: memref<8x729xf32, #tpu.memory_space<vmem>>, %arg21: memref<1x729xf32, #tpu.memory_space<vmem>>, %arg22: memref<8x729xf32, #tpu.memory_space<vmem>>, %arg23: memref<1x729xf32, #tpu.memory_space<vmem>>, %arg24: memref<729x32xf32, #tpu.memory_space<vmem>>, %arg25: memref<1x32xf32, #tpu.memory_space<vmem>>, %arg26: memref<32x32xf32, #tpu.memory_space<vmem>>, %arg27: memref<1x32xf32, #tpu.memory_space<vmem>>, %arg28: memref<32x1xf32, #tpu.memory_space<vmem>>, %arg29: memref<1x1xf32, #tpu.memory_space<vmem>>, %arg30: memref<4x1xf32, #tpu.memory_space<vmem>>) attributes {dimension_semantics = [], scalar_prefetch = 0 : i64, scratch_operands = 0 : i64, tpu.core_type = #tpu.core_type<tc>} {
    %c0 = arith.constant 0 : index
    %c0_0 = arith.constant 0 : index
    %0 = vector.load %arg1[%c0, %c0_0] : memref<4x8xf32, #tpu.memory_space<vmem>>, vector<4x8xf32>
    %c0_1 = arith.constant 0 : index
    %c0_2 = arith.constant 0 : index
    %1 = vector.load %arg3[%c0_1, %c0_2] : memref<8x8xf32, #tpu.memory_space<vmem>>, vector<8x8xf32>
    %cst = arith.constant dense<0.000000e+00> : vector<4x8xf32>
    %2 = tpu.matmul %0, %1, %cst {dimension_numbers = #tpu.dot_dimension_numbers<[1], [0], [0], [1], [0, 0, 1, 1], [], []>} : vector<4x8xf32>, vector<8x8xf32>, vector<4x8xf32> -> vector<4x8xf32>
    %c0_3 = arith.constant 0 : index
    %c0_4 = arith.constant 0 : index
    %3 = vector.load %arg4[%c0_3, %c0_4] : memref<1x8xf32, #tpu.memory_space<vmem>>, vector<1x8xf32>
    %4 = vector.broadcast %3 : vector<1x8xf32> to vector<4x8xf32>
    %5 = arith.addf %2, %4 : vector<4x8xf32>
    %cst_5 = arith.constant 0.000000e+00 : f32
    %6 = vector.broadcast %cst_5 : f32 to vector<4x8xf32>
    %7 = arith.maximumf %5, %6 : vector<4x8xf32>
    %c0_6 = arith.constant 0 : index
    %c0_7 = arith.constant 0 : index
    %8 = vector.load %arg5[%c0_6, %c0_7] : memref<8x8xf32, #tpu.memory_space<vmem>>, vector<8x8xf32>
    %cst_8 = arith.constant dense<0.000000e+00> : vector<4x8xf32>
    %9 = tpu.matmul %7, %8, %cst_8 {dimension_numbers = #tpu.dot_dimension_numbers<[1], [0], [0], [1], [0, 0, 1, 1], [], []>} : vector<4x8xf32>, vector<8x8xf32>, vector<4x8xf32> -> vector<4x8xf32>
    %c0_9 = arith.constant 0 : index
    %c0_10 = arith.constant 0 : index
    %10 = vector.load %arg6[%c0_9, %c0_10] : memref<1x8xf32, #tpu.memory_space<vmem>>, vector<1x8xf32>
    %11 = vector.broadcast %10 : vector<1x8xf32> to vector<4x8xf32>
    %12 = arith.addf %9, %11 : vector<4x8xf32>
    %cst_11 = arith.constant 0.000000e+00 : f32
    %13 = vector.broadcast %cst_11 : f32 to vector<4x8xf32>
    %14 = arith.maximumf %12, %13 : vector<4x8xf32>
    %c0_12 = arith.constant 0 : index
    %c0_13 = arith.constant 0 : index
    %15 = vector.load %arg7[%c0_12, %c0_13] : memref<8x8xf32, #tpu.memory_space<vmem>>, vector<8x8xf32>
    %cst_14 = arith.constant dense<0.000000e+00> : vector<4x8xf32>
    %16 = tpu.matmul %14, %15, %cst_14 {dimension_numbers = #tpu.dot_dimension_numbers<[1], [0], [0], [1], [0, 0, 1, 1], [], []>} : vector<4x8xf32>, vector<8x8xf32>, vector<4x8xf32> -> vector<4x8xf32>
    %c0_15 = arith.constant 0 : index
    %c0_16 = arith.constant 0 : index
    %17 = vector.load %arg8[%c0_15, %c0_16] : memref<1x8xf32, #tpu.memory_space<vmem>>, vector<1x8xf32>
    %18 = vector.broadcast %17 : vector<1x8xf32> to vector<4x8xf32>
    %19 = arith.addf %16, %18 : vector<4x8xf32>
    %cst_17 = arith.constant 0.000000e+00 : f32
    %20 = vector.broadcast %cst_17 : f32 to vector<4x8xf32>
    %21 = arith.maximumf %19, %20 : vector<4x8xf32>
    %c0_18 = arith.constant 0 : index
    %c0_19 = arith.constant 0 : index
    %22 = vector.load %arg2[%c0_18, %c0_19] : memref<4x8xf32, #tpu.memory_space<vmem>>, vector<4x8xf32>
    %c0_20 = arith.constant 0 : index
    %c0_21 = arith.constant 0 : index
    %23 = vector.load %arg9[%c0_20, %c0_21] : memref<8x8xf32, #tpu.memory_space<vmem>>, vector<8x8xf32>
    %cst_22 = arith.constant dense<0.000000e+00> : vector<4x8xf32>
    %24 = tpu.matmul %22, %23, %cst_22 {dimension_numbers = #tpu.dot_dimension_numbers<[1], [0], [0], [1], [0, 0, 1, 1], [], []>} : vector<4x8xf32>, vector<8x8xf32>, vector<4x8xf32> -> vector<4x8xf32>
    %c0_23 = arith.constant 0 : index
    %c0_24 = arith.constant 0 : index
    %25 = vector.load %arg10[%c0_23, %c0_24] : memref<1x8xf32, #tpu.memory_space<vmem>>, vector<1x8xf32>
    %26 = vector.broadcast %25 : vector<1x8xf32> to vector<4x8xf32>
    %27 = arith.addf %24, %26 : vector<4x8xf32>
    %cst_25 = arith.constant 0.000000e+00 : f32
    %28 = vector.broadcast %cst_25 : f32 to vector<4x8xf32>
    %29 = arith.maximumf %27, %28 : vector<4x8xf32>
    %c0_26 = arith.constant 0 : index
    %c0_27 = arith.constant 0 : index
    %30 = vector.load %arg11[%c0_26, %c0_27] : memref<8x8xf32, #tpu.memory_space<vmem>>, vector<8x8xf32>
    %cst_28 = arith.constant dense<0.000000e+00> : vector<4x8xf32>
    %31 = tpu.matmul %29, %30, %cst_28 {dimension_numbers = #tpu.dot_dimension_numbers<[1], [0], [0], [1], [0, 0, 1, 1], [], []>} : vector<4x8xf32>, vector<8x8xf32>, vector<4x8xf32> -> vector<4x8xf32>
    %c0_29 = arith.constant 0 : index
    %c0_30 = arith.constant 0 : index
    %32 = vector.load %arg12[%c0_29, %c0_30] : memref<1x8xf32, #tpu.memory_space<vmem>>, vector<1x8xf32>
    %33 = vector.broadcast %32 : vector<1x8xf32> to vector<4x8xf32>
    %34 = arith.addf %31, %33 : vector<4x8xf32>
    %cst_31 = arith.constant 0.000000e+00 : f32
    %35 = vector.broadcast %cst_31 : f32 to vector<4x8xf32>
    %36 = arith.maximumf %34, %35 : vector<4x8xf32>
    %c0_32 = arith.constant 0 : index
    %c0_33 = arith.constant 0 : index
    %37 = vector.load %arg13[%c0_32, %c0_33] : memref<8x8xf32, #tpu.memory_space<vmem>>, vector<8x8xf32>
    %cst_34 = arith.constant dense<0.000000e+00> : vector<4x8xf32>
    %38 = tpu.matmul %36, %37, %cst_34 {dimension_numbers = #tpu.dot_dimension_numbers<[1], [0], [0], [1], [0, 0, 1, 1], [], []>} : vector<4x8xf32>, vector<8x8xf32>, vector<4x8xf32> -> vector<4x8xf32>
    %c0_35 = arith.constant 0 : index
    %c0_36 = arith.constant 0 : index
    %39 = vector.load %arg14[%c0_35, %c0_36] : memref<1x8xf32, #tpu.memory_space<vmem>>, vector<1x8xf32>
    %40 = vector.broadcast %39 : vector<1x8xf32> to vector<4x8xf32>
    %41 = arith.addf %38, %40 : vector<4x8xf32>
    %cst_37 = arith.constant 0.000000e+00 : f32
    %42 = vector.broadcast %cst_37 : f32 to vector<4x8xf32>
    %43 = arith.maximumf %41, %42 : vector<4x8xf32>
    %c0_38 = arith.constant 0 : index
    %c0_39 = arith.constant 0 : index
    %44 = vector.load %arg0[%c0_38, %c0_39] : memref<32x16xf32, #tpu.memory_space<vmem>>, vector<32x16xf32>
    %c0_40 = arith.constant 0 : index
    %c0_41 = arith.constant 0 : index
    %45 = vector.load %arg15[%c0_40, %c0_41] : memref<16x64xf32, #tpu.memory_space<vmem>>, vector<16x64xf32>
    %cst_42 = arith.constant dense<0.000000e+00> : vector<32x64xf32>
    %46 = tpu.matmul %44, %45, %cst_42 {dimension_numbers = #tpu.dot_dimension_numbers<[1], [0], [0], [1], [0, 0, 1, 1], [], []>} : vector<32x16xf32>, vector<16x64xf32>, vector<32x64xf32> -> vector<32x64xf32>
    %c0_43 = arith.constant 0 : index
    %c0_44 = arith.constant 0 : index
    %47 = vector.load %arg17[%c0_43, %c0_44] : memref<1x64xf32, #tpu.memory_space<vmem>>, vector<1x64xf32>
    %48 = vector.broadcast %47 : vector<1x64xf32> to vector<32x64xf32>
    %49 = arith.addf %46, %48 : vector<32x64xf32>
    %c0_45 = arith.constant 0 : index
    %c0_46 = arith.constant 0 : index
    %50 = vector.load %arg16[%c0_45, %c0_46] : memref<16x64xf32, #tpu.memory_space<vmem>>, vector<16x64xf32>
    %cst_47 = arith.constant 0.000000e+00 : f32
    %51 = vector.broadcast %cst_47 : f32 to vector<4x16xf32>
    %cst_48 = arith.constant 0.000000e+00 : f32
    %52 = vector.broadcast %cst_48 : f32 to vector<4x16xf32>
    %53 = vector.extract_strided_slice %49 {offsets = [0, 0], sizes = [4, 64], strides = [1, 1]} : vector<32x64xf32> to vector<4x64xf32>
    %cst_49 = arith.constant dense<0.000000e+00> : vector<4x64xf32>
    %54 = tpu.matmul %51, %50, %cst_49 {dimension_numbers = #tpu.dot_dimension_numbers<[1], [0], [0], [1], [0, 0, 1, 1], [], []>} : vector<4x16xf32>, vector<16x64xf32>, vector<4x64xf32> -> vector<4x64xf32>
    %55 = arith.addf %53, %54 : vector<4x64xf32>
    %56 = vector.extract_strided_slice %55 {offsets = [0, 0], sizes = [4, 16], strides = [1, 1]} : vector<4x64xf32> to vector<4x16xf32>
    %57 = arith.negf %56 : vector<4x16xf32>
    %58 = math.exp %57 : vector<4x16xf32>
    %cst_50 = arith.constant 1.000000e+00 : f32
    %59 = vector.broadcast %cst_50 : f32 to vector<4x16xf32>
    %60 = arith.addf %59, %58 : vector<4x16xf32>
    %61 = arith.divf %59, %60 : vector<4x16xf32>
    %62 = vector.extract_strided_slice %55 {offsets = [0, 16], sizes = [4, 16], strides = [1, 1]} : vector<4x64xf32> to vector<4x16xf32>
    %63 = arith.negf %62 : vector<4x16xf32>
    %64 = math.exp %63 : vector<4x16xf32>
    %cst_51 = arith.constant 1.000000e+00 : f32
    %65 = vector.broadcast %cst_51 : f32 to vector<4x16xf32>
    %66 = arith.addf %65, %64 : vector<4x16xf32>
    %67 = arith.divf %65, %66 : vector<4x16xf32>
    %68 = vector.extract_strided_slice %55 {offsets = [0, 32], sizes = [4, 16], strides = [1, 1]} : vector<4x64xf32> to vector<4x16xf32>
    %69 = math.tanh %68 : vector<4x16xf32>
    %70 = vector.extract_strided_slice %55 {offsets = [0, 48], sizes = [4, 16], strides = [1, 1]} : vector<4x64xf32> to vector<4x16xf32>
    %71 = arith.negf %70 : vector<4x16xf32>
    %72 = math.exp %71 : vector<4x16xf32>
    %cst_52 = arith.constant 1.000000e+00 : f32
    %73 = vector.broadcast %cst_52 : f32 to vector<4x16xf32>
    %74 = arith.addf %73, %72 : vector<4x16xf32>
    %75 = arith.divf %73, %74 : vector<4x16xf32>
    %76 = arith.mulf %67, %52 : vector<4x16xf32>
    %77 = arith.mulf %61, %69 : vector<4x16xf32>
    %78 = arith.addf %76, %77 : vector<4x16xf32>
    %79 = math.tanh %78 : vector<4x16xf32>
    %80 = arith.mulf %75, %79 : vector<4x16xf32>
    %81 = vector.extract_strided_slice %49 {offsets = [4, 0], sizes = [4, 64], strides = [1, 1]} : vector<32x64xf32> to vector<4x64xf32>
    %cst_53 = arith.constant dense<0.000000e+00> : vector<4x64xf32>
    %82 = tpu.matmul %80, %50, %cst_53 {dimension_numbers = #tpu.dot_dimension_numbers<[1], [0], [0], [1], [0, 0, 1, 1], [], []>} : vector<4x16xf32>, vector<16x64xf32>, vector<4x64xf32> -> vector<4x64xf32>
    %83 = arith.addf %81, %82 : vector<4x64xf32>
    %84 = vector.extract_strided_slice %83 {offsets = [0, 0], sizes = [4, 16], strides = [1, 1]} : vector<4x64xf32> to vector<4x16xf32>
    %85 = arith.negf %84 : vector<4x16xf32>
    %86 = math.exp %85 : vector<4x16xf32>
    %cst_54 = arith.constant 1.000000e+00 : f32
    %87 = vector.broadcast %cst_54 : f32 to vector<4x16xf32>
    %88 = arith.addf %87, %86 : vector<4x16xf32>
    %89 = arith.divf %87, %88 : vector<4x16xf32>
    %90 = vector.extract_strided_slice %83 {offsets = [0, 16], sizes = [4, 16], strides = [1, 1]} : vector<4x64xf32> to vector<4x16xf32>
    %91 = arith.negf %90 : vector<4x16xf32>
    %92 = math.exp %91 : vector<4x16xf32>
    %cst_55 = arith.constant 1.000000e+00 : f32
    %93 = vector.broadcast %cst_55 : f32 to vector<4x16xf32>
    %94 = arith.addf %93, %92 : vector<4x16xf32>
    %95 = arith.divf %93, %94 : vector<4x16xf32>
    %96 = vector.extract_strided_slice %83 {offsets = [0, 32], sizes = [4, 16], strides = [1, 1]} : vector<4x64xf32> to vector<4x16xf32>
    %97 = math.tanh %96 : vector<4x16xf32>
    %98 = vector.extract_strided_slice %83 {offsets = [0, 48], sizes = [4, 16], strides = [1, 1]} : vector<4x64xf32> to vector<4x16xf32>
    %99 = arith.negf %98 : vector<4x16xf32>
    %100 = math.exp %99 : vector<4x16xf32>
    %cst_56 = arith.constant 1.000000e+00 : f32
    %101 = vector.broadcast %cst_56 : f32 to vector<4x16xf32>
    %102 = arith.addf %101, %100 : vector<4x16xf32>
    %103 = arith.divf %101, %102 : vector<4x16xf32>
    %104 = arith.mulf %95, %78 : vector<4x16xf32>
    %105 = arith.mulf %89, %97 : vector<4x16xf32>
    %106 = arith.addf %104, %105 : vector<4x16xf32>
    %107 = math.tanh %106 : vector<4x16xf32>
    %108 = arith.mulf %103, %107 : vector<4x16xf32>
    %109 = vector.extract_strided_slice %49 {offsets = [8, 0], sizes = [4, 64], strides = [1, 1]} : vector<32x64xf32> to vector<4x64xf32>
    %cst_57 = arith.constant dense<0.000000e+00> : vector<4x64xf32>
    %110 = tpu.matmul %108, %50, %cst_57 {dimension_numbers = #tpu.dot_dimension_numbers<[1], [0], [0], [1], [0, 0, 1, 1], [], []>} : vector<4x16xf32>, vector<16x64xf32>, vector<4x64xf32> -> vector<4x64xf32>
    %111 = arith.addf %109, %110 : vector<4x64xf32>
    %112 = vector.extract_strided_slice %111 {offsets = [0, 0], sizes = [4, 16], strides = [1, 1]} : vector<4x64xf32> to vector<4x16xf32>
    %113 = arith.negf %112 : vector<4x16xf32>
    %114 = math.exp %113 : vector<4x16xf32>
    %cst_58 = arith.constant 1.000000e+00 : f32
    %115 = vector.broadcast %cst_58 : f32 to vector<4x16xf32>
    %116 = arith.addf %115, %114 : vector<4x16xf32>
    %117 = arith.divf %115, %116 : vector<4x16xf32>
    %118 = vector.extract_strided_slice %111 {offsets = [0, 16], sizes = [4, 16], strides = [1, 1]} : vector<4x64xf32> to vector<4x16xf32>
    %119 = arith.negf %118 : vector<4x16xf32>
    %120 = math.exp %119 : vector<4x16xf32>
    %cst_59 = arith.constant 1.000000e+00 : f32
    %121 = vector.broadcast %cst_59 : f32 to vector<4x16xf32>
    %122 = arith.addf %121, %120 : vector<4x16xf32>
    %123 = arith.divf %121, %122 : vector<4x16xf32>
    %124 = vector.extract_strided_slice %111 {offsets = [0, 32], sizes = [4, 16], strides = [1, 1]} : vector<4x64xf32> to vector<4x16xf32>
    %125 = math.tanh %124 : vector<4x16xf32>
    %126 = vector.extract_strided_slice %111 {offsets = [0, 48], sizes = [4, 16], strides = [1, 1]} : vector<4x64xf32> to vector<4x16xf32>
    %127 = arith.negf %126 : vector<4x16xf32>
    %128 = math.exp %127 : vector<4x16xf32>
    %cst_60 = arith.constant 1.000000e+00 : f32
    %129 = vector.broadcast %cst_60 : f32 to vector<4x16xf32>
    %130 = arith.addf %129, %128 : vector<4x16xf32>
    %131 = arith.divf %129, %130 : vector<4x16xf32>
    %132 = arith.mulf %123, %106 : vector<4x16xf32>
    %133 = arith.mulf %117, %125 : vector<4x16xf32>
    %134 = arith.addf %132, %133 : vector<4x16xf32>
    %135 = math.tanh %134 : vector<4x16xf32>
    %136 = arith.mulf %131, %135 : vector<4x16xf32>
    %137 = vector.extract_strided_slice %49 {offsets = [12, 0], sizes = [4, 64], strides = [1, 1]} : vector<32x64xf32> to vector<4x64xf32>
    %cst_61 = arith.constant dense<0.000000e+00> : vector<4x64xf32>
    %138 = tpu.matmul %136, %50, %cst_61 {dimension_numbers = #tpu.dot_dimension_numbers<[1], [0], [0], [1], [0, 0, 1, 1], [], []>} : vector<4x16xf32>, vector<16x64xf32>, vector<4x64xf32> -> vector<4x64xf32>
    %139 = arith.addf %137, %138 : vector<4x64xf32>
    %140 = vector.extract_strided_slice %139 {offsets = [0, 0], sizes = [4, 16], strides = [1, 1]} : vector<4x64xf32> to vector<4x16xf32>
    %141 = arith.negf %140 : vector<4x16xf32>
    %142 = math.exp %141 : vector<4x16xf32>
    %cst_62 = arith.constant 1.000000e+00 : f32
    %143 = vector.broadcast %cst_62 : f32 to vector<4x16xf32>
    %144 = arith.addf %143, %142 : vector<4x16xf32>
    %145 = arith.divf %143, %144 : vector<4x16xf32>
    %146 = vector.extract_strided_slice %139 {offsets = [0, 16], sizes = [4, 16], strides = [1, 1]} : vector<4x64xf32> to vector<4x16xf32>
    %147 = arith.negf %146 : vector<4x16xf32>
    %148 = math.exp %147 : vector<4x16xf32>
    %cst_63 = arith.constant 1.000000e+00 : f32
    %149 = vector.broadcast %cst_63 : f32 to vector<4x16xf32>
    %150 = arith.addf %149, %148 : vector<4x16xf32>
    %151 = arith.divf %149, %150 : vector<4x16xf32>
    %152 = vector.extract_strided_slice %139 {offsets = [0, 32], sizes = [4, 16], strides = [1, 1]} : vector<4x64xf32> to vector<4x16xf32>
    %153 = math.tanh %152 : vector<4x16xf32>
    %154 = vector.extract_strided_slice %139 {offsets = [0, 48], sizes = [4, 16], strides = [1, 1]} : vector<4x64xf32> to vector<4x16xf32>
    %155 = arith.negf %154 : vector<4x16xf32>
    %156 = math.exp %155 : vector<4x16xf32>
    %cst_64 = arith.constant 1.000000e+00 : f32
    %157 = vector.broadcast %cst_64 : f32 to vector<4x16xf32>
    %158 = arith.addf %157, %156 : vector<4x16xf32>
    %159 = arith.divf %157, %158 : vector<4x16xf32>
    %160 = arith.mulf %151, %134 : vector<4x16xf32>
    %161 = arith.mulf %145, %153 : vector<4x16xf32>
    %162 = arith.addf %160, %161 : vector<4x16xf32>
    %163 = math.tanh %162 : vector<4x16xf32>
    %164 = arith.mulf %159, %163 : vector<4x16xf32>
    %165 = vector.extract_strided_slice %49 {offsets = [16, 0], sizes = [4, 64], strides = [1, 1]} : vector<32x64xf32> to vector<4x64xf32>
    %cst_65 = arith.constant dense<0.000000e+00> : vector<4x64xf32>
    %166 = tpu.matmul %164, %50, %cst_65 {dimension_numbers = #tpu.dot_dimension_numbers<[1], [0], [0], [1], [0, 0, 1, 1], [], []>} : vector<4x16xf32>, vector<16x64xf32>, vector<4x64xf32> -> vector<4x64xf32>
    %167 = arith.addf %165, %166 : vector<4x64xf32>
    %168 = vector.extract_strided_slice %167 {offsets = [0, 0], sizes = [4, 16], strides = [1, 1]} : vector<4x64xf32> to vector<4x16xf32>
    %169 = arith.negf %168 : vector<4x16xf32>
    %170 = math.exp %169 : vector<4x16xf32>
    %cst_66 = arith.constant 1.000000e+00 : f32
    %171 = vector.broadcast %cst_66 : f32 to vector<4x16xf32>
    %172 = arith.addf %171, %170 : vector<4x16xf32>
    %173 = arith.divf %171, %172 : vector<4x16xf32>
    %174 = vector.extract_strided_slice %167 {offsets = [0, 16], sizes = [4, 16], strides = [1, 1]} : vector<4x64xf32> to vector<4x16xf32>
    %175 = arith.negf %174 : vector<4x16xf32>
    %176 = math.exp %175 : vector<4x16xf32>
    %cst_67 = arith.constant 1.000000e+00 : f32
    %177 = vector.broadcast %cst_67 : f32 to vector<4x16xf32>
    %178 = arith.addf %177, %176 : vector<4x16xf32>
    %179 = arith.divf %177, %178 : vector<4x16xf32>
    %180 = vector.extract_strided_slice %167 {offsets = [0, 32], sizes = [4, 16], strides = [1, 1]} : vector<4x64xf32> to vector<4x16xf32>
    %181 = math.tanh %180 : vector<4x16xf32>
    %182 = vector.extract_strided_slice %167 {offsets = [0, 48], sizes = [4, 16], strides = [1, 1]} : vector<4x64xf32> to vector<4x16xf32>
    %183 = arith.negf %182 : vector<4x16xf32>
    %184 = math.exp %183 : vector<4x16xf32>
    %cst_68 = arith.constant 1.000000e+00 : f32
    %185 = vector.broadcast %cst_68 : f32 to vector<4x16xf32>
    %186 = arith.addf %185, %184 : vector<4x16xf32>
    %187 = arith.divf %185, %186 : vector<4x16xf32>
    %188 = arith.mulf %179, %162 : vector<4x16xf32>
    %189 = arith.mulf %173, %181 : vector<4x16xf32>
    %190 = arith.addf %188, %189 : vector<4x16xf32>
    %191 = math.tanh %190 : vector<4x16xf32>
    %192 = arith.mulf %187, %191 : vector<4x16xf32>
    %193 = vector.extract_strided_slice %49 {offsets = [20, 0], sizes = [4, 64], strides = [1, 1]} : vector<32x64xf32> to vector<4x64xf32>
    %cst_69 = arith.constant dense<0.000000e+00> : vector<4x64xf32>
    %194 = tpu.matmul %192, %50, %cst_69 {dimension_numbers = #tpu.dot_dimension_numbers<[1], [0], [0], [1], [0, 0, 1, 1], [], []>} : vector<4x16xf32>, vector<16x64xf32>, vector<4x64xf32> -> vector<4x64xf32>
    %195 = arith.addf %193, %194 : vector<4x64xf32>
    %196 = vector.extract_strided_slice %195 {offsets = [0, 0], sizes = [4, 16], strides = [1, 1]} : vector<4x64xf32> to vector<4x16xf32>
    %197 = arith.negf %196 : vector<4x16xf32>
    %198 = math.exp %197 : vector<4x16xf32>
    %cst_70 = arith.constant 1.000000e+00 : f32
    %199 = vector.broadcast %cst_70 : f32 to vector<4x16xf32>
    %200 = arith.addf %199, %198 : vector<4x16xf32>
    %201 = arith.divf %199, %200 : vector<4x16xf32>
    %202 = vector.extract_strided_slice %195 {offsets = [0, 16], sizes = [4, 16], strides = [1, 1]} : vector<4x64xf32> to vector<4x16xf32>
    %203 = arith.negf %202 : vector<4x16xf32>
    %204 = math.exp %203 : vector<4x16xf32>
    %cst_71 = arith.constant 1.000000e+00 : f32
    %205 = vector.broadcast %cst_71 : f32 to vector<4x16xf32>
    %206 = arith.addf %205, %204 : vector<4x16xf32>
    %207 = arith.divf %205, %206 : vector<4x16xf32>
    %208 = vector.extract_strided_slice %195 {offsets = [0, 32], sizes = [4, 16], strides = [1, 1]} : vector<4x64xf32> to vector<4x16xf32>
    %209 = math.tanh %208 : vector<4x16xf32>
    %210 = vector.extract_strided_slice %195 {offsets = [0, 48], sizes = [4, 16], strides = [1, 1]} : vector<4x64xf32> to vector<4x16xf32>
    %211 = arith.negf %210 : vector<4x16xf32>
    %212 = math.exp %211 : vector<4x16xf32>
    %cst_72 = arith.constant 1.000000e+00 : f32
    %213 = vector.broadcast %cst_72 : f32 to vector<4x16xf32>
    %214 = arith.addf %213, %212 : vector<4x16xf32>
    %215 = arith.divf %213, %214 : vector<4x16xf32>
    %216 = arith.mulf %207, %190 : vector<4x16xf32>
    %217 = arith.mulf %201, %209 : vector<4x16xf32>
    %218 = arith.addf %216, %217 : vector<4x16xf32>
    %219 = math.tanh %218 : vector<4x16xf32>
    %220 = arith.mulf %215, %219 : vector<4x16xf32>
    %221 = vector.extract_strided_slice %49 {offsets = [24, 0], sizes = [4, 64], strides = [1, 1]} : vector<32x64xf32> to vector<4x64xf32>
    %cst_73 = arith.constant dense<0.000000e+00> : vector<4x64xf32>
    %222 = tpu.matmul %220, %50, %cst_73 {dimension_numbers = #tpu.dot_dimension_numbers<[1], [0], [0], [1], [0, 0, 1, 1], [], []>} : vector<4x16xf32>, vector<16x64xf32>, vector<4x64xf32> -> vector<4x64xf32>
    %223 = arith.addf %221, %222 : vector<4x64xf32>
    %224 = vector.extract_strided_slice %223 {offsets = [0, 0], sizes = [4, 16], strides = [1, 1]} : vector<4x64xf32> to vector<4x16xf32>
    %225 = arith.negf %224 : vector<4x16xf32>
    %226 = math.exp %225 : vector<4x16xf32>
    %cst_74 = arith.constant 1.000000e+00 : f32
    %227 = vector.broadcast %cst_74 : f32 to vector<4x16xf32>
    %228 = arith.addf %227, %226 : vector<4x16xf32>
    %229 = arith.divf %227, %228 : vector<4x16xf32>
    %230 = vector.extract_strided_slice %223 {offsets = [0, 16], sizes = [4, 16], strides = [1, 1]} : vector<4x64xf32> to vector<4x16xf32>
    %231 = arith.negf %230 : vector<4x16xf32>
    %232 = math.exp %231 : vector<4x16xf32>
    %cst_75 = arith.constant 1.000000e+00 : f32
    %233 = vector.broadcast %cst_75 : f32 to vector<4x16xf32>
    %234 = arith.addf %233, %232 : vector<4x16xf32>
    %235 = arith.divf %233, %234 : vector<4x16xf32>
    %236 = vector.extract_strided_slice %223 {offsets = [0, 32], sizes = [4, 16], strides = [1, 1]} : vector<4x64xf32> to vector<4x16xf32>
    %237 = math.tanh %236 : vector<4x16xf32>
    %238 = vector.extract_strided_slice %223 {offsets = [0, 48], sizes = [4, 16], strides = [1, 1]} : vector<4x64xf32> to vector<4x16xf32>
    %239 = arith.negf %238 : vector<4x16xf32>
    %240 = math.exp %239 : vector<4x16xf32>
    %cst_76 = arith.constant 1.000000e+00 : f32
    %241 = vector.broadcast %cst_76 : f32 to vector<4x16xf32>
    %242 = arith.addf %241, %240 : vector<4x16xf32>
    %243 = arith.divf %241, %242 : vector<4x16xf32>
    %244 = arith.mulf %235, %218 : vector<4x16xf32>
    %245 = arith.mulf %229, %237 : vector<4x16xf32>
    %246 = arith.addf %244, %245 : vector<4x16xf32>
    %247 = math.tanh %246 : vector<4x16xf32>
    %248 = arith.mulf %243, %247 : vector<4x16xf32>
    %249 = vector.extract_strided_slice %49 {offsets = [28, 0], sizes = [4, 64], strides = [1, 1]} : vector<32x64xf32> to vector<4x64xf32>
    %cst_77 = arith.constant dense<0.000000e+00> : vector<4x64xf32>
    %250 = tpu.matmul %248, %50, %cst_77 {dimension_numbers = #tpu.dot_dimension_numbers<[1], [0], [0], [1], [0, 0, 1, 1], [], []>} : vector<4x16xf32>, vector<16x64xf32>, vector<4x64xf32> -> vector<4x64xf32>
    %251 = arith.addf %249, %250 : vector<4x64xf32>
    %252 = vector.extract_strided_slice %251 {offsets = [0, 0], sizes = [4, 16], strides = [1, 1]} : vector<4x64xf32> to vector<4x16xf32>
    %253 = arith.negf %252 : vector<4x16xf32>
    %254 = math.exp %253 : vector<4x16xf32>
    %cst_78 = arith.constant 1.000000e+00 : f32
    %255 = vector.broadcast %cst_78 : f32 to vector<4x16xf32>
    %256 = arith.addf %255, %254 : vector<4x16xf32>
    %257 = arith.divf %255, %256 : vector<4x16xf32>
    %258 = vector.extract_strided_slice %251 {offsets = [0, 16], sizes = [4, 16], strides = [1, 1]} : vector<4x64xf32> to vector<4x16xf32>
    %259 = arith.negf %258 : vector<4x16xf32>
    %260 = math.exp %259 : vector<4x16xf32>
    %cst_79 = arith.constant 1.000000e+00 : f32
    %261 = vector.broadcast %cst_79 : f32 to vector<4x16xf32>
    %262 = arith.addf %261, %260 : vector<4x16xf32>
    %263 = arith.divf %261, %262 : vector<4x16xf32>
    %264 = vector.extract_strided_slice %251 {offsets = [0, 32], sizes = [4, 16], strides = [1, 1]} : vector<4x64xf32> to vector<4x16xf32>
    %265 = math.tanh %264 : vector<4x16xf32>
    %266 = vector.extract_strided_slice %251 {offsets = [0, 48], sizes = [4, 16], strides = [1, 1]} : vector<4x64xf32> to vector<4x16xf32>
    %267 = arith.negf %266 : vector<4x16xf32>
    %268 = math.exp %267 : vector<4x16xf32>
    %cst_80 = arith.constant 1.000000e+00 : f32
    %269 = vector.broadcast %cst_80 : f32 to vector<4x16xf32>
    %270 = arith.addf %269, %268 : vector<4x16xf32>
    %271 = arith.divf %269, %270 : vector<4x16xf32>
    %272 = arith.mulf %263, %246 : vector<4x16xf32>
    %273 = arith.mulf %257, %265 : vector<4x16xf32>
    %274 = arith.addf %272, %273 : vector<4x16xf32>
    %275 = math.tanh %274 : vector<4x16xf32>
    %276 = arith.mulf %271, %275 : vector<4x16xf32>
    %c0_81 = arith.constant 0 : index
    %c0_82 = arith.constant 0 : index
    %277 = vector.load %arg18[%c0_81, %c0_82] : memref<16x729xf32, #tpu.memory_space<vmem>>, vector<16x729xf32>
    %cst_83 = arith.constant dense<0.000000e+00> : vector<4x729xf32>
    %278 = tpu.matmul %276, %277, %cst_83 {dimension_numbers = #tpu.dot_dimension_numbers<[1], [0], [0], [1], [0, 0, 1, 1], [], []>} : vector<4x16xf32>, vector<16x729xf32>, vector<4x729xf32> -> vector<4x729xf32>
    %c0_84 = arith.constant 0 : index
    %c0_85 = arith.constant 0 : index
    %279 = vector.load %arg19[%c0_84, %c0_85] : memref<1x729xf32, #tpu.memory_space<vmem>>, vector<1x729xf32>
    %280 = vector.broadcast %279 : vector<1x729xf32> to vector<4x729xf32>
    %281 = arith.addf %278, %280 : vector<4x729xf32>
    %c0_86 = arith.constant 0 : index
    %c0_87 = arith.constant 0 : index
    %282 = vector.load %arg20[%c0_86, %c0_87] : memref<8x729xf32, #tpu.memory_space<vmem>>, vector<8x729xf32>
    %cst_88 = arith.constant dense<0.000000e+00> : vector<4x729xf32>
    %283 = tpu.matmul %43, %282, %cst_88 {dimension_numbers = #tpu.dot_dimension_numbers<[1], [0], [0], [1], [0, 0, 1, 1], [], []>} : vector<4x8xf32>, vector<8x729xf32>, vector<4x729xf32> -> vector<4x729xf32>
    %c0_89 = arith.constant 0 : index
    %c0_90 = arith.constant 0 : index
    %284 = vector.load %arg21[%c0_89, %c0_90] : memref<1x729xf32, #tpu.memory_space<vmem>>, vector<1x729xf32>
    %285 = vector.broadcast %284 : vector<1x729xf32> to vector<4x729xf32>
    %286 = arith.addf %283, %285 : vector<4x729xf32>
    %c0_91 = arith.constant 0 : index
    %c0_92 = arith.constant 0 : index
    %287 = vector.load %arg22[%c0_91, %c0_92] : memref<8x729xf32, #tpu.memory_space<vmem>>, vector<8x729xf32>
    %cst_93 = arith.constant dense<0.000000e+00> : vector<4x729xf32>
    %288 = tpu.matmul %21, %287, %cst_93 {dimension_numbers = #tpu.dot_dimension_numbers<[1], [0], [0], [1], [0, 0, 1, 1], [], []>} : vector<4x8xf32>, vector<8x729xf32>, vector<4x729xf32> -> vector<4x729xf32>
    %c0_94 = arith.constant 0 : index
    %c0_95 = arith.constant 0 : index
    %289 = vector.load %arg23[%c0_94, %c0_95] : memref<1x729xf32, #tpu.memory_space<vmem>>, vector<1x729xf32>
    %290 = vector.broadcast %289 : vector<1x729xf32> to vector<4x729xf32>
    %291 = arith.addf %288, %290 : vector<4x729xf32>
    %292 = arith.mulf %281, %286 : vector<4x729xf32>
    %293 = arith.mulf %292, %291 : vector<4x729xf32>
    %c0_96 = arith.constant 0 : index
    %c0_97 = arith.constant 0 : index
    %294 = vector.load %arg24[%c0_96, %c0_97] : memref<729x32xf32, #tpu.memory_space<vmem>>, vector<729x32xf32>
    %cst_98 = arith.constant dense<0.000000e+00> : vector<4x32xf32>
    %295 = tpu.matmul %293, %294, %cst_98 {dimension_numbers = #tpu.dot_dimension_numbers<[1], [0], [0], [1], [0, 0, 1, 1], [], []>} : vector<4x729xf32>, vector<729x32xf32>, vector<4x32xf32> -> vector<4x32xf32>
    %c0_99 = arith.constant 0 : index
    %c0_100 = arith.constant 0 : index
    %296 = vector.load %arg25[%c0_99, %c0_100] : memref<1x32xf32, #tpu.memory_space<vmem>>, vector<1x32xf32>
    %297 = vector.broadcast %296 : vector<1x32xf32> to vector<4x32xf32>
    %298 = arith.addf %295, %297 : vector<4x32xf32>
    %cst_101 = arith.constant 0.000000e+00 : f32
    %299 = vector.broadcast %cst_101 : f32 to vector<4x32xf32>
    %300 = arith.maximumf %298, %299 : vector<4x32xf32>
    %c0_102 = arith.constant 0 : index
    %c0_103 = arith.constant 0 : index
    %301 = vector.load %arg26[%c0_102, %c0_103] : memref<32x32xf32, #tpu.memory_space<vmem>>, vector<32x32xf32>
    %cst_104 = arith.constant dense<0.000000e+00> : vector<4x32xf32>
    %302 = tpu.matmul %300, %301, %cst_104 {dimension_numbers = #tpu.dot_dimension_numbers<[1], [0], [0], [1], [0, 0, 1, 1], [], []>} : vector<4x32xf32>, vector<32x32xf32>, vector<4x32xf32> -> vector<4x32xf32>
    %c0_105 = arith.constant 0 : index
    %c0_106 = arith.constant 0 : index
    %303 = vector.load %arg27[%c0_105, %c0_106] : memref<1x32xf32, #tpu.memory_space<vmem>>, vector<1x32xf32>
    %304 = vector.broadcast %303 : vector<1x32xf32> to vector<4x32xf32>
    %305 = arith.addf %302, %304 : vector<4x32xf32>
    %cst_107 = arith.constant 0.000000e+00 : f32
    %306 = vector.broadcast %cst_107 : f32 to vector<4x32xf32>
    %307 = arith.maximumf %305, %306 : vector<4x32xf32>
    %c0_108 = arith.constant 0 : index
    %c0_109 = arith.constant 0 : index
    %308 = vector.load %arg28[%c0_108, %c0_109] : memref<32x1xf32, #tpu.memory_space<vmem>>, vector<32x1xf32>
    %cst_110 = arith.constant dense<0.000000e+00> : vector<4x1xf32>
    %309 = tpu.matmul %307, %308, %cst_110 {dimension_numbers = #tpu.dot_dimension_numbers<[1], [0], [0], [1], [0, 0, 1, 1], [], []>} : vector<4x32xf32>, vector<32x1xf32>, vector<4x1xf32> -> vector<4x1xf32>
    %c0_111 = arith.constant 0 : index
    %c0_112 = arith.constant 0 : index
    %310 = vector.load %arg29[%c0_111, %c0_112] : memref<1x1xf32, #tpu.memory_space<vmem>>, vector<1x1xf32>
    %311 = vector.broadcast %310 : vector<1x1xf32> to vector<4x1xf32>
    %312 = arith.addf %309, %311 : vector<4x1xf32>
    %313 = arith.negf %312 : vector<4x1xf32>
    %314 = math.exp %313 : vector<4x1xf32>
    %cst_113 = arith.constant 1.000000e+00 : f32
    %315 = vector.broadcast %cst_113 : f32 to vector<4x1xf32>
    %316 = arith.addf %315, %314 : vector<4x1xf32>
    %317 = arith.divf %315, %316 : vector<4x1xf32>
    %cst_114 = arith.constant 6.000000e+00 : f32
    %318 = vector.broadcast %cst_114 : f32 to vector<4x1xf32>
    %319 = arith.mulf %317, %318 : vector<4x1xf32>
    %cst_115 = arith.constant 3.000000e+00 : f32
    %320 = vector.broadcast %cst_115 : f32 to vector<4x1xf32>
    %321 = arith.subf %319, %320 : vector<4x1xf32>
    %c0_116 = arith.constant 0 : index
    %c0_117 = arith.constant 0 : index
    %322 = vector.load %arg30[%c0_116, %c0_117] : memref<4x1xf32, #tpu.memory_space<vmem>>, vector<4x1xf32>
    tpu.vector_store %arg30[%c0_116, %c0_117], %321 {strides = array<i32>} : memref<4x1xf32, #tpu.memory_space<vmem>>, vector<4x1xf32>,
    return
  }
}

</mosaic_0001>

<llo_original>
// kernel: tfn_forward.1
$region0: #{tfn_forward.1}
  #allocation0 [shape = 'u32[]', space=smem, size = 0x4, offset = 0x4, fixed_abs, tag = 'smem constant byte address 0x4 - core index']
  #allocation1 [shape = 'u32[144,128]{1,0:T(1,128)}', space=vmem, size = 0x12000, scoped, tag = 'internal scratch']
  #allocation2 [shape = 'f32[1,1]{1,0:T(1,128)S(1)}', space=vmem, size = 0x200, scoped, tag = 'scoped memory for tfn_forward.1']
  %s0 = inlined_call_operand.smem [shape: u32[31], index: -1, kind: input, shape index: {}]
  %s1 = sld [smem:[%s0]]
  %s2 = scalar_lea.smem %s0, 1
  %s3 = sld [smem:[%s2]]
  %s4 = scalar_lea.smem %s0, 2
  %s5 = sld [smem:[%s4]]
  %s6 = scalar_lea.smem %s0, 3
  %s7 = sld [smem:[%s6]]
  %s8 = scalar_lea.smem %s0, 4
  %s9 = sld [smem:[%s8]]
  %s10 = scalar_lea.smem %s0, 5
  %s11 = sld [smem:[%s10]]
  %s12 = scalar_lea.smem %s0, 6
  %s13 = sld [smem:[%s12]]
  %s14 = scalar_lea.smem %s0, 7
  %s15 = sld [smem:[%s14]]
  %s16 = scalar_lea.smem %s0, 8
  %s17 = sld [smem:[%s16]]
  %s18 = scalar_lea.smem %s0, 9
  %s19 = sld [smem:[%s18]]
  %s20 = scalar_lea.smem %s0, 10
  %s21 = sld [smem:[%s20]]
  %s22 = scalar_lea.smem %s0, 11
  %s23 = sld [smem:[%s22]]
  %s24 = scalar_lea.smem %s0, 12
  %s25 = sld [smem:[%s24]]
  %s26 = scalar_lea.smem %s0, 13
  %s27 = sld [smem:[%s26]]
  %s28 = scalar_lea.smem %s0, 14
  %s29 = sld [smem:[%s28]]
  %s30 = scalar_lea.smem %s0, 15
  %s31 = sld [smem:[%s30]]
  %s32 = scalar_lea.smem %s0, 16
  %s33 = sld [smem:[%s32]]
  %s34 = scalar_lea.smem %s0, 17
  %s35 = sld [smem:[%s34]]
  %s36 = scalar_lea.smem %s0, 18
  %s37 = sld [smem:[%s36]]
  %s38 = scalar_lea.smem %s0, 19
  %s39 = sld [smem:[%s38]]
  %s40 = scalar_lea.smem %s0, 20
  %s41 = sld [smem:[%s40]]
  %s42 = scalar_lea.smem %s0, 21
  %s43 = sld [smem:[%s42]]
  %s44 = scalar_lea.smem %s0, 22
  %s45 = sld [smem:[%s44]]
  %s46 = scalar_lea.smem %s0, 23
  %s47 = sld [smem:[%s46]]
  %s48 = scalar_lea.smem %s0, 24
  %s49 = sld [smem:[%s48]]
  %s50 = scalar_lea.smem %s0, 25
  %s51 = sld [smem:[%s50]]
  %s52 = scalar_lea.smem %s0, 26
  %s53 = sld [smem:[%s52]]
  %s54 = scalar_lea.smem %s0, 27
  %s55 = sld [smem:[%s54]]
  %s56 = scalar_lea.smem %s0, 28
  %s57 = sld [smem:[%s56]]
  %s58 = scalar_lea.smem %s0, 29
  %s59 = sld [smem:[%s58]]
  %s60 = scalar_lea.smem %s0, 30
  %s61 = sld [smem:[%s60]]
  %s62 = sld [smem:[#allocation0]]
  $region130: #{tfn_forward.1} parent=0
    _
  %s64 = ssub.s32 1, %s62
  %s65 = scalar_select 0, %s64, %s62
  %v66 = vstv %s59
  %67 = vst [vmem:[#allocation2] sm:$0x1] %v66
  // Predicated region
  $region2: #{tfn_forward.1} parent=0 // pred_check
    _
  $region3: #{tfn_forward.1} parent=0 // pred_check_branch
    %69 = sbr.rel (0) target = $region5
  $region4: #{tfn_forward.1} parent=0 // pred_region
    _
  $region5: #{tfn_forward.1} parent=0 // pred_fallthru
    _
  // Predicated region
  $region6: #{tfn_forward.1} parent=0 // pred_check
    _
  $region7: #{tfn_forward.1} parent=0 // pred_check_branch
    %71 = sbr.rel (0) target = $region9
  $region8: #{tfn_forward.1} parent=0 // pred_region
    _
  $region9: #{tfn_forward.1} parent=0 // pred_fallthru
    _
  // Predicated region
  $region10: #{tfn_forward.1} parent=0 // pred_check
    _
  $region11: #{tfn_forward.1} parent=0 // pred_check_branch
    %73 = sbr.rel (0) target = $region13
  $region12: #{tfn_forward.1} parent=0 // pred_region
    _
  $region13: #{tfn_forward.1} parent=0 // pred_fallthru
    _
  // Predicated region
  $region14: #{tfn_forward.1} parent=0 // pred_check
    _
  $region15: #{tfn_forward.1} parent=0 // pred_check_branch
    %75 = sbr.rel (0) target = $region17
  $region16: #{tfn_forward.1} parent=0 // pred_region
    _
  $region17: #{tfn_forward.1} parent=0 // pred_fallthru
    _
  // Predicated region
  $region18: #{tfn_forward.1} parent=0 // pred_check
    _
  $region19: #{tfn_forward.1} parent=0 // pred_check_branch
    %77 = sbr.rel (0) target = $region21
  $region20: #{tfn_forward.1} parent=0 // pred_region
    _
  $region21: #{tfn_forward.1} parent=0 // pred_fallthru
    _
  // Predicated region
  $region22: #{tfn_forward.1} parent=0 // pred_check
    _
  $region23: #{tfn_forward.1} parent=0 // pred_check_branch
    %79 = sbr.rel (0) target = $region25
  $region24: #{tfn_forward.1} parent=0 // pred_region
    _
  $region25: #{tfn_forward.1} parent=0 // pred_fallthru
    _
  // Predicated region
  $region26: #{tfn_forward.1} parent=0 // pred_check
    _
  $region27: #{tfn_forward.1} parent=0 // pred_check_branch
    %81 = sbr.rel (0) target = $region29
  $region28: #{tfn_forward.1} parent=0 // pred_region
    _
  $region29: #{tfn_forward.1} parent=0 // pred_fallthru
    _
  // Predicated region
  $region30: #{tfn_forward.1} parent=0 // pred_check
    _
  $region31: #{tfn_forward.1} parent=0 // pred_check_branch
    %83 = sbr.rel (0) target = $region33
  $region32: #{tfn_forward.1} parent=0 // pred_region
    _
  $region33: #{tfn_forward.1} parent=0 // pred_fallthru
    _
  // Predicated region
  $region34: #{tfn_forward.1} parent=0 // pred_check
    _
  $region35: #{tfn_forward.1} parent=0 // pred_check_branch
    %85 = sbr.rel (0) target = $region37
  $region36: #{tfn_forward.1} parent=0 // pred_region
    _
  $region37: #{tfn_forward.1} parent=0 // pred_fallthru
    _
  // Predicated region
  $region38: #{tfn_forward.1} parent=0 // pred_check
    _
  $region39: #{tfn_forward.1} parent=0 // pred_check_branch
    %87 = sbr.rel (0) target = $region41
  $region40: #{tfn_forward.1} parent=0 // pred_region
    _
  $region41: #{tfn_forward.1} parent=0 // pred_fallthru
    _
  // Predicated region
  $region42: #{tfn_forward.1} parent=0 // pred_check
    _
  $region43: #{tfn_forward.1} parent=0 // pred_check_branch
    %89 = sbr.rel (0) target = $region45
  $region44: #{tfn_forward.1} parent=0 // pred_region
    _
  $region45: #{tfn_forward.1} parent=0 // pred_fallthru
    _
  // Predicated region
  $region46: #{tfn_forward.1} parent=0 // pred_check
    _
  $region47: #{tfn_forward.1} parent=0 // pred_check_branch
    %91 = sbr.rel (0) target = $region49
  $region48: #{tfn_forward.1} parent=0 // pred_region
    _
  $region49: #{tfn_forward.1} parent=0 // pred_fallthru
    _
  // Predicated region
  $region50: #{tfn_forward.1} parent=0 // pred_check
    _
  $region51: #{tfn_forward.1} parent=0 // pred_check_branch
    %93 = sbr.rel (0) target = $region53
  $region52: #{tfn_forward.1} parent=0 // pred_region
    _
  $region53: #{tfn_forward.1} parent=0 // pred_fallthru
    _
  // Predicated region
  $region54: #{tfn_forward.1} parent=0 // pred_check
    _
  $region55: #{tfn_forward.1} parent=0 // pred_check_branch
    %95 = sbr.rel (0) target = $region57
  $region56: #{tfn_forward.1} parent=0 // pred_region
    _
  $region57: #{tfn_forward.1} parent=0 // pred_fallthru
    _
  // Predicated region
  $region58: #{tfn_forward.1} parent=0 // pred_check
    _
  $region59: #{tfn_forward.1} parent=0 // pred_check_branch
    %97 = sbr.rel (0) target = $region61
  $region60: #{tfn_forward.1} parent=0 // pred_region
    _
  $region61: #{tfn_forward.1} parent=0 // pred_fallthru
    _
  // Predicated region
  $region62: #{tfn_forward.1} parent=0 // pred_check
    _
  $region63: #{tfn_forward.1} parent=0 // pred_check_branch
    %99 = sbr.rel (0) target = $region65
  $region64: #{tfn_forward.1} parent=0 // pred_region
    _
  $region65: #{tfn_forward.1} parent=0 // pred_fallthru
    _
  // Predicated region
  $region66: #{tfn_forward.1} parent=0 // pred_check
    _
  $region67: #{tfn_forward.1} parent=0 // pred_check_branch
    %101 = sbr.rel (0) target = $region69
  $region68: #{tfn_forward.1} parent=0 // pred_region
    _
  $region69: #{tfn_forward.1} parent=0 // pred_fallthru
    _
  // Predicated region
  $region70: #{tfn_forward.1} parent=0 // pred_check
    _
  $region71: #{tfn_forward.1} parent=0 // pred_check_branch
    %103 = sbr.rel (0) target = $region73
  $region72: #{tfn_forward.1} parent=0 // pred_region
    _
  $region73: #{tfn_forward.1} parent=0 // pred_fallthru
    _
  // Predicated region
  $region74: #{tfn_forward.1} parent=0 // pred_check
    _
  $region75: #{tfn_forward.1} parent=0 // pred_check_branch
    %105 = sbr.rel (0) target = $region77
  $region76: #{tfn_forward.1} parent=0 // pred_region
    _
  $region77: #{tfn_forward.1} parent=0 // pred_fallthru
    _
  // Predicated region
  $region78: #{tfn_forward.1} parent=0 // pred_check
    _
  $region79: #{tfn_forward.1} parent=0 // pred_check_branch
    %107 = sbr.rel (0) target = $region81
  $region80: #{tfn_forward.1} parent=0 // pred_region
    _
  $region81: #{tfn_forward.1} parent=0 // pred_fallthru
    _
  // Predicated region
  $region82: #{tfn_forward.1} parent=0 // pred_check
    _
  $region83: #{tfn_forward.1} parent=0 // pred_check_branch
    %109 = sbr.rel (0) target = $region85
  $region84: #{tfn_forward.1} parent=0 // pred_region
    _
  $region85: #{tfn_forward.1} parent=0 // pred_fallthru
    _
  // Predicated region
  $region86: #{tfn_forward.1} parent=0 // pred_check
    _
  $region87: #{tfn_forward.1} parent=0 // pred_check_branch
    %111 = sbr.rel (0) target = $region89
  $region88: #{tfn_forward.1} parent=0 // pred_region
    _
  $region89: #{tfn_forward.1} parent=0 // pred_fallthru
    _
  // Predicated region
  $region90: #{tfn_forward.1} parent=0 // pred_check
    _
  $region91: #{tfn_forward.1} parent=0 // pred_check_branch
    %113 = sbr.rel (0) target = $region93
  $region92: #{tfn_forward.1} parent=0 // pred_region
    _
  $region93: #{tfn_forward.1} parent=0 // pred_fallthru
    _
  // Predicated region
  $region94: #{tfn_forward.1} parent=0 // pred_check
    _
  $region95: #{tfn_forward.1} parent=0 // pred_check_branch
    %115 = sbr.rel (0) target = $region97
  $region96: #{tfn_forward.1} parent=0 // pred_region
    _
  $region97: #{tfn_forward.1} parent=0 // pred_fallthru
    _
  // Predicated region
  $region98: #{tfn_forward.1} parent=0 // pred_check
    _
  $region99: #{tfn_forward.1} parent=0 // pred_check_branch
    %117 = sbr.rel (0) target = $region101
  $region100: #{tfn_forward.1} parent=0 // pred_region
    _
  $region101: #{tfn_forward.1} parent=0 // pred_fallthru
    _
  // Predicated region
  $region102: #{tfn_forward.1} parent=0 // pred_check
    _
  $region103: #{tfn_forward.1} parent=0 // pred_check_branch
    %119 = sbr.rel (0) target = $region105
  $region104: #{tfn_forward.1} parent=0 // pred_region
    _
  $region105: #{tfn_forward.1} parent=0 // pred_fallthru
    _
  // Predicated region
  $region106: #{tfn_forward.1} parent=0 // pred_check
    _
  $region107: #{tfn_forward.1} parent=0 // pred_check_branch
    %121 = sbr.rel (0) target = $region109
  $region108: #{tfn_forward.1} parent=0 // pred_region
    _
  $region109: #{tfn_forward.1} parent=0 // pred_fallthru
    _
  // Predicated region
  $region110: #{tfn_forward.1} parent=0 // pred_check
    _
  $region111: #{tfn_forward.1} parent=0 // pred_check_branch
    %123 = sbr.rel (0) target = $region113
  $region112: #{tfn_forward.1} parent=0 // pred_region
    _
  $region113: #{tfn_forward.1} parent=0 // pred_fallthru
    _
  // Predicated region
  $region114: #{tfn_forward.1} parent=0 // pred_check
    _
  $region115: #{tfn_forward.1} parent=0 // pred_check_branch
    %125 = sbr.rel (0) target = $region117
  $region116: #{tfn_forward.1} parent=0 // pred_region
    _
  $region117: #{tfn_forward.1} parent=0 // pred_fallthru
    _
  // Predicated region
  $region118: #{tfn_forward.1} parent=0 // pred_check
    _
  $region119: #{tfn_forward.1} parent=0 // pred_check_branch
    %127 = sbr.rel (0) target = $region121
  $region120: #{tfn_forward.1} parent=0 // pred_region
    _
  $region121: #{tfn_forward.1} parent=0 // pred_fallthru
    _
  %v128 = vld [vmem:[%s3] sm:$0xf]
  %v129 = vld [vmem:[%s7] sm:$0xff]
  %v130 = vld [vmem:[%s9] sm:$0x1]
  %v132 = vlaneseq
  %v133 = vshrl.u32 %v132, 7
  %v134 = vsub.s32 0, %v133
  %v135 = vrot.slane %v130, %v134
  %vm137 = vcmask 64512
  %v139 = vsel %vm137, %v128, 0
  %141 = vmatprep.subr.mxu0 0.0
  %142 = vmatpush1.msra.mxu0 0.0
  %143 = vmatprep.subr.mxu0 0.0
  %144 = vmatpush1.msra.mxu0 0.0
  %145 = vmatprep.subr.mxu0 0.0
  %146 = vmatpush1.msra.mxu0 0.0
  %147 = vmatprep.subr.mxu0 0.0
  %148 = vmatpush1.msra.mxu0 0.0
  %149 = vmatprep.subr.mxu0 0.0
  %150 = vmatpush1.msra.mxu0 0.0
  %151 = vmatprep.subr.mxu0 0.0
  %152 = vmatpush1.msra.mxu0 0.0
  %153 = vmatprep.subr.mxu0 0.0
  %154 = vmatpush1.msra.mxu0 0.0
  %155 = vmatprep.subr.mxu0 0.0
  %156 = vmatpush1.msra.mxu0 0.0
  %157 = vmatprep.subr.mxu0 0.0
  %158 = vmatpush1.msra.mxu0 0.0
  %159 = vmatprep.subr.mxu0 0.0
  %160 = vmatpush1.msra.mxu0 0.0
  %161 = vmatprep.subr.mxu0 0.0
  %162 = vmatpush1.msra.mxu0 0.0
  %163 = vmatprep.subr.mxu0 0.0
  %164 = vmatpush1.msra.mxu0 0.0
  %165 = vmatprep.subr.mxu0 0.0
  %166 = vmatpush1.msra.mxu0 0.0
  %167 = vmatprep.subr.mxu0 0.0
  %168 = vmatpush1.msra.mxu0 0.0
  %169 = vmatprep.subr.mxu0 0.0
  %170 = vmatpush1.msra.mxu0 0.0
  %171 = vmatprep.subr.mxu0 0.0
  %172 = vmatpush1.msra.mxu0 %v129
  %173 = vmatprep.subr.mxu0 0.0
  %174 = vmatpush2.msra.mxu0 0.0
  %175 = vmatprep.subr.mxu0 0.0
  %176 = vmatpush2.msra.mxu0 0.0
  %177 = vmatprep.subr.mxu0 0.0
  %178 = vmatpush2.msra.mxu0 0.0
  %179 = vmatprep.subr.mxu0 0.0
  %180 = vmatpush2.msra.mxu0 0.0
  %181 = vmatprep.subr.mxu0 0.0
  %182 = vmatpush2.msra.mxu0 0.0
  %183 = vmatprep.subr.mxu0 0.0
  %184 = vmatpush2.msra.mxu0 0.0
  %185 = vmatprep.subr.mxu0 0.0
  %186 = vmatpush2.msra.mxu0 0.0
  %187 = vmatprep.subr.mxu0 0.0
  %188 = vmatpush2.msra.mxu0 0.0
  %189 = vmatprep.subr.mxu0 0.0
  %190 = vmatpush2.msra.mxu0 0.0
  %191 = vmatprep.subr.mxu0 0.0
  %192 = vmatpush2.msra.mxu0 0.0
  %193 = vmatprep.subr.mxu0 0.0
  %194 = vmatpush2.msra.mxu0 0.0
  %195 = vmatprep.subr.mxu0 0.0
  %196 = vmatpush2.msra.mxu0 0.0
  %197 = vmatprep.subr.mxu0 0.0
  %198 = vmatpush2.msra.mxu0 0.0
  %199 = vmatprep.subr.mxu0 0.0
  %200 = vmatpush2.msra.mxu0 0.0
  %201 = vmatprep.subr.mxu0 0.0
  %202 = vmatpush2.msra.mxu0 0.0
  %203 = vmatprep.subr.mxu0 0.0
  %204 = vmatpush2.msra.mxu0 0.0
  %205 = vmatprep.mubr.f32.mxu0 0.0
  %206 = vmatmul.mubr.f32.gmra.mxu0 %v139
  %v207 = vpop.f32.mrf.mxu0
  %v208 = vadd.f32 %v135, %v207
  %v209 = vpop.f32.mrf.mxu0
  %210 = vdwg.mxu0
  %v211 = vmax.f32 %v208, 0.0
  %v212 = vld [vmem:[%s11] sm:$0xff]
  %v213 = vld [vmem:[%s13] sm:$0x1]
  %v215 = vlaneseq
  %v216 = vshrl.u32 %v215, 7
  %v217 = vsub.s32 0, %v216
  %v218 = vrot.slane %v213, %v217
  %v221 = vsel %vm137, %v211, 0
  %223 = vmatprep.subr.mxu0 0.0
  %224 = vmatpush1.msra.mxu0 0.0
  %225 = vmatprep.subr.mxu0 0.0
  %226 = vmatpush1.msra.mxu0 0.0
  %227 = vmatprep.subr.mxu0 0.0
  %228 = vmatpush1.msra.mxu0 0.0
  %229 = vmatprep.subr.mxu0 0.0
  %230 = vmatpush1.msra.mxu0 0.0
  %231 = vmatprep.subr.mxu0 0.0
  %232 = vmatpush1.msra.mxu0 0.0
  %233 = vmatprep.subr.mxu0 0.0
  %234 = vmatpush1.msra.mxu0 0.0
  %235 = vmatprep.subr.mxu0 0.0
  %236 = vmatpush1.msra.mxu0 0.0
  %237 = vmatprep.subr.mxu0 0.0
  %238 = vmatpush1.msra.mxu0 0.0
  %239 = vmatprep.subr.mxu0 0.0
  %240 = vmatpush1.msra.mxu0 0.0
  %241 = vmatprep.subr.mxu0 0.0
  %242 = vmatpush1.msra.mxu0 0.0
  %243 = vmatprep.subr.mxu0 0.0
  %244 = vmatpush1.msra.mxu0 0.0
  %245 = vmatprep.subr.mxu0 0.0
  %246 = vmatpush1.msra.mxu0 0.0
  %247 = vmatprep.subr.mxu0 0.0
  %248 = vmatpush1.msra.mxu0 0.0
  %249 = vmatprep.subr.mxu0 0.0
  %250 = vmatpush1.msra.mxu0 0.0
  %251 = vmatprep.subr.mxu0 0.0
  %252 = vmatpush1.msra.mxu0 0.0
  %253 = vmatprep.subr.mxu0 0.0
  %254 = vmatpush1.msra.mxu0 %v212
  %255 = vmatprep.subr.mxu0 0.0
  %256 = vmatpush2.msra.mxu0 0.0
  %257 = vmatprep.subr.mxu0 0.0
  %258 = vmatpush2.msra.mxu0 0.0
  %259 = vmatprep.subr.mxu0 0.0
  %260 = vmatpush2.msra.mxu0 0.0
  %261 = vmatprep.subr.mxu0 0.0
  %262 = vmatpush2.msra.mxu0 0.0
  %263 = vmatprep.subr.mxu0 0.0
  %264 = vmatpush2.msra.mxu0 0.0
  %265 = vmatprep.subr.mxu0 0.0
  %266 = vmatpush2.msra.mxu0 0.0
  %267 = vmatprep.subr.mxu0 0.0
  %268 = vmatpush2.msra.mxu0 0.0
  %269 = vmatprep.subr.mxu0 0.0
  %270 = vmatpush2.msra.mxu0 0.0
  %271 = vmatprep.subr.mxu0 0.0
  %272 = vmatpush2.msra.mxu0 0.0
  %273 = vmatprep.subr.mxu0 0.0
  %274 = vmatpush2.msra.mxu0 0.0
  %275 = vmatprep.subr.mxu0 0.0
  %276 = vmatpush2.msra.mxu0 0.0
  %277 = vmatprep.subr.mxu0 0.0
  %278 = vmatpush2.msra.mxu0 0.0
  %279 = vmatprep.subr.mxu0 0.0
  %280 = vmatpush2.msra.mxu0 0.0
  %281 = vmatprep.subr.mxu0 0.0
  %282 = vmatpush2.msra.mxu0 0.0
  %283 = vmatprep.subr.mxu0 0.0
  %284 = vmatpush2.msra.mxu0 0.0
  %285 = vmatprep.subr.mxu0 0.0
  %286 = vmatpush2.msra.mxu0 0.0
  %287 = vmatprep.mubr.f32.mxu0 0.0
  %288 = vmatmul.mubr.f32.gmra.mxu0 %v221
  %v289 = vpop.f32.mrf.mxu0
  %v290 = vadd.f32 %v218, %v289
  %v291 = vpop.f32.mrf.mxu0
  %292 = vdwg.mxu0
  %v293 = vmax.f32 %v290, 0.0
  %v294 = vld [vmem:[%s15] sm:$0xff]
  %v295 = vld [vmem:[%s17] sm:$0x1]
  %v297 = vlaneseq
  %v298 = vshrl.u32 %v297, 7
  %v299 = vsub.s32 0, %v298
  %v300 = vrot.slane %v295, %v299
  %v303 = vsel %vm137, %v293, 0
  %305 = vmatprep.subr.mxu0 0.0
  %306 = vmatpush1.msra.mxu0 0.0
  %307 = vmatprep.subr.mxu0 0.0
  %308 = vmatpush1.msra.mxu0 0.0
  %309 = vmatprep.subr.mxu0 0.0
  %310 = vmatpush1.msra.mxu0 0.0
  %311 = vmatprep.subr.mxu0 0.0
  %312 = vmatpush1.msra.mxu0 0.0
  %313 = vmatprep.subr.mxu0 0.0
  %314 = vmatpush1.msra.mxu0 0.0
  %315 = vmatprep.subr.mxu0 0.0
  %316 = vmatpush1.msra.mxu0 0.0
  %317 = vmatprep.subr.mxu0 0.0
  %318 = vmatpush1.msra.mxu0 0.0
  %319 = vmatprep.subr.mxu0 0.0
  %320 = vmatpush1.msra.mxu0 0.0
  %321 = vmatprep.subr.mxu0 0.0
  %322 = vmatpush1.msra.mxu0 0.0
  %323 = vmatprep.subr.mxu0 0.0
  %324 = vmatpush1.msra.mxu0 0.0
  %325 = vmatprep.subr.mxu0 0.0
  %326 = vmatpush1.msra.mxu0 0.0
  %327 = vmatprep.subr.mxu0 0.0
  %328 = vmatpush1.msra.mxu0 0.0
  %329 = vmatprep.subr.mxu0 0.0
  %330 = vmatpush1.msra.mxu0 0.0
  %331 = vmatprep.subr.mxu0 0.0
  %332 = vmatpush1.msra.mxu0 0.0
  %333 = vmatprep.subr.mxu0 0.0
  %334 = vmatpush1.msra.mxu0 0.0
  %335 = vmatprep.subr.mxu0 0.0
  %336 = vmatpush1.msra.mxu0 %v294
  %337 = vmatprep.subr.mxu0 0.0
  %338 = vmatpush2.msra.mxu0 0.0
  %339 = vmatprep.subr.mxu0 0.0
  %340 = vmatpush2.msra.mxu0 0.0
  %341 = vmatprep.subr.mxu0 0.0
  %342 = vmatpush2.msra.mxu0 0.0
  %343 = vmatprep.subr.mxu0 0.0
  %344 = vmatpush2.msra.mxu0 0.0
  %345 = vmatprep.subr.mxu0 0.0
  %346 = vmatpush2.msra.mxu0 0.0
  %347 = vmatprep.subr.mxu0 0.0
  %348 = vmatpush2.msra.mxu0 0.0
  %349 = vmatprep.subr.mxu0 0.0
  %350 = vmatpush2.msra.mxu0 0.0
  %351 = vmatprep.subr.mxu0 0.0
  %352 = vmatpush2.msra.mxu0 0.0
  %353 = vmatprep.subr.mxu0 0.0
  %354 = vmatpush2.msra.mxu0 0.0
  %355 = vmatprep.subr.mxu0 0.0
  %356 = vmatpush2.msra.mxu0 0.0
  %357 = vmatprep.subr.mxu0 0.0
  %358 = vmatpush2.msra.mxu0 0.0
  %359 = vmatprep.subr.mxu0 0.0
  %360 = vmatpush2.msra.mxu0 0.0
  %361 = vmatprep.subr.mxu0 0.0
  %362 = vmatpush2.msra.mxu0 0.0
  %363 = vmatprep.subr.mxu0 0.0
  %364 = vmatpush2.msra.mxu0 0.0
  %365 = vmatprep.subr.mxu0 0.0
  %366 = vmatpush2.msra.mxu0 0.0
  %367 = vmatprep.subr.mxu0 0.0
  %368 = vmatpush2.msra.mxu0 0.0
  %369 = vmatprep.mubr.f32.mxu0 0.0
  %370 = vmatmul.mubr.f32.gmra.mxu0 %v303
  %v371 = vpop.f32.mrf.mxu0
  %v372 = vadd.f32 %v300, %v371
  %v373 = vpop.f32.mrf.mxu0
  %374 = vdwg.mxu0
  %v375 = vmax.f32 %v372, 0.0
  %v376 = vld [vmem:[%s5] sm:$0xf]
  %v377 = vld [vmem:[%s19] sm:$0xff]
  %v378 = vld [vmem:[%s21] sm:$0x1]
  %v380 = vlaneseq
  %v381 = vshrl.u32 %v380, 7
  %v382 = vsub.s32 0, %v381
  %v383 = vrot.slane %v378, %v382
  %v386 = vsel %vm137, %v376, 0
  %388 = vmatprep.subr.mxu0 0.0
  %389 = vmatpush1.msra.mxu0 0.0
  %390 = vmatprep.subr.mxu0 0.0
  %391 = vmatpush1.msra.mxu0 0.0
  %392 = vmatprep.subr.mxu0 0.0
  %393 = vmatpush1.msra.mxu0 0.0
  %394 = vmatprep.subr.mxu0 0.0
  %395 = vmatpush1.msra.mxu0 0.0
  %396 = vmatprep.subr.mxu0 0.0
  %397 = vmatpush1.msra.mxu0 0.0
  %398 = vmatprep.subr.mxu0 0.0
  %399 = vmatpush1.msra.mxu0 0.0
  %400 = vmatprep.subr.mxu0 0.0
  %401 = vmatpush1.msra.mxu0 0.0
  %402 = vmatprep.subr.mxu0 0.0
  %403 = vmatpush1.msra.mxu0 0.0
  %404 = vmatprep.subr.mxu0 0.0
  %405 = vmatpush1.msra.mxu0 0.0
  %406 = vmatprep.subr.mxu0 0.0
  %407 = vmatpush1.msra.mxu0 0.0
  %408 = vmatprep.subr.mxu0 0.0
  %409 = vmatpush1.msra.mxu0 0.0
  %410 = vmatprep.subr.mxu0 0.0
  %411 = vmatpush1.msra.mxu0 0.0
  %412 = vmatprep.subr.mxu0 0.0
  %413 = vmatpush1.msra.mxu0 0.0
  %414 = vmatprep.subr.mxu0 0.0
  %415 = vmatpush1.msra.mxu0 0.0
  %416 = vmatprep.subr.mxu0 0.0
  %417 = vmatpush1.msra.mxu0 0.0
  %418 = vmatprep.subr.mxu0 0.0
  %419 = vmatpush1.msra.mxu0 %v377
  %420 = vmatprep.subr.mxu0 0.0
  %421 = vmatpush2.msra.mxu0 0.0
  %422 = vmatprep.subr.mxu0 0.0
  %423 = vmatpush2.msra.mxu0 0.0
  %424 = vmatprep.subr.mxu0 0.0
  %425 = vmatpush2.msra.mxu0 0.0
  %426 = vmatprep.subr.mxu0 0.0
  %427 = vmatpush2.msra.mxu0 0.0
  %428 = vmatprep.subr.mxu0 0.0
  %429 = vmatpush2.msra.mxu0 0.0
  %430 = vmatprep.subr.mxu0 0.0
  %431 = vmatpush2.msra.mxu0 0.0
  %432 = vmatprep.subr.mxu0 0.0
  %433 = vmatpush2.msra.mxu0 0.0
  %434 = vmatprep.subr.mxu0 0.0
  %435 = vmatpush2.msra.mxu0 0.0
  %436 = vmatprep.subr.mxu0 0.0
  %437 = vmatpush2.msra.mxu0 0.0
  %438 = vmatprep.subr.mxu0 0.0
  %439 = vmatpush2.msra.mxu0 0.0
  %440 = vmatprep.subr.mxu0 0.0
  %441 = vmatpush2.msra.mxu0 0.0
  %442 = vmatprep.subr.mxu0 0.0
  %443 = vmatpush2.msra.mxu0 0.0
  %444 = vmatprep.subr.mxu0 0.0
  %445 = vmatpush2.msra.mxu0 0.0
  %446 = vmatprep.subr.mxu0 0.0
  %447 = vmatpush2.msra.mxu0 0.0
  %448 = vmatprep.subr.mxu0 0.0
  %449 = vmatpush2.msra.mxu0 0.0
  %450 = vmatprep.subr.mxu0 0.0
  %451 = vmatpush2.msra.mxu0 0.0
  %452 = vmatprep.mubr.f32.mxu0 0.0
  %453 = vmatmul.mubr.f32.gmra.mxu0 %v386
  %v454 = vpop.f32.mrf.mxu0
  %v455 = vadd.f32 %v383, %v454
  %v456 = vpop.f32.mrf.mxu0
  %457 = vdwg.mxu0
  %v458 = vmax.f32 %v455, 0.0
  %v459 = vld [vmem:[%s23] sm:$0xff]
  %v460 = vld [vmem:[%s25] sm:$0x1]
  %v462 = vlaneseq
  %v463 = vshrl.u32 %v462, 7
  %v464 = vsub.s32 0, %v463
  %v465 = vrot.slane %v460, %v464
  %v468 = vsel %vm137, %v458, 0
  %470 = vmatprep.subr.mxu0 0.0
  %471 = vmatpush1.msra.mxu0 0.0
  %472 = vmatprep.subr.mxu0 0.0
  %473 = vmatpush1.msra.mxu0 0.0
  %474 = vmatprep.subr.mxu0 0.0
  %475 = vmatpush1.msra.mxu0 0.0
  %476 = vmatprep.subr.mxu0 0.0
  %477 = vmatpush1.msra.mxu0 0.0
  %478 = vmatprep.subr.mxu0 0.0
  %479 = vmatpush1.msra.mxu0 0.0
  %480 = vmatprep.subr.mxu0 0.0
  %481 = vmatpush1.msra.mxu0 0.0
  %482 = vmatprep.subr.mxu0 0.0
  %483 = vmatpush1.msra.mxu0 0.0
  %484 = vmatprep.subr.mxu0 0.0
  %485 = vmatpush1.msra.mxu0 0.0
  %486 = vmatprep.subr.mxu0 0.0
  %487 = vmatpush1.msra.mxu0 0.0
  %488 = vmatprep.subr.mxu0 0.0
  %489 = vmatpush1.msra.mxu0 0.0
  %490 = vmatprep.subr.mxu0 0.0
  %491 = vmatpush1.msra.mxu0 0.0
  %492 = vmatprep.subr.mxu0 0.0
  %493 = vmatpush1.msra.mxu0 0.0
  %494 = vmatprep.subr.mxu0 0.0
  %495 = vmatpush1.msra.mxu0 0.0
  %496 = vmatprep.subr.mxu0 0.0
  %497 = vmatpush1.msra.mxu0 0.0
  %498 = vmatprep.subr.mxu0 0.0
  %499 = vmatpush1.msra.mxu0 0.0
  %500 = vmatprep.subr.mxu0 0.0
  %501 = vmatpush1.msra.mxu0 %v459
  %502 = vmatprep.subr.mxu0 0.0
  %503 = vmatpush2.msra.mxu0 0.0
  %504 = vmatprep.subr.mxu0 0.0
  %505 = vmatpush2.msra.mxu0 0.0
  %506 = vmatprep.subr.mxu0 0.0
  %507 = vmatpush2.msra.mxu0 0.0
  %508 = vmatprep.subr.mxu0 0.0
  %509 = vmatpush2.msra.mxu0 0.0
  %510 = vmatprep.subr.mxu0 0.0
  %511 = vmatpush2.msra.mxu0 0.0
  %512 = vmatprep.subr.mxu0 0.0
  %513 = vmatpush2.msra.mxu0 0.0
  %514 = vmatprep.subr.mxu0 0.0
  %515 = vmatpush2.msra.mxu0 0.0
  %516 = vmatprep.subr.mxu0 0.0
  %517 = vmatpush2.msra.mxu0 0.0
  %518 = vmatprep.subr.mxu0 0.0
  %519 = vmatpush2.msra.mxu0 0.0
  %520 = vmatprep.subr.mxu0 0.0
  %521 = vmatpush2.msra.mxu0 0.0
  %522 = vmatprep.subr.mxu0 0.0
  %523 = vmatpush2.msra.mxu0 0.0
  %524 = vmatprep.subr.mxu0 0.0
  %525 = vmatpush2.msra.mxu0 0.0
  %526 = vmatprep.subr.mxu0 0.0
  %527 = vmatpush2.msra.mxu0 0.0
  %528 = vmatprep.subr.mxu0 0.0
  %529 = vmatpush2.msra.mxu0 0.0
  %530 = vmatprep.subr.mxu0 0.0
  %531 = vmatpush2.msra.mxu0 0.0
  %532 = vmatprep.subr.mxu0 0.0
  %533 = vmatpush2.msra.mxu0 0.0
  %534 = vmatprep.mubr.f32.mxu0 0.0
  %535 = vmatmul.mubr.f32.gmra.mxu0 %v468
  %v536 = vpop.f32.mrf.mxu0
  %v537 = vadd.f32 %v465, %v536
  %v538 = vpop.f32.mrf.mxu0
  %539 = vdwg.mxu0
  %v540 = vmax.f32 %v537, 0.0
  %v541 = vld [vmem:[%s27] sm:$0xff]
  %v542 = vld [vmem:[%s29] sm:$0x1]
  %v544 = vlaneseq
  %v545 = vshrl.u32 %v544, 7
  %v546 = vsub.s32 0, %v545
  %v547 = vrot.slane %v542, %v546
  %v550 = vsel %vm137, %v540, 0
  %552 = vmatprep.subr.mxu0 0.0
  %553 = vmatpush1.msra.mxu0 0.0
  %554 = vmatprep.subr.mxu0 0.0
  %555 = vmatpush1.msra.mxu0 0.0
  %556 = vmatprep.subr.mxu0 0.0
  %557 = vmatpush1.msra.mxu0 0.0
  %558 = vmatprep.subr.mxu0 0.0
  %559 = vmatpush1.msra.mxu0 0.0
  %560 = vmatprep.subr.mxu0 0.0
  %561 = vmatpush1.msra.mxu0 0.0
  %562 = vmatprep.subr.mxu0 0.0
  %563 = vmatpush1.msra.mxu0 0.0
  %564 = vmatprep.subr.mxu0 0.0
  %565 = vmatpush1.msra.mxu0 0.0
  %566 = vmatprep.subr.mxu0 0.0
  %567 = vmatpush1.msra.mxu0 0.0
  %568 = vmatprep.subr.mxu0 0.0
  %569 = vmatpush1.msra.mxu0 0.0
  %570 = vmatprep.subr.mxu0 0.0
  %571 = vmatpush1.msra.mxu0 0.0
  %572 = vmatprep.subr.mxu0 0.0
  %573 = vmatpush1.msra.mxu0 0.0
  %574 = vmatprep.subr.mxu0 0.0
  %575 = vmatpush1.msra.mxu0 0.0
  %576 = vmatprep.subr.mxu0 0.0
  %577 = vmatpush1.msra.mxu0 0.0
  %578 = vmatprep.subr.mxu0 0.0
  %579 = vmatpush1.msra.mxu0 0.0
  %580 = vmatprep.subr.mxu0 0.0
  %581 = vmatpush1.msra.mxu0 0.0
  %582 = vmatprep.subr.mxu0 0.0
  %583 = vmatpush1.msra.mxu0 %v541
  %584 = vmatprep.subr.mxu0 0.0
  %585 = vmatpush2.msra.mxu0 0.0
  %586 = vmatprep.subr.mxu0 0.0
  %587 = vmatpush2.msra.mxu0 0.0
  %588 = vmatprep.subr.mxu0 0.0
  %589 = vmatpush2.msra.mxu0 0.0
  %590 = vmatprep.subr.mxu0 0.0
  %591 = vmatpush2.msra.mxu0 0.0
  %592 = vmatprep.subr.mxu0 0.0
  %593 = vmatpush2.msra.mxu0 0.0
  %594 = vmatprep.subr.mxu0 0.0
  %595 = vmatpush2.msra.mxu0 0.0
  %596 = vmatprep.subr.mxu0 0.0
  %597 = vmatpush2.msra.mxu0 0.0
  %598 = vmatprep.subr.mxu0 0.0
  %599 = vmatpush2.msra.mxu0 0.0
  %600 = vmatprep.subr.mxu0 0.0
  %601 = vmatpush2.msra.mxu0 0.0
  %602 = vmatprep.subr.mxu0 0.0
  %603 = vmatpush2.msra.mxu0 0.0
  %604 = vmatprep.subr.mxu0 0.0
  %605 = vmatpush2.msra.mxu0 0.0
  %606 = vmatprep.subr.mxu0 0.0
  %607 = vmatpush2.msra.mxu0 0.0
  %608 = vmatprep.subr.mxu0 0.0
  %609 = vmatpush2.msra.mxu0 0.0
  %610 = vmatprep.subr.mxu0 0.0
  %611 = vmatpush2.msra.mxu0 0.0
  %612 = vmatprep.subr.mxu0 0.0
  %613 = vmatpush2.msra.mxu0 0.0
  %614 = vmatprep.subr.mxu0 0.0
  %615 = vmatpush2.msra.mxu0 0.0
  %616 = vmatprep.mubr.f32.mxu0 0.0
  %617 = vmatmul.mubr.f32.gmra.mxu0 %v550
  %v618 = vpop.f32.mrf.mxu0
  %v619 = vadd.f32 %v547, %v618
  %v620 = vpop.f32.mrf.mxu0
  %621 = vdwg.mxu0
  %v622 = vmax.f32 %v619, 0.0
  %v623 = vld [vmem:[%s1] sm:$0xff]
  %v624 = vld [vmem:[%s1 + $0x8] sm:$0xff]
  %v625 = vld [vmem:[%s1 + $0x10] sm:$0xff]
  %v626 = vld [vmem:[%s1 + $0x18] sm:$0xff]
  %v627 = vld [vmem:[%s31] sm:$0xff]
  %v628 = vld [vmem:[%s31 + $0x8] sm:$0xff]
  %v629 = vld [vmem:[%s35] sm:$0x1]
  %v631 = vlaneseq
  %v632 = vshrl.u32 %v631, 7
  %v633 = vsub.s32 0, %v632
  %v634 = vrot.slane %v629, %v633
  %vm636 = vcmask 130048
  %v638 = vsel %vm636, %v623, 0
  %v641 = vsel %vm636, %v624, 0
  %v644 = vsel %vm636, %v625, 0
  %v647 = vsel %vm636, %v626, 0
  %649 = vmatprep.subr.mxu0 0.0
  %650 = vmatpush1.msra.mxu0 0.0
  %651 = vmatprep.subr.mxu0 0.0
  %652 = vmatpush1.msra.mxu0 0.0
  %653 = vmatprep.subr.mxu0 0.0
  %654 = vmatpush1.msra.mxu0 0.0
  %655 = vmatprep.subr.mxu0 0.0
  %656 = vmatpush1.msra.mxu0 0.0
  %657 = vmatprep.subr.mxu0 0.0
  %658 = vmatpush1.msra.mxu0 0.0
  %659 = vmatprep.subr.mxu0 0.0
  %660 = vmatpush1.msra.mxu0 0.0
  %661 = vmatprep.subr.mxu0 0.0
  %662 = vmatpush1.msra.mxu0 0.0
  %663 = vmatprep.subr.mxu0 0.0
  %664 = vmatpush1.msra.mxu0 0.0
  %665 = vmatprep.subr.mxu0 0.0
  %666 = vmatpush1.msra.mxu0 0.0
  %667 = vmatprep.subr.mxu0 0.0
  %668 = vmatpush1.msra.mxu0 0.0
  %669 = vmatprep.subr.mxu0 0.0
  %670 = vmatpush1.msra.mxu0 0.0
  %671 = vmatprep.subr.mxu0 0.0
  %672 = vmatpush1.msra.mxu0 0.0
  %673 = vmatprep.subr.mxu0 0.0
  %674 = vmatpush1.msra.mxu0 0.0
  %675 = vmatprep.subr.mxu0 0.0
  %676 = vmatpush1.msra.mxu0 0.0
  %677 = vmatprep.subr.mxu0 0.0
  %678 = vmatpush1.msra.mxu0 %v628
  %679 = vmatprep.subr.mxu0 0.0
  %680 = vmatpush1.msra.mxu0 %v627
  %681 = vmatprep.subr.mxu0 0.0
  %682 = vmatpush2.msra.mxu0 0.0
  %683 = vmatprep.subr.mxu0 0.0
  %684 = vmatpush2.msra.mxu0 0.0
  %685 = vmatprep.subr.mxu0 0.0
  %686 = vmatpush2.msra.mxu0 0.0
  %687 = vmatprep.subr.mxu0 0.0
  %688 = vmatpush2.msra.mxu0 0.0
  %689 = vmatprep.subr.mxu0 0.0
  %690 = vmatpush2.msra.mxu0 0.0
  %691 = vmatprep.subr.mxu0 0.0
  %692 = vmatpush2.msra.mxu0 0.0
  %693 = vmatprep.subr.mxu0 0.0
  %694 = vmatpush2.msra.mxu0 0.0
  %695 = vmatprep.subr.mxu0 0.0
  %696 = vmatpush2.msra.mxu0 0.0
  %697 = vmatprep.subr.mxu0 0.0
  %698 = vmatpush2.msra.mxu0 0.0
  %699 = vmatprep.subr.mxu0 0.0
  %700 = vmatpush2.msra.mxu0 0.0
  %701 = vmatprep.subr.mxu0 0.0
  %702 = vmatpush2.msra.mxu0 0.0
  %703 = vmatprep.subr.mxu0 0.0
  %704 = vmatpush2.msra.mxu0 0.0
  %705 = vmatprep.subr.mxu0 0.0
  %706 = vmatpush2.msra.mxu0 0.0
  %707 = vmatprep.subr.mxu0 0.0
  %708 = vmatpush2.msra.mxu0 0.0
  %709 = vmatprep.subr.mxu0 0.0
  %710 = vmatpush2.msra.mxu0 0.0
  %711 = vmatprep.subr.mxu0 0.0
  %712 = vmatpush2.msra.mxu0 0.0
  %713 = vmatprep.mubr.f32.mxu0 0.0
  %714 = vmatmul.mubr.f32.gmra.mxu0 %v638
  %v715 = vpop.f32.mrf.mxu0
  %v716 = vadd.f32 %v634, %v715
  %v717 = vpop.f32.mrf.mxu0
  %718 = vmatprep.mubr.f32.mxu0 0.0
  %719 = vmatmul.mubr.f32.gmra.mxu0 %v641
  %v720 = vpop.f32.mrf.mxu0
  %v721 = vadd.f32 %v634, %v720
  %v722 = vpop.f32.mrf.mxu0
  %723 = vmatprep.mubr.f32.mxu0 0.0
  %724 = vmatmul.mubr.f32.gmra.mxu0 %v644
  %v725 = vpop.f32.mrf.mxu0
  %v726 = vadd.f32 %v634, %v725
  %v727 = vpop.f32.mrf.mxu0
  %728 = vmatprep.mubr.f32.mxu0 0.0
  %729 = vmatmul.mubr.f32.gmra.mxu0 %v647
  %v730 = vpop.f32.mrf.mxu0
  %v731 = vadd.f32 %v634, %v730
  %v732 = vpop.f32.mrf.mxu0
  %733 = vdwg.mxu0
  %v734 = vld [vmem:[%s33] sm:$0xff]
  %v735 = vld [vmem:[%s33 + $0x8] sm:$0xff]
  %v737 = vsel %vm636, 0.0, 0
  %739 = vmatprep.subr.mxu0 0.0
  %740 = vmatpush1.msra.mxu0 0.0
  %741 = vmatprep.subr.mxu0 0.0
  %742 = vmatpush1.msra.mxu0 0.0
  %743 = vmatprep.subr.mxu0 0.0
  %744 = vmatpush1.msra.mxu0 0.0
  %745 = vmatprep.subr.mxu0 0.0
  %746 = vmatpush1.msra.mxu0 0.0
  %747 = vmatprep.subr.mxu0 0.0
  %748 = vmatpush1.msra.mxu0 0.0
  %749 = vmatprep.subr.mxu0 0.0
  %750 = vmatpush1.msra.mxu0 0.0
  %751 = vmatprep.subr.mxu0 0.0
  %752 = vmatpush1.msra.mxu0 0.0
  %753 = vmatprep.subr.mxu0 0.0
  %754 = vmatpush1.msra.mxu0 0.0
  %755 = vmatprep.subr.mxu0 0.0
  %756 = vmatpush1.msra.mxu0 0.0
  %757 = vmatprep.subr.mxu0 0.0
  %758 = vmatpush1.msra.mxu0 0.0
  %759 = vmatprep.subr.mxu0 0.0
  %760 = vmatpush1.msra.mxu0 0.0
  %761 = vmatprep.subr.mxu0 0.0
  %762 = vmatpush1.msra.mxu0 0.0
  %763 = vmatprep.subr.mxu0 0.0
  %764 = vmatpush1.msra.mxu0 0.0
  %765 = vmatprep.subr.mxu0 0.0
  %766 = vmatpush1.msra.mxu0 0.0
  %767 = vmatprep.subr.mxu0 0.0
  %768 = vmatpush1.msra.mxu0 %v735
  %769 = vmatprep.subr.mxu0 0.0
  %770 = vmatpush1.msra.mxu0 %v734
  %771 = vmatprep.subr.mxu0 0.0
  %772 = vmatpush2.msra.mxu0 0.0
  %773 = vmatprep.subr.mxu0 0.0
  %774 = vmatpush2.msra.mxu0 0.0
  %775 = vmatprep.subr.mxu0 0.0
  %776 = vmatpush2.msra.mxu0 0.0
  %777 = vmatprep.subr.mxu0 0.0
  %778 = vmatpush2.msra.mxu0 0.0
  %779 = vmatprep.subr.mxu0 0.0
  %780 = vmatpush2.msra.mxu0 0.0
  %781 = vmatprep.subr.mxu0 0.0
  %782 = vmatpush2.msra.mxu0 0.0
  %783 = vmatprep.subr.mxu0 0.0
  %784 = vmatpush2.msra.mxu0 0.0
  %785 = vmatprep.subr.mxu0 0.0
  %786 = vmatpush2.msra.mxu0 0.0
  %787 = vmatprep.subr.mxu0 0.0
  %788 = vmatpush2.msra.mxu0 0.0
  %789 = vmatprep.subr.mxu0 0.0
  %790 = vmatpush2.msra.mxu0 0.0
  %791 = vmatprep.subr.mxu0 0.0
  %792 = vmatpush2.msra.mxu0 0.0
  %793 = vmatprep.subr.mxu0 0.0
  %794 = vmatpush2.msra.mxu0 0.0
  %795 = vmatprep.subr.mxu0 0.0
  %796 = vmatpush2.msra.mxu0 0.0
  %797 = vmatprep.subr.mxu0 0.0
  %798 = vmatpush2.msra.mxu0 0.0
  %799 = vmatprep.subr.mxu0 0.0
  %800 = vmatpush2.msra.mxu0 0.0
  %801 = vmatprep.subr.mxu0 0.0
  %802 = vmatpush2.msra.mxu0 0.0
  %803 = vmatprep.mubr.f32.mxu0 0.0
  %804 = vmatmul.mubr.f32.gmra.mxu0 %v737
  %v805 = vpop.f32.mrf.mxu0
  %v806 = vadd.f32 0.0, %v805
  %v807 = vpop.f32.mrf.mxu0
  %808 = vdwg.mxu0
  %v809 = vadd.f32 %v716, %v806
  %v810 = vxor.u32 %v809, 2147483648
  %v811 = vmul.f32 %v810, 1.442695
  %v812 = vpow.pop %v811
  %v813 = vadd.f32 %v812, 1.0
  %v814 = vrcp.pop %v813
  %v815 = vmul.f32 1.0, %v814
  %v816 = vtanh.pop %v809
  %v817 = vmul.f32 %v815, 0.0
  %819 = vrot.lane.b32.xlu0 %v816, 96
  %v820 = vpop.permute.xlu0 %819
  %v822 = vmul.f32 %v815, %v820
  %824 = vrot.lane.b32.xlu0 %v822, 16
  %v825 = vpop.permute.xlu0 %824
  %v827 = vadd.f32 %v817, %v825
  %v828 = vtanh.pop %v827
  %830 = vrot.lane.b32.xlu0 %v828, 32
  %v831 = vpop.permute.xlu0 %830
  %v833 = vmul.f32 %v815, %v831
  %835 = vrot.lane.b32.xlu0 %v833, 80
  %v836 = vpop.permute.xlu0 %835
  %v837 = vsel %vm636, %v836, 0
  %839 = vmatprep.subr.mxu0 0.0
  %840 = vmatpush1.msra.mxu0 0.0
  %841 = vmatprep.subr.mxu0 0.0
  %842 = vmatpush1.msra.mxu0 0.0
  %843 = vmatprep.subr.mxu0 0.0
  %844 = vmatpush1.msra.mxu0 0.0
  %845 = vmatprep.subr.mxu0 0.0
  %846 = vmatpush1.msra.mxu0 0.0
  %847 = vmatprep.subr.mxu0 0.0
  %848 = vmatpush1.msra.mxu0 0.0
  %849 = vmatprep.subr.mxu0 0.0
  %850 = vmatpush1.msra.mxu0 0.0
  %851 = vmatprep.subr.mxu0 0.0
  %852 = vmatpush1.msra.mxu0 0.0
  %853 = vmatprep.subr.mxu0 0.0
  %854 = vmatpush1.msra.mxu0 0.0
  %855 = vmatprep.subr.mxu0 0.0
  %856 = vmatpush1.msra.mxu0 0.0
  %857 = vmatprep.subr.mxu0 0.0
  %858 = vmatpush1.msra.mxu0 0.0
  %859 = vmatprep.subr.mxu0 0.0
  %860 = vmatpush1.msra.mxu0 0.0
  %861 = vmatprep.subr.mxu0 0.0
  %862 = vmatpush1.msra.mxu0 0.0
  %863 = vmatprep.subr.mxu0 0.0
  %864 = vmatpush1.msra.mxu0 0.0
  %865 = vmatprep.subr.mxu0 0.0
  %866 = vmatpush1.msra.mxu0 0.0
  %867 = vmatprep.subr.mxu0 0.0
  %868 = vmatpush1.msra.mxu0 %v735
  %869 = vmatprep.subr.mxu0 0.0
  %870 = vmatpush1.msra.mxu0 %v734
  %871 = vmatprep.subr.mxu0 0.0
  %872 = vmatpush2.msra.mxu0 0.0
  %873 = vmatprep.subr.mxu0 0.0
  %874 = vmatpush2.msra.mxu0 0.0
  %875 = vmatprep.subr.mxu0 0.0
  %876 = vmatpush2.msra.mxu0 0.0
  %877 = vmatprep.subr.mxu0 0.0
  %878 = vmatpush2.msra.mxu0 0.0
  %879 = vmatprep.subr.mxu0 0.0
  %880 = vmatpush2.msra.mxu0 0.0
  %881 = vmatprep.subr.mxu0 0.0
  %882 = vmatpush2.msra.mxu0 0.0
  %883 = vmatprep.subr.mxu0 0.0
  %884 = vmatpush2.msra.mxu0 0.0
  %885 = vmatprep.subr.mxu0 0.0
  %886 = vmatpush2.msra.mxu0 0.0
  %887 = vmatprep.subr.mxu0 0.0
  %888 = vmatpush2.msra.mxu0 0.0
  %889 = vmatprep.subr.mxu0 0.0
  %890 = vmatpush2.msra.mxu0 0.0
  %891 = vmatprep.subr.mxu0 0.0
  %892 = vmatpush2.msra.mxu0 0.0
  %893 = vmatprep.subr.mxu0 0.0
  %894 = vmatpush2.msra.mxu0 0.0
  %895 = vmatprep.subr.mxu0 0.0
  %896 = vmatpush2.msra.mxu0 0.0
  %897 = vmatprep.subr.mxu0 0.0
  %898 = vmatpush2.msra.mxu0 0.0
  %899 = vmatprep.subr.mxu0 0.0
  %900 = vmatpush2.msra.mxu0 0.0
  %901 = vmatprep.subr.mxu0 0.0
  %902 = vmatpush2.msra.mxu0 0.0
  %903 = vmatprep.mubr.f32.mxu0 0.0
  %904 = vmatmul.mubr.f32.gmra.mxu0 %v837
  %v905 = vpop.f32.mrf.mxu0
  %v906 = vadd.f32 0.0, %v905
  %v907 = vpop.f32.mrf.mxu0
  %908 = vdwg.mxu0
  %v910 = vrot.slane %v906, 4
  %v912 = vadd.f32 %v716, %v910
  %v913 = vxor.u32 %v912, 2147483648
  %v914 = vmul.f32 %v913, 1.442695
  %v915 = vpow.pop %v914
  %v916 = vadd.f32 %v915, 1.0
  %v917 = vrcp.pop %v916
  %v918 = vmul.f32 1.0, %v917
  %v919 = vtanh.pop %v912
  %v921 = vrot.slane %v827, 4
  %v923 = vmul.f32 %v918, %v921
  %925 = vrot.lane.b32.xlu0 %v919, 96
  %v926 = vpop.permute.xlu0 %925
  %v928 = vmul.f32 %v918, %v926
  %930 = vrot.lane.b32.xlu0 %v928, 16
  %v931 = vpop.permute.xlu0 %930
  %v933 = vadd.f32 %v923, %v931
  %v934 = vtanh.pop %v933
  %936 = vrot.lane.b32.xlu0 %v934, 32
  %v937 = vpop.permute.xlu0 %936
  %v939 = vmul.f32 %v918, %v937
  %v941 = vrot.slane %v939, 4
  %942 = vrot.lane.b32.xlu0 %v941, 80
  %v943 = vpop.permute.xlu0 %942
  %v944 = vsel %vm636, %v943, 0
  %946 = vmatprep.subr.mxu0 0.0
  %947 = vmatpush1.msra.mxu0 0.0
  %948 = vmatprep.subr.mxu0 0.0
  %949 = vmatpush1.msra.mxu0 0.0
  %950 = vmatprep.subr.mxu0 0.0
  %951 = vmatpush1.msra.mxu0 0.0
  %952 = vmatprep.subr.mxu0 0.0
  %953 = vmatpush1.msra.mxu0 0.0
  %954 = vmatprep.subr.mxu0 0.0
  %955 = vmatpush1.msra.mxu0 0.0
  %956 = vmatprep.subr.mxu0 0.0
  %957 = vmatpush1.msra.mxu0 0.0
  %958 = vmatprep.subr.mxu0 0.0
  %959 = vmatpush1.msra.mxu0 0.0
  %960 = vmatprep.subr.mxu0 0.0
  %961 = vmatpush1.msra.mxu0 0.0
  %962 = vmatprep.subr.mxu0 0.0
  %963 = vmatpush1.msra.mxu0 0.0
  %964 = vmatprep.subr.mxu0 0.0
  %965 = vmatpush1.msra.mxu0 0.0
  %966 = vmatprep.subr.mxu0 0.0
  %967 = vmatpush1.msra.mxu0 0.0
  %968 = vmatprep.subr.mxu0 0.0
  %969 = vmatpush1.msra.mxu0 0.0
  %970 = vmatprep.subr.mxu0 0.0
  %971 = vmatpush1.msra.mxu0 0.0
  %972 = vmatprep.subr.mxu0 0.0
  %973 = vmatpush1.msra.mxu0 0.0
  %974 = vmatprep.subr.mxu0 0.0
  %975 = vmatpush1.msra.mxu0 %v735
  %976 = vmatprep.subr.mxu0 0.0
  %977 = vmatpush1.msra.mxu0 %v734
  %978 = vmatprep.subr.mxu0 0.0
  %979 = vmatpush2.msra.mxu0 0.0
  %980 = vmatprep.subr.mxu0 0.0
  %981 = vmatpush2.msra.mxu0 0.0
  %982 = vmatprep.subr.mxu0 0.0
  %983 = vmatpush2.msra.mxu0 0.0
  %984 = vmatprep.subr.mxu0 0.0
  %985 = vmatpush2.msra.mxu0 0.0
  %986 = vmatprep.subr.mxu0 0.0
  %987 = vmatpush2.msra.mxu0 0.0
  %988 = vmatprep.subr.mxu0 0.0
  %989 = vmatpush2.msra.mxu0 0.0
  %990 = vmatprep.subr.mxu0 0.0
  %991 = vmatpush2.msra.mxu0 0.0
  %992 = vmatprep.subr.mxu0 0.0
  %993 = vmatpush2.msra.mxu0 0.0
  %994 = vmatprep.subr.mxu0 0.0
  %995 = vmatpush2.msra.mxu0 0.0
  %996 = vmatprep.subr.mxu0 0.0
  %997 = vmatpush2.msra.mxu0 0.0
  %998 = vmatprep.subr.mxu0 0.0
  %999 = vmatpush2.msra.mxu0 0.0
  %1000 = vmatprep.subr.mxu0 0.0
  %1001 = vmatpush2.msra.mxu0 0.0
  %1002 = vmatprep.subr.mxu0 0.0
  %1003 = vmatpush2.msra.mxu0 0.0
  %1004 = vmatprep.subr.mxu0 0.0
  %1005 = vmatpush2.msra.mxu0 0.0
  %1006 = vmatprep.subr.mxu0 0.0
  %1007 = vmatpush2.msra.mxu0 0.0
  %1008 = vmatprep.subr.mxu0 0.0
  %1009 = vmatpush2.msra.mxu0 0.0
  %1010 = vmatprep.mubr.f32.mxu0 0.0
  %1011 = vmatmul.mubr.f32.gmra.mxu0 %v944
  %v1012 = vpop.f32.mrf.mxu0
  %v1013 = vadd.f32 0.0, %v1012
  %v1014 = vpop.f32.mrf.mxu0
  %1015 = vdwg.mxu0
  %v1016 = vadd.f32 %v721, %v1013
  %v1017 = vxor.u32 %v1016, 2147483648
  %v1018 = vmul.f32 %v1017, 1.442695
  %v1019 = vpow.pop %v1018
  %v1020 = vadd.f32 %v1019, 1.0
  %v1021 = vrcp.pop %v1020
  %v1022 = vmul.f32 1.0, %v1021
  %v1023 = vtanh.pop %v1016
  %v1025 = vrot.slane %v933, 4
  %v1027 = vmul.f32 %v1022, %v1025
  %1029 = vrot.lane.b32.xlu0 %v1023, 96
  %v1030 = vpop.permute.xlu0 %1029
  %v1032 = vmul.f32 %v1022, %v1030
  %1034 = vrot.lane.b32.xlu0 %v1032, 16
  %v1035 = vpop.permute.xlu0 %1034
  %v1037 = vadd.f32 %v1027, %v1035
  %v1038 = vtanh.pop %v1037
  %1040 = vrot.lane.b32.xlu0 %v1038, 32
  %v1041 = vpop.permute.xlu0 %1040
  %v1043 = vmul.f32 %v1022, %v1041
  %1045 = vrot.lane.b32.xlu0 %v1043, 80
  %v1046 = vpop.permute.xlu0 %1045
  %v1047 = vsel %vm636, %v1046, 0
  %1049 = vmatprep.subr.mxu0 0.0
  %1050 = vmatpush1.msra.mxu0 0.0
  %1051 = vmatprep.subr.mxu0 0.0
  %1052 = vmatpush1.msra.mxu0 0.0
  %1053 = vmatprep.subr.mxu0 0.0
  %1054 = vmatpush1.msra.mxu0 0.0
  %1055 = vmatprep.subr.mxu0 0.0
  %1056 = vmatpush1.msra.mxu0 0.0
  %1057 = vmatprep.subr.mxu0 0.0
  %1058 = vmatpush1.msra.mxu0 0.0
  %1059 = vmatprep.subr.mxu0 0.0
  %1060 = vmatpush1.msra.mxu0 0.0
  %1061 = vmatprep.subr.mxu0 0.0
  %1062 = vmatpush1.msra.mxu0 0.0
  %1063 = vmatprep.subr.mxu0 0.0
  %1064 = vmatpush1.msra.mxu0 0.0
  %1065 = vmatprep.subr.mxu0 0.0
  %1066 = vmatpush1.msra.mxu0 0.0
  %1067 = vmatprep.subr.mxu0 0.0
  %1068 = vmatpush1.msra.mxu0 0.0
  %1069 = vmatprep.subr.mxu0 0.0
  %1070 = vmatpush1.msra.mxu0 0.0
  %1071 = vmatprep.subr.mxu0 0.0
  %1072 = vmatpush1.msra.mxu0 0.0
  %1073 = vmatprep.subr.mxu0 0.0
  %1074 = vmatpush1.msra.mxu0 0.0
  %1075 = vmatprep.subr.mxu0 0.0
  %1076 = vmatpush1.msra.mxu0 0.0
  %1077 = vmatprep.subr.mxu0 0.0
  %1078 = vmatpush1.msra.mxu0 %v735
  %1079 = vmatprep.subr.mxu0 0.0
  %1080 = vmatpush1.msra.mxu0 %v734
  %1081 = vmatprep.subr.mxu0 0.0
  %1082 = vmatpush2.msra.mxu0 0.0
  %1083 = vmatprep.subr.mxu0 0.0
  %1084 = vmatpush2.msra.mxu0 0.0
  %1085 = vmatprep.subr.mxu0 0.0
  %1086 = vmatpush2.msra.mxu0 0.0
  %1087 = vmatprep.subr.mxu0 0.0
  %1088 = vmatpush2.msra.mxu0 0.0
  %1089 = vmatprep.subr.mxu0 0.0
  %1090 = vmatpush2.msra.mxu0 0.0
  %1091 = vmatprep.subr.mxu0 0.0
  %1092 = vmatpush2.msra.mxu0 0.0
  %1093 = vmatprep.subr.mxu0 0.0
  %1094 = vmatpush2.msra.mxu0 0.0
  %1095 = vmatprep.subr.mxu0 0.0
  %1096 = vmatpush2.msra.mxu0 0.0
  %1097 = vmatprep.subr.mxu0 0.0
  %1098 = vmatpush2.msra.mxu0 0.0
  %1099 = vmatprep.subr.mxu0 0.0
  %1100 = vmatpush2.msra.mxu0 0.0
  %1101 = vmatprep.subr.mxu0 0.0
  %1102 = vmatpush2.msra.mxu0 0.0
  %1103 = vmatprep.subr.mxu0 0.0
  %1104 = vmatpush2.msra.mxu0 0.0
  %1105 = vmatprep.subr.mxu0 0.0
  %1106 = vmatpush2.msra.mxu0 0.0
  %1107 = vmatprep.subr.mxu0 0.0
  %1108 = vmatpush2.msra.mxu0 0.0
  %1109 = vmatprep.subr.mxu0 0.0
  %1110 = vmatpush2.msra.mxu0 0.0
  %1111 = vmatprep.subr.mxu0 0.0
  %1112 = vmatpush2.msra.mxu0 0.0
  %1113 = vmatprep.mubr.f32.mxu0 0.0
  %1114 = vmatmul.mubr.f32.gmra.mxu0 %v1047
  %v1115 = vpop.f32.mrf.mxu0
  %v1116 = vadd.f32 0.0, %v1115
  %v1117 = vpop.f32.mrf.mxu0
  %1118 = vdwg.mxu0
  %v1120 = vrot.slane %v1116, 4
  %v1122 = vadd.f32 %v721, %v1120
  %v1123 = vxor.u32 %v1122, 2147483648
  %v1124 = vmul.f32 %v1123, 1.442695
  %v1125 = vpow.pop %v1124
  %v1126 = vadd.f32 %v1125, 1.0
  %v1127 = vrcp.pop %v1126
  %v1128 = vmul.f32 1.0, %v1127
  %v1129 = vtanh.pop %v1122
  %v1131 = vrot.slane %v1037, 4
  %v1133 = vmul.f32 %v1128, %v1131
  %1135 = vrot.lane.b32.xlu0 %v1129, 96
  %v1136 = vpop.permute.xlu0 %1135
  %v1138 = vmul.f32 %v1128, %v1136
  %1140 = vrot.lane.b32.xlu0 %v1138, 16
  %v1141 = vpop.permute.xlu0 %1140
  %v1143 = vadd.f32 %v1133, %v1141
  %v1144 = vtanh.pop %v1143
  %1146 = vrot.lane.b32.xlu0 %v1144, 32
  %v1147 = vpop.permute.xlu0 %1146
  %v1149 = vmul.f32 %v1128, %v1147
  %v1151 = vrot.slane %v1149, 4
  %1152 = vrot.lane.b32.xlu0 %v1151, 80
  %v1153 = vpop.permute.xlu0 %1152
  %v1154 = vsel %vm636, %v1153, 0
  %1156 = vmatprep.subr.mxu0 0.0
  %1157 = vmatpush1.msra.mxu0 0.0
  %1158 = vmatprep.subr.mxu0 0.0
  %1159 = vmatpush1.msra.mxu0 0.0
  %1160 = vmatprep.subr.mxu0 0.0
  %1161 = vmatpush1.msra.mxu0 0.0
  %1162 = vmatprep.subr.mxu0 0.0
  %1163 = vmatpush1.msra.mxu0 0.0
  %1164 = vmatprep.subr.mxu0 0.0
  %1165 = vmatpush1.msra.mxu0 0.0
  %1166 = vmatprep.subr.mxu0 0.0
  %1167 = vmatpush1.msra.mxu0 0.0
  %1168 = vmatprep.subr.mxu0 0.0
  %1169 = vmatpush1.msra.mxu0 0.0
  %1170 = vmatprep.subr.mxu0 0.0
  %1171 = vmatpush1.msra.mxu0 0.0
  %1172 = vmatprep.subr.mxu0 0.0
  %1173 = vmatpush1.msra.mxu0 0.0
  %1174 = vmatprep.subr.mxu0 0.0
  %1175 = vmatpush1.msra.mxu0 0.0
  %1176 = vmatprep.subr.mxu0 0.0
  %1177 = vmatpush1.msra.mxu0 0.0
  %1178 = vmatprep.subr.mxu0 0.0
  %1179 = vmatpush1.msra.mxu0 0.0
  %1180 = vmatprep.subr.mxu0 0.0
  %1181 = vmatpush1.msra.mxu0 0.0
  %1182 = vmatprep.subr.mxu0 0.0
  %1183 = vmatpush1.msra.mxu0 0.0
  %1184 = vmatprep.subr.mxu0 0.0
  %1185 = vmatpush1.msra.mxu0 %v735
  %1186 = vmatprep.subr.mxu0 0.0
  %1187 = vmatpush1.msra.mxu0 %v734
  %1188 = vmatprep.subr.mxu0 0.0
  %1189 = vmatpush2.msra.mxu0 0.0
  %1190 = vmatprep.subr.mxu0 0.0
  %1191 = vmatpush2.msra.mxu0 0.0
  %1192 = vmatprep.subr.mxu0 0.0
  %1193 = vmatpush2.msra.mxu0 0.0
  %1194 = vmatprep.subr.mxu0 0.0
  %1195 = vmatpush2.msra.mxu0 0.0
  %1196 = vmatprep.subr.mxu0 0.0
  %1197 = vmatpush2.msra.mxu0 0.0
  %1198 = vmatprep.subr.mxu0 0.0
  %1199 = vmatpush2.msra.mxu0 0.0
  %1200 = vmatprep.subr.mxu0 0.0
  %1201 = vmatpush2.msra.mxu0 0.0
  %1202 = vmatprep.subr.mxu0 0.0
  %1203 = vmatpush2.msra.mxu0 0.0
  %1204 = vmatprep.subr.mxu0 0.0
  %1205 = vmatpush2.msra.mxu0 0.0
  %1206 = vmatprep.subr.mxu0 0.0
  %1207 = vmatpush2.msra.mxu0 0.0
  %1208 = vmatprep.subr.mxu0 0.0
  %1209 = vmatpush2.msra.mxu0 0.0
  %1210 = vmatprep.subr.mxu0 0.0
  %1211 = vmatpush2.msra.mxu0 0.0
  %1212 = vmatprep.subr.mxu0 0.0
  %1213 = vmatpush2.msra.mxu0 0.0
  %1214 = vmatprep.subr.mxu0 0.0
  %1215 = vmatpush2.msra.mxu0 0.0
  %1216 = vmatprep.subr.mxu0 0.0
  %1217 = vmatpush2.msra.mxu0 0.0
  %1218 = vmatprep.subr.mxu0 0.0
  %1219 = vmatpush2.msra.mxu0 0.0
  %1220 = vmatprep.mubr.f32.mxu0 0.0
  %1221 = vmatmul.mubr.f32.gmra.mxu0 %v1154
  %v1222 = vpop.f32.mrf.mxu0
  %v1223 = vadd.f32 0.0, %v1222
  %v1224 = vpop.f32.mrf.mxu0
  %1225 = vdwg.mxu0
  %v1226 = vadd.f32 %v726, %v1223
  %v1227 = vxor.u32 %v1226, 2147483648
  %v1228 = vmul.f32 %v1227, 1.442695
  %v1229 = vpow.pop %v1228
  %v1230 = vadd.f32 %v1229, 1.0
  %v1231 = vrcp.pop %v1230
  %v1232 = vmul.f32 1.0, %v1231
  %v1233 = vtanh.pop %v1226
  %v1235 = vrot.slane %v1143, 4
  %v1237 = vmul.f32 %v1232, %v1235
  %1239 = vrot.lane.b32.xlu0 %v1233, 96
  %v1240 = vpop.permute.xlu0 %1239
  %v1242 = vmul.f32 %v1232, %v1240
  %1244 = vrot.lane.b32.xlu0 %v1242, 16
  %v1245 = vpop.permute.xlu0 %1244
  %v1247 = vadd.f32 %v1237, %v1245
  %v1248 = vtanh.pop %v1247
  %1250 = vrot.lane.b32.xlu0 %v1248, 32
  %v1251 = vpop.permute.xlu0 %1250
  %v1253 = vmul.f32 %v1232, %v1251
  %1255 = vrot.lane.b32.xlu0 %v1253, 80
  %v1256 = vpop.permute.xlu0 %1255
  %v1257 = vsel %vm636, %v1256, 0
  %1259 = vmatprep.subr.mxu0 0.0
  %1260 = vmatpush1.msra.mxu0 0.0
  %1261 = vmatprep.subr.mxu0 0.0
  %1262 = vmatpush1.msra.mxu0 0.0
  %1263 = vmatprep.subr.mxu0 0.0
  %1264 = vmatpush1.msra.mxu0 0.0
  %1265 = vmatprep.subr.mxu0 0.0
  %1266 = vmatpush1.msra.mxu0 0.0
  %1267 = vmatprep.subr.mxu0 0.0
  %1268 = vmatpush1.msra.mxu0 0.0
  %1269 = vmatprep.subr.mxu0 0.0
  %1270 = vmatpush1.msra.mxu0 0.0
  %1271 = vmatprep.subr.mxu0 0.0
  %1272 = vmatpush1.msra.mxu0 0.0
  %1273 = vmatprep.subr.mxu0 0.0
  %1274 = vmatpush1.msra.mxu0 0.0
  %1275 = vmatprep.subr.mxu0 0.0
  %1276 = vmatpush1.msra.mxu0 0.0
  %1277 = vmatprep.subr.mxu0 0.0
  %1278 = vmatpush1.msra.mxu0 0.0
  %1279 = vmatprep.subr.mxu0 0.0
  %1280 = vmatpush1.msra.mxu0 0.0
  %1281 = vmatprep.subr.mxu0 0.0
  %1282 = vmatpush1.msra.mxu0 0.0
  %1283 = vmatprep.subr.mxu0 0.0
  %1284 = vmatpush1.msra.mxu0 0.0
  %1285 = vmatprep.subr.mxu0 0.0
  %1286 = vmatpush1.msra.mxu0 0.0
  %1287 = vmatprep.subr.mxu0 0.0
  %1288 = vmatpush1.msra.mxu0 %v735
  %1289 = vmatprep.subr.mxu0 0.0
  %1290 = vmatpush1.msra.mxu0 %v734
  %1291 = vmatprep.subr.mxu0 0.0
  %1292 = vmatpush2.msra.mxu0 0.0
  %1293 = vmatprep.subr.mxu0 0.0
  %1294 = vmatpush2.msra.mxu0 0.0
  %1295 = vmatprep.subr.mxu0 0.0
  %1296 = vmatpush2.msra.mxu0 0.0
  %1297 = vmatprep.subr.mxu0 0.0
  %1298 = vmatpush2.msra.mxu0 0.0
  %1299 = vmatprep.subr.mxu0 0.0
  %1300 = vmatpush2.msra.mxu0 0.0
  %1301 = vmatprep.subr.mxu0 0.0
  %1302 = vmatpush2.msra.mxu0 0.0
  %1303 = vmatprep.subr.mxu0 0.0
  %1304 = vmatpush2.msra.mxu0 0.0
  %1305 = vmatprep.subr.mxu0 0.0
  %1306 = vmatpush2.msra.mxu0 0.0
  %1307 = vmatprep.subr.mxu0 0.0
  %1308 = vmatpush2.msra.mxu0 0.0
  %1309 = vmatprep.subr.mxu0 0.0
  %1310 = vmatpush2.msra.mxu0 0.0
  %1311 = vmatprep.subr.mxu0 0.0
  %1312 = vmatpush2.msra.mxu0 0.0
  %1313 = vmatprep.subr.mxu0 0.0
  %1314 = vmatpush2.msra.mxu0 0.0
  %1315 = vmatprep.subr.mxu0 0.0
  %1316 = vmatpush2.msra.mxu0 0.0
  %1317 = vmatprep.subr.mxu0 0.0
  %1318 = vmatpush2.msra.mxu0 0.0
  %1319 = vmatprep.subr.mxu0 0.0
  %1320 = vmatpush2.msra.mxu0 0.0
  %1321 = vmatprep.subr.mxu0 0.0
  %1322 = vmatpush2.msra.mxu0 0.0
  %1323 = vmatprep.mubr.f32.mxu0 0.0
  %1324 = vmatmul.mubr.f32.gmra.mxu0 %v1257
  %v1325 = vpop.f32.mrf.mxu0
  %v1326 = vadd.f32 0.0, %v1325
  %v1327 = vpop.f32.mrf.mxu0
  %1328 = vdwg.mxu0
  %v1330 = vrot.slane %v1326, 4
  %v1332 = vadd.f32 %v726, %v1330
  %v1333 = vxor.u32 %v1332, 2147483648
  %v1334 = vmul.f32 %v1333, 1.442695
  %v1335 = vpow.pop %v1334
  %v1336 = vadd.f32 %v1335, 1.0
  %v1337 = vrcp.pop %v1336
  %v1338 = vmul.f32 1.0, %v1337
  %v1339 = vtanh.pop %v1332
  %v1341 = vrot.slane %v1247, 4
  %v1343 = vmul.f32 %v1338, %v1341
  %1345 = vrot.lane.b32.xlu0 %v1339, 96
  %v1346 = vpop.permute.xlu0 %1345
  %v1348 = vmul.f32 %v1338, %v1346
  %1350 = vrot.lane.b32.xlu0 %v1348, 16
  %v1351 = vpop.permute.xlu0 %1350
  %v1353 = vadd.f32 %v1343, %v1351
  %v1354 = vtanh.pop %v1353
  %1356 = vrot.lane.b32.xlu0 %v1354, 32
  %v1357 = vpop.permute.xlu0 %1356
  %v1359 = vmul.f32 %v1338, %v1357
  %v1361 = vrot.slane %v1359, 4
  %1362 = vrot.lane.b32.xlu0 %v1361, 80
  %v1363 = vpop.permute.xlu0 %1362
  %v1364 = vsel %vm636, %v1363, 0
  %1366 = vmatprep.subr.mxu0 0.0
  %1367 = vmatpush1.msra.mxu0 0.0
  %1368 = vmatprep.subr.mxu0 0.0
  %1369 = vmatpush1.msra.mxu0 0.0
  %1370 = vmatprep.subr.mxu0 0.0
  %1371 = vmatpush1.msra.mxu0 0.0
  %1372 = vmatprep.subr.mxu0 0.0
  %1373 = vmatpush1.msra.mxu0 0.0
  %1374 = vmatprep.subr.mxu0 0.0
  %1375 = vmatpush1.msra.mxu0 0.0
  %1376 = vmatprep.subr.mxu0 0.0
  %1377 = vmatpush1.msra.mxu0 0.0
  %1378 = vmatprep.subr.mxu0 0.0
  %1379 = vmatpush1.msra.mxu0 0.0
  %1380 = vmatprep.subr.mxu0 0.0
  %1381 = vmatpush1.msra.mxu0 0.0
  %1382 = vmatprep.subr.mxu0 0.0
  %1383 = vmatpush1.msra.mxu0 0.0
  %1384 = vmatprep.subr.mxu0 0.0
  %1385 = vmatpush1.msra.mxu0 0.0
  %1386 = vmatprep.subr.mxu0 0.0
  %1387 = vmatpush1.msra.mxu0 0.0
  %1388 = vmatprep.subr.mxu0 0.0
  %1389 = vmatpush1.msra.mxu0 0.0
  %1390 = vmatprep.subr.mxu0 0.0
  %1391 = vmatpush1.msra.mxu0 0.0
  %1392 = vmatprep.subr.mxu0 0.0
  %1393 = vmatpush1.msra.mxu0 0.0
  %1394 = vmatprep.subr.mxu0 0.0
  %1395 = vmatpush1.msra.mxu0 %v735
  %1396 = vmatprep.subr.mxu0 0.0
  %1397 = vmatpush1.msra.mxu0 %v734
  %1398 = vmatprep.subr.mxu0 0.0
  %1399 = vmatpush2.msra.mxu0 0.0
  %1400 = vmatprep.subr.mxu0 0.0
  %1401 = vmatpush2.msra.mxu0 0.0
  %1402 = vmatprep.subr.mxu0 0.0
  %1403 = vmatpush2.msra.mxu0 0.0
  %1404 = vmatprep.subr.mxu0 0.0
  %1405 = vmatpush2.msra.mxu0 0.0
  %1406 = vmatprep.subr.mxu0 0.0
  %1407 = vmatpush2.msra.mxu0 0.0
  %1408 = vmatprep.subr.mxu0 0.0
  %1409 = vmatpush2.msra.mxu0 0.0
  %1410 = vmatprep.subr.mxu0 0.0
  %1411 = vmatpush2.msra.mxu0 0.0
  %1412 = vmatprep.subr.mxu0 0.0
  %1413 = vmatpush2.msra.mxu0 0.0
  %1414 = vmatprep.subr.mxu0 0.0
  %1415 = vmatpush2.msra.mxu0 0.0
  %1416 = vmatprep.subr.mxu0 0.0
  %1417 = vmatpush2.msra.mxu0 0.0
  %1418 = vmatprep.subr.mxu0 0.0
  %1419 = vmatpush2.msra.mxu0 0.0
  %1420 = vmatprep.subr.mxu0 0.0
  %1421 = vmatpush2.msra.mxu0 0.0
  %1422 = vmatprep.subr.mxu0 0.0
  %1423 = vmatpush2.msra.mxu0 0.0
  %1424 = vmatprep.subr.mxu0 0.0
  %1425 = vmatpush2.msra.mxu0 0.0
  %1426 = vmatprep.subr.mxu0 0.0
  %1427 = vmatpush2.msra.mxu0 0.0
  %1428 = vmatprep.subr.mxu0 0.0
  %1429 = vmatpush2.msra.mxu0 0.0
  %1430 = vmatprep.mubr.f32.mxu0 0.0
  %1431 = vmatmul.mubr.f32.gmra.mxu0 %v1364
  %v1432 = vpop.f32.mrf.mxu0
  %v1433 = vadd.f32 0.0, %v1432
  %v1434 = vpop.f32.mrf.mxu0
  %1435 = vdwg.mxu0
  %v1436 = vadd.f32 %v731, %v1433
  %v1437 = vxor.u32 %v1436, 2147483648
  %v1438 = vmul.f32 %v1437, 1.442695
  %v1439 = vpow.pop %v1438
  %v1440 = vadd.f32 %v1439, 1.0
  %v1441 = vrcp.pop %v1440
  %v1442 = vmul.f32 1.0, %v1441
  %v1443 = vtanh.pop %v1436
  %v1445 = vrot.slane %v1353, 4
  %v1447 = vmul.f32 %v1442, %v1445
  %1449 = vrot.lane.b32.xlu0 %v1443, 96
  %v1450 = vpop.permute.xlu0 %1449
  %v1452 = vmul.f32 %v1442, %v1450
  %1454 = vrot.lane.b32.xlu0 %v1452, 16
  %v1455 = vpop.permute.xlu0 %1454
  %v1457 = vadd.f32 %v1447, %v1455
  %v1458 = vtanh.pop %v1457
  %1460 = vrot.lane.b32.xlu0 %v1458, 32
  %v1461 = vpop.permute.xlu0 %1460
  %v1463 = vmul.f32 %v1442, %v1461
  %1465 = vrot.lane.b32.xlu0 %v1463, 80
  %v1466 = vpop.permute.xlu0 %1465
  %v1467 = vsel %vm636, %v1466, 0
  %1469 = vmatprep.subr.mxu0 0.0
  %1470 = vmatpush1.msra.mxu0 0.0
  %1471 = vmatprep.subr.mxu0 0.0
  %1472 = vmatpush1.msra.mxu0 0.0
  %1473 = vmatprep.subr.mxu0 0.0
  %1474 = vmatpush1.msra.mxu0 0.0
  %1475 = vmatprep.subr.mxu0 0.0
  %1476 = vmatpush1.msra.mxu0 0.0
  %1477 = vmatprep.subr.mxu0 0.0
  %1478 = vmatpush1.msra.mxu0 0.0
  %1479 = vmatprep.subr.mxu0 0.0
  %1480 = vmatpush1.msra.mxu0 0.0
  %1481 = vmatprep.subr.mxu0 0.0
  %1482 = vmatpush1.msra.mxu0 0.0
  %1483 = vmatprep.subr.mxu0 0.0
  %1484 = vmatpush1.msra.mxu0 0.0
  %1485 = vmatprep.subr.mxu0 0.0
  %1486 = vmatpush1.msra.mxu0 0.0
  %1487 = vmatprep.subr.mxu0 0.0
  %1488 = vmatpush1.msra.mxu0 0.0
  %1489 = vmatprep.subr.mxu0 0.0
  %1490 = vmatpush1.msra.mxu0 0.0
  %1491 = vmatprep.subr.mxu0 0.0
  %1492 = vmatpush1.msra.mxu0 0.0
  %1493 = vmatprep.subr.mxu0 0.0
  %1494 = vmatpush1.msra.mxu0 0.0
  %1495 = vmatprep.subr.mxu0 0.0
  %1496 = vmatpush1.msra.mxu0 0.0
  %1497 = vmatprep.subr.mxu0 0.0
  %1498 = vmatpush1.msra.mxu0 %v735
  %1499 = vmatprep.subr.mxu0 0.0
  %1500 = vmatpush1.msra.mxu0 %v734
  %1501 = vmatprep.subr.mxu0 0.0
  %1502 = vmatpush2.msra.mxu0 0.0
  %1503 = vmatprep.subr.mxu0 0.0
  %1504 = vmatpush2.msra.mxu0 0.0
  %1505 = vmatprep.subr.mxu0 0.0
  %1506 = vmatpush2.msra.mxu0 0.0
  %1507 = vmatprep.subr.mxu0 0.0
  %1508 = vmatpush2.msra.mxu0 0.0
  %1509 = vmatprep.subr.mxu0 0.0
  %1510 = vmatpush2.msra.mxu0 0.0
  %1511 = vmatprep.subr.mxu0 0.0
  %1512 = vmatpush2.msra.mxu0 0.0
  %1513 = vmatprep.subr.mxu0 0.0
  %1514 = vmatpush2.msra.mxu0 0.0
  %1515 = vmatprep.subr.mxu0 0.0
  %1516 = vmatpush2.msra.mxu0 0.0
  %1517 = vmatprep.subr.mxu0 0.0
  %1518 = vmatpush2.msra.mxu0 0.0
  %1519 = vmatprep.subr.mxu0 0.0
  %1520 = vmatpush2.msra.mxu0 0.0
  %1521 = vmatprep.subr.mxu0 0.0
  %1522 = vmatpush2.msra.mxu0 0.0
  %1523 = vmatprep.subr.mxu0 0.0
  %1524 = vmatpush2.msra.mxu0 0.0
  %1525 = vmatprep.subr.mxu0 0.0
  %1526 = vmatpush2.msra.mxu0 0.0
  %1527 = vmatprep.subr.mxu0 0.0
  %1528 = vmatpush2.msra.mxu0 0.0
  %1529 = vmatprep.subr.mxu0 0.0
  %1530 = vmatpush2.msra.mxu0 0.0
  %1531 = vmatprep.subr.mxu0 0.0
  %1532 = vmatpush2.msra.mxu0 0.0
  %1533 = vmatprep.mubr.f32.mxu0 0.0
  %1534 = vmatmul.mubr.f32.gmra.mxu0 %v1467
  %v1535 = vpop.f32.mrf.mxu0
  %v1536 = vadd.f32 0.0, %v1535
  %v1537 = vpop.f32.mrf.mxu0
  %1538 = vdwg.mxu0
  %v1540 = vrot.slane %v1536, 4
  %v1542 = vadd.f32 %v731, %v1540
  %v1543 = vxor.u32 %v1542, 2147483648
  %v1544 = vmul.f32 %v1543, 1.442695
  %v1545 = vpow.pop %v1544
  %v1546 = vadd.f32 %v1545, 1.0
  %v1547 = vrcp.pop %v1546
  %v1548 = vmul.f32 1.0, %v1547
  %v1549 = vtanh.pop %v1542
  %v1551 = vrot.slane %v1457, 4
  %v1553 = vmul.f32 %v1548, %v1551
  %1555 = vrot.lane.b32.xlu0 %v1549, 96
  %v1556 = vpop.permute.xlu0 %1555
  %v1558 = vmul.f32 %v1548, %v1556
  %1560 = vrot.lane.b32.xlu0 %v1558, 16
  %v1561 = vpop.permute.xlu0 %1560
  %v1563 = vadd.f32 %v1553, %v1561
  %v1564 = vtanh.pop %v1563
  %1566 = vrot.lane.b32.xlu0 %v1564, 32
  %v1567 = vpop.permute.xlu0 %1566
  %v1569 = vmul.f32 %v1548, %v1567
  %v1570 = vld [vmem:[%s37] sm:$0xff]
  %v1571 = vld [vmem:[%s37 + $0x8] sm:$0xff]
  %v1572 = vld [vmem:[%s37 + $0x10] sm:$0xff]
  %v1573 = vld [vmem:[%s37 + $0x18] sm:$0xff]
  %v1574 = vld [vmem:[%s37 + $0x20] sm:$0xff]
  %v1575 = vld [vmem:[%s37 + $0x28] sm:$0xff]
  %v1576 = vld [vmem:[%s37 + $0x30] sm:$0xff]
  %v1577 = vld [vmem:[%s37 + $0x38] sm:$0xff]
  %v1578 = vld [vmem:[%s37 + $0x40] sm:$0xff]
  %v1579 = vld [vmem:[%s37 + $0x48] sm:$0xff]
  %v1580 = vld [vmem:[%s37 + $0x50] sm:$0xff]
  %v1581 = vld [vmem:[%s37 + $0x58] sm:$0xff]
  %v1582 = vld [vmem:[%s39] sm:$0x3f]
  %v1584 = vlaneseq
  %v1585 = vshrl.u32 %v1584, 7
  %v1586 = vsub.s32 0, %v1585
  %v1587 = vrot.slane %v1582, %v1586
  %v1588 = vlaneseq
  %v1589 = vshrl.u32 %v1588, 7
  %v1590 = vsub.s32 1, %v1589
  %v1591 = vrot.slane %v1582, %v1590
  %v1592 = vlaneseq
  %v1593 = vshrl.u32 %v1592, 7
  %v1594 = vsub.s32 2, %v1593
  %v1595 = vrot.slane %v1582, %v1594
  %v1596 = vlaneseq
  %v1597 = vshrl.u32 %v1596, 7
  %v1598 = vsub.s32 3, %v1597
  %v1599 = vrot.slane %v1582, %v1598
  %v1600 = vlaneseq
  %v1601 = vshrl.u32 %v1600, 7
  %v1602 = vsub.s32 4, %v1601
  %v1603 = vrot.slane %v1582, %v1602
  %v1604 = vlaneseq
  %v1605 = vshrl.u32 %v1604, 7
  %v1606 = vsub.s32 5, %v1605
  %v1607 = vrot.slane %v1582, %v1606
  %v1615 = vrot.slane %v1569, 4
  %1616 = vrot.lane.b32.xlu0 %v1615, 80
  %v1617 = vpop.permute.xlu0 %1616
  %v1618 = vsel %vm636, %v1617, 0
  %1620 = vmatprep.subr.mxu0 0.0
  %1621 = vmatpush1.msra.mxu0 0.0
  %1622 = vmatprep.subr.mxu0 0.0
  %1623 = vmatpush1.msra.mxu0 0.0
  %1624 = vmatprep.subr.mxu0 0.0
  %1625 = vmatpush1.msra.mxu0 0.0
  %1626 = vmatprep.subr.mxu0 0.0
  %1627 = vmatpush1.msra.mxu0 0.0
  %1628 = vmatprep.subr.mxu0 0.0
  %1629 = vmatpush1.msra.mxu0 0.0
  %1630 = vmatprep.subr.mxu0 0.0
  %1631 = vmatpush1.msra.mxu0 0.0
  %1632 = vmatprep.subr.mxu0 0.0
  %1633 = vmatpush1.msra.mxu0 0.0
  %1634 = vmatprep.subr.mxu0 0.0
  %1635 = vmatpush1.msra.mxu0 0.0
  %1636 = vmatprep.subr.mxu0 0.0
  %1637 = vmatpush1.msra.mxu0 0.0
  %1638 = vmatprep.subr.mxu0 0.0
  %1639 = vmatpush1.msra.mxu0 0.0
  %1640 = vmatprep.subr.mxu0 0.0
  %1641 = vmatpush1.msra.mxu0 0.0
  %1642 = vmatprep.subr.mxu0 0.0
  %1643 = vmatpush1.msra.mxu0 0.0
  %1644 = vmatprep.subr.mxu0 0.0
  %1645 = vmatpush1.msra.mxu0 0.0
  %1646 = vmatprep.subr.mxu0 0.0
  %1647 = vmatpush1.msra.mxu0 0.0
  %1648 = vmatprep.subr.mxu0 %v1577
  %1649 = vmatpush1.msra.mxu0 %v1576
  %1650 = vmatprep.subr.mxu0 %v1571
  %1651 = vmatpush1.msra.mxu0 %v1570
  %1652 = vmatprep.subr.mxu0 0.0
  %1653 = vmatpush2.msra.mxu0 0.0
  %1654 = vmatprep.subr.mxu0 0.0
  %1655 = vmatpush2.msra.mxu0 0.0
  %1656 = vmatprep.subr.mxu0 0.0
  %1657 = vmatpush2.msra.mxu0 0.0
  %1658 = vmatprep.subr.mxu0 0.0
  %1659 = vmatpush2.msra.mxu0 0.0
  %1660 = vmatprep.subr.mxu0 0.0
  %1661 = vmatpush2.msra.mxu0 0.0
  %1662 = vmatprep.subr.mxu0 0.0
  %1663 = vmatpush2.msra.mxu0 0.0
  %1664 = vmatprep.subr.mxu0 0.0
  %1665 = vmatpush2.msra.mxu0 0.0
  %1666 = vmatprep.subr.mxu0 0.0
  %1667 = vmatpush2.msra.mxu0 0.0
  %1668 = vmatprep.subr.mxu0 0.0
  %1669 = vmatpush2.msra.mxu0 0.0
  %1670 = vmatprep.subr.mxu0 0.0
  %1671 = vmatpush2.msra.mxu0 0.0
  %1672 = vmatprep.subr.mxu0 0.0
  %1673 = vmatpush2.msra.mxu0 0.0
  %1674 = vmatprep.subr.mxu0 0.0
  %1675 = vmatpush2.msra.mxu0 0.0
  %1676 = vmatprep.subr.mxu0 0.0
  %1677 = vmatpush2.msra.mxu0 0.0
  %1678 = vmatprep.subr.mxu0 0.0
  %1679 = vmatpush2.msra.mxu0 0.0
  %1680 = vmatprep.subr.mxu0 0.0
  %1681 = vmatpush2.msra.mxu0 0.0
  %1682 = vmatprep.subr.mxu0 0.0
  %1683 = vmatpush2.msra.mxu0 0.0
  %1684 = vmatprep.mubr.f32.mxu0 0.0
  %1685 = vmatmul.mubr.f32.gmra.mxu0 %v1618
  %v1686 = vpop.f32.mrf.mxu0
  %v1687 = vadd.f32 %v1587, %v1686
  %v1688 = vpop.f32.mrf.mxu0
  %v1689 = vadd.f32 %v1591, %v1688
  %1690 = vdwg.mxu0
  %1691 = vmatprep.subr.mxu0 0.0
  %1692 = vmatpush1.msra.mxu0 0.0
  %1693 = vmatprep.subr.mxu0 0.0
  %1694 = vmatpush1.msra.mxu0 0.0
  %1695 = vmatprep.subr.mxu0 0.0
  %1696 = vmatpush1.msra.mxu0 0.0
  %1697 = vmatprep.subr.mxu0 0.0
  %1698 = vmatpush1.msra.mxu0 0.0
  %1699 = vmatprep.subr.mxu0 0.0
  %1700 = vmatpush1.msra.mxu0 0.0
  %1701 = vmatprep.subr.mxu0 0.0
  %1702 = vmatpush1.msra.mxu0 0.0
  %1703 = vmatprep.subr.mxu0 0.0
  %1704 = vmatpush1.msra.mxu0 0.0
  %1705 = vmatprep.subr.mxu0 0.0
  %1706 = vmatpush1.msra.mxu0 0.0
  %1707 = vmatprep.subr.mxu0 0.0
  %1708 = vmatpush1.msra.mxu0 0.0
  %1709 = vmatprep.subr.mxu0 0.0
  %1710 = vmatpush1.msra.mxu0 0.0
  %1711 = vmatprep.subr.mxu0 0.0
  %1712 = vmatpush1.msra.mxu0 0.0
  %1713 = vmatprep.subr.mxu0 0.0
  %1714 = vmatpush1.msra.mxu0 0.0
  %1715 = vmatprep.subr.mxu0 0.0
  %1716 = vmatpush1.msra.mxu0 0.0
  %1717 = vmatprep.subr.mxu0 0.0
  %1718 = vmatpush1.msra.mxu0 0.0
  %1719 = vmatprep.subr.mxu0 %v1579
  %1720 = vmatpush1.msra.mxu0 %v1578
  %1721 = vmatprep.subr.mxu0 %v1573
  %1722 = vmatpush1.msra.mxu0 %v1572
  %1723 = vmatprep.subr.mxu0 0.0
  %1724 = vmatpush2.msra.mxu0 0.0
  %1725 = vmatprep.subr.mxu0 0.0
  %1726 = vmatpush2.msra.mxu0 0.0
  %1727 = vmatprep.subr.mxu0 0.0
  %1728 = vmatpush2.msra.mxu0 0.0
  %1729 = vmatprep.subr.mxu0 0.0
  %1730 = vmatpush2.msra.mxu0 0.0
  %1731 = vmatprep.subr.mxu0 0.0
  %1732 = vmatpush2.msra.mxu0 0.0
  %1733 = vmatprep.subr.mxu0 0.0
  %1734 = vmatpush2.msra.mxu0 0.0
  %1735 = vmatprep.subr.mxu0 0.0
  %1736 = vmatpush2.msra.mxu0 0.0
  %1737 = vmatprep.subr.mxu0 0.0
  %1738 = vmatpush2.msra.mxu0 0.0
  %1739 = vmatprep.subr.mxu0 0.0
  %1740 = vmatpush2.msra.mxu0 0.0
  %1741 = vmatprep.subr.mxu0 0.0
  %1742 = vmatpush2.msra.mxu0 0.0
  %1743 = vmatprep.subr.mxu0 0.0
  %1744 = vmatpush2.msra.mxu0 0.0
  %1745 = vmatprep.subr.mxu0 0.0
  %1746 = vmatpush2.msra.mxu0 0.0
  %1747 = vmatprep.subr.mxu0 0.0
  %1748 = vmatpush2.msra.mxu0 0.0
  %1749 = vmatprep.subr.mxu0 0.0
  %1750 = vmatpush2.msra.mxu0 0.0
  %1751 = vmatprep.subr.mxu0 0.0
  %1752 = vmatpush2.msra.mxu0 0.0
  %1753 = vmatprep.subr.mxu0 0.0
  %1754 = vmatpush2.msra.mxu0 0.0
  %1755 = vmatprep.mubr.f32.mxu0 0.0
  %1756 = vmatmul.mubr.f32.gmra.mxu0 %v1618
  %v1757 = vpop.f32.mrf.mxu0
  %v1758 = vadd.f32 %v1595, %v1757
  %v1759 = vpop.f32.mrf.mxu0
  %v1760 = vadd.f32 %v1599, %v1759
  %1761 = vdwg.mxu0
  %1762 = vmatprep.subr.mxu0 0.0
  %1763 = vmatpush1.msra.mxu0 0.0
  %1764 = vmatprep.subr.mxu0 0.0
  %1765 = vmatpush1.msra.mxu0 0.0
  %1766 = vmatprep.subr.mxu0 0.0
  %1767 = vmatpush1.msra.mxu0 0.0
  %1768 = vmatprep.subr.mxu0 0.0
  %1769 = vmatpush1.msra.mxu0 0.0
  %1770 = vmatprep.subr.mxu0 0.0
  %1771 = vmatpush1.msra.mxu0 0.0
  %1772 = vmatprep.subr.mxu0 0.0
  %1773 = vmatpush1.msra.mxu0 0.0
  %1774 = vmatprep.subr.mxu0 0.0
  %1775 = vmatpush1.msra.mxu0 0.0
  %1776 = vmatprep.subr.mxu0 0.0
  %1777 = vmatpush1.msra.mxu0 0.0
  %1778 = vmatprep.subr.mxu0 0.0
  %1779 = vmatpush1.msra.mxu0 0.0
  %1780 = vmatprep.subr.mxu0 0.0
  %1781 = vmatpush1.msra.mxu0 0.0
  %1782 = vmatprep.subr.mxu0 0.0
  %1783 = vmatpush1.msra.mxu0 0.0
  %1784 = vmatprep.subr.mxu0 0.0
  %1785 = vmatpush1.msra.mxu0 0.0
  %1786 = vmatprep.subr.mxu0 0.0
  %1787 = vmatpush1.msra.mxu0 0.0
  %1788 = vmatprep.subr.mxu0 0.0
  %1789 = vmatpush1.msra.mxu0 0.0
  %1790 = vmatprep.subr.mxu0 %v1581
  %1791 = vmatpush1.msra.mxu0 %v1580
  %1792 = vmatprep.subr.mxu0 %v1575
  %1793 = vmatpush1.msra.mxu0 %v1574
  %1794 = vmatprep.subr.mxu0 0.0
  %1795 = vmatpush2.msra.mxu0 0.0
  %1796 = vmatprep.subr.mxu0 0.0
  %1797 = vmatpush2.msra.mxu0 0.0
  %1798 = vmatprep.subr.mxu0 0.0
  %1799 = vmatpush2.msra.mxu0 0.0
  %1800 = vmatprep.subr.mxu0 0.0
  %1801 = vmatpush2.msra.mxu0 0.0
  %1802 = vmatprep.subr.mxu0 0.0
  %1803 = vmatpush2.msra.mxu0 0.0
  %1804 = vmatprep.subr.mxu0 0.0
  %1805 = vmatpush2.msra.mxu0 0.0
  %1806 = vmatprep.subr.mxu0 0.0
  %1807 = vmatpush2.msra.mxu0 0.0
  %1808 = vmatprep.subr.mxu0 0.0
  %1809 = vmatpush2.msra.mxu0 0.0
  %1810 = vmatprep.subr.mxu0 0.0
  %1811 = vmatpush2.msra.mxu0 0.0
  %1812 = vmatprep.subr.mxu0 0.0
  %1813 = vmatpush2.msra.mxu0 0.0
  %1814 = vmatprep.subr.mxu0 0.0
  %1815 = vmatpush2.msra.mxu0 0.0
  %1816 = vmatprep.subr.mxu0 0.0
  %1817 = vmatpush2.msra.mxu0 0.0
  %1818 = vmatprep.subr.mxu0 0.0
  %1819 = vmatpush2.msra.mxu0 0.0
  %1820 = vmatprep.subr.mxu0 0.0
  %1821 = vmatpush2.msra.mxu0 0.0
  %1822 = vmatprep.subr.mxu0 0.0
  %1823 = vmatpush2.msra.mxu0 0.0
  %1824 = vmatprep.subr.mxu0 0.0
  %1825 = vmatpush2.msra.mxu0 0.0
  %1826 = vmatprep.mubr.f32.mxu0 0.0
  %1827 = vmatmul.mubr.f32.gmra.mxu0 %v1618
  %v1828 = vpop.f32.mrf.mxu0
  %v1829 = vadd.f32 %v1603, %v1828
  %v1830 = vpop.f32.mrf.mxu0
  %v1831 = vadd.f32 %v1607, %v1830
  %1832 = vdwg.mxu0
  %v1833 = vld [vmem:[%s41] sm:$0xff]
  %v1834 = vld [vmem:[%s41 + $0x8] sm:$0xff]
  %v1835 = vld [vmem:[%s41 + $0x10] sm:$0xff]
  %v1836 = vld [vmem:[%s41 + $0x18] sm:$0xff]
  %v1837 = vld [vmem:[%s41 + $0x20] sm:$0xff]
  %v1838 = vld [vmem:[%s41 + $0x28] sm:$0xff]
  %v1839 = vld [vmem:[%s43] sm:$0x3f]
  %v1841 = vlaneseq
  %v1842 = vshrl.u32 %v1841, 7
  %v1843 = vsub.s32 0, %v1842
  %v1844 = vrot.slane %v1839, %v1843
  %v1845 = vlaneseq
  %v1846 = vshrl.u32 %v1845, 7
  %v1847 = vsub.s32 1, %v1846
  %v1848 = vrot.slane %v1839, %v1847
  %v1849 = vlaneseq
  %v1850 = vshrl.u32 %v1849, 7
  %v1851 = vsub.s32 2, %v1850
  %v1852 = vrot.slane %v1839, %v1851
  %v1853 = vlaneseq
  %v1854 = vshrl.u32 %v1853, 7
  %v1855 = vsub.s32 3, %v1854
  %v1856 = vrot.slane %v1839, %v1855
  %v1857 = vlaneseq
  %v1858 = vshrl.u32 %v1857, 7
  %v1859 = vsub.s32 4, %v1858
  %v1860 = vrot.slane %v1839, %v1859
  %v1861 = vlaneseq
  %v1862 = vshrl.u32 %v1861, 7
  %v1863 = vsub.s32 5, %v1862
  %v1864 = vrot.slane %v1839, %v1863
  %v1872 = vsel %vm137, %v622, 0
  %1874 = vmatprep.subr.mxu0 0.0
  %1875 = vmatpush1.msra.mxu0 0.0
  %1876 = vmatprep.subr.mxu0 0.0
  %1877 = vmatpush1.msra.mxu0 0.0
  %1878 = vmatprep.subr.mxu0 0.0
  %1879 = vmatpush1.msra.mxu0 0.0
  %1880 = vmatprep.subr.mxu0 0.0
  %1881 = vmatpush1.msra.mxu0 0.0
  %1882 = vmatprep.subr.mxu0 0.0
  %1883 = vmatpush1.msra.mxu0 0.0
  %1884 = vmatprep.subr.mxu0 0.0
  %1885 = vmatpush1.msra.mxu0 0.0
  %1886 = vmatprep.subr.mxu0 0.0
  %1887 = vmatpush1.msra.mxu0 0.0
  %1888 = vmatprep.subr.mxu0 0.0
  %1889 = vmatpush1.msra.mxu0 0.0
  %1890 = vmatprep.subr.mxu0 0.0
  %1891 = vmatpush1.msra.mxu0 0.0
  %1892 = vmatprep.subr.mxu0 0.0
  %1893 = vmatpush1.msra.mxu0 0.0
  %1894 = vmatprep.subr.mxu0 0.0
  %1895 = vmatpush1.msra.mxu0 0.0
  %1896 = vmatprep.subr.mxu0 0.0
  %1897 = vmatpush1.msra.mxu0 0.0
  %1898 = vmatprep.subr.mxu0 0.0
  %1899 = vmatpush1.msra.mxu0 0.0
  %1900 = vmatprep.subr.mxu0 0.0
  %1901 = vmatpush1.msra.mxu0 0.0
  %1902 = vmatprep.subr.mxu0 0.0
  %1903 = vmatpush1.msra.mxu0 0.0
  %1904 = vmatprep.subr.mxu0 %v1834
  %1905 = vmatpush1.msra.mxu0 %v1833
  %1906 = vmatprep.subr.mxu0 0.0
  %1907 = vmatpush2.msra.mxu0 0.0
  %1908 = vmatprep.subr.mxu0 0.0
  %1909 = vmatpush2.msra.mxu0 0.0
  %1910 = vmatprep.subr.mxu0 0.0
  %1911 = vmatpush2.msra.mxu0 0.0
  %1912 = vmatprep.subr.mxu0 0.0
  %1913 = vmatpush2.msra.mxu0 0.0
  %1914 = vmatprep.subr.mxu0 0.0
  %1915 = vmatpush2.msra.mxu0 0.0
  %1916 = vmatprep.subr.mxu0 0.0
  %1917 = vmatpush2.msra.mxu0 0.0
  %1918 = vmatprep.subr.mxu0 0.0
  %1919 = vmatpush2.msra.mxu0 0.0
  %1920 = vmatprep.subr.mxu0 0.0
  %1921 = vmatpush2.msra.mxu0 0.0
  %1922 = vmatprep.subr.mxu0 0.0
  %1923 = vmatpush2.msra.mxu0 0.0
  %1924 = vmatprep.subr.mxu0 0.0
  %1925 = vmatpush2.msra.mxu0 0.0
  %1926 = vmatprep.subr.mxu0 0.0
  %1927 = vmatpush2.msra.mxu0 0.0
  %1928 = vmatprep.subr.mxu0 0.0
  %1929 = vmatpush2.msra.mxu0 0.0
  %1930 = vmatprep.subr.mxu0 0.0
  %1931 = vmatpush2.msra.mxu0 0.0
  %1932 = vmatprep.subr.mxu0 0.0
  %1933 = vmatpush2.msra.mxu0 0.0
  %1934 = vmatprep.subr.mxu0 0.0
  %1935 = vmatpush2.msra.mxu0 0.0
  %1936 = vmatprep.subr.mxu0 0.0
  %1937 = vmatpush2.msra.mxu0 0.0
  %1938 = vmatprep.mubr.f32.mxu0 0.0
  %1939 = vmatmul.mubr.f32.gmra.mxu0 %v1872
  %v1940 = vpop.f32.mrf.mxu0
  %v1941 = vadd.f32 %v1844, %v1940
  %v1942 = vpop.f32.mrf.mxu0
  %v1943 = vadd.f32 %v1848, %v1942
  %1944 = vdwg.mxu0
  %1945 = vmatprep.subr.mxu0 0.0
  %1946 = vmatpush1.msra.mxu0 0.0
  %1947 = vmatprep.subr.mxu0 0.0
  %1948 = vmatpush1.msra.mxu0 0.0
  %1949 = vmatprep.subr.mxu0 0.0
  %1950 = vmatpush1.msra.mxu0 0.0
  %1951 = vmatprep.subr.mxu0 0.0
  %1952 = vmatpush1.msra.mxu0 0.0
  %1953 = vmatprep.subr.mxu0 0.0
  %1954 = vmatpush1.msra.mxu0 0.0
  %1955 = vmatprep.subr.mxu0 0.0
  %1956 = vmatpush1.msra.mxu0 0.0
  %1957 = vmatprep.subr.mxu0 0.0
  %1958 = vmatpush1.msra.mxu0 0.0
  %1959 = vmatprep.subr.mxu0 0.0
  %1960 = vmatpush1.msra.mxu0 0.0
  %1961 = vmatprep.subr.mxu0 0.0
  %1962 = vmatpush1.msra.mxu0 0.0
  %1963 = vmatprep.subr.mxu0 0.0
  %1964 = vmatpush1.msra.mxu0 0.0
  %1965 = vmatprep.subr.mxu0 0.0
  %1966 = vmatpush1.msra.mxu0 0.0
  %1967 = vmatprep.subr.mxu0 0.0
  %1968 = vmatpush1.msra.mxu0 0.0
  %1969 = vmatprep.subr.mxu0 0.0
  %1970 = vmatpush1.msra.mxu0 0.0
  %1971 = vmatprep.subr.mxu0 0.0
  %1972 = vmatpush1.msra.mxu0 0.0
  %1973 = vmatprep.subr.mxu0 0.0
  %1974 = vmatpush1.msra.mxu0 0.0
  %1975 = vmatprep.subr.mxu0 %v1836
  %1976 = vmatpush1.msra.mxu0 %v1835
  %1977 = vmatprep.subr.mxu0 0.0
  %1978 = vmatpush2.msra.mxu0 0.0
  %1979 = vmatprep.subr.mxu0 0.0
  %1980 = vmatpush2.msra.mxu0 0.0
  %1981 = vmatprep.subr.mxu0 0.0
  %1982 = vmatpush2.msra.mxu0 0.0
  %1983 = vmatprep.subr.mxu0 0.0
  %1984 = vmatpush2.msra.mxu0 0.0
  %1985 = vmatprep.subr.mxu0 0.0
  %1986 = vmatpush2.msra.mxu0 0.0
  %1987 = vmatprep.subr.mxu0 0.0
  %1988 = vmatpush2.msra.mxu0 0.0
  %1989 = vmatprep.subr.mxu0 0.0
  %1990 = vmatpush2.msra.mxu0 0.0
  %1991 = vmatprep.subr.mxu0 0.0
  %1992 = vmatpush2.msra.mxu0 0.0
  %1993 = vmatprep.subr.mxu0 0.0
  %1994 = vmatpush2.msra.mxu0 0.0
  %1995 = vmatprep.subr.mxu0 0.0
  %1996 = vmatpush2.msra.mxu0 0.0
  %1997 = vmatprep.subr.mxu0 0.0
  %1998 = vmatpush2.msra.mxu0 0.0
  %1999 = vmatprep.subr.mxu0 0.0
  %2000 = vmatpush2.msra.mxu0 0.0
  %2001 = vmatprep.subr.mxu0 0.0
  %2002 = vmatpush2.msra.mxu0 0.0
  %2003 = vmatprep.subr.mxu0 0.0
  %2004 = vmatpush2.msra.mxu0 0.0
  %2005 = vmatprep.subr.mxu0 0.0
  %2006 = vmatpush2.msra.mxu0 0.0
  %2007 = vmatprep.subr.mxu0 0.0
  %2008 = vmatpush2.msra.mxu0 0.0
  %2009 = vmatprep.mubr.f32.mxu0 0.0
  %2010 = vmatmul.mubr.f32.gmra.mxu0 %v1872
  %v2011 = vpop.f32.mrf.mxu0
  %v2012 = vadd.f32 %v1852, %v2011
  %v2013 = vpop.f32.mrf.mxu0
  %v2014 = vadd.f32 %v1856, %v2013
  %2015 = vdwg.mxu0
  %2016 = vmatprep.subr.mxu0 0.0
  %2017 = vmatpush1.msra.mxu0 0.0
  %2018 = vmatprep.subr.mxu0 0.0
  %2019 = vmatpush1.msra.mxu0 0.0
  %2020 = vmatprep.subr.mxu0 0.0
  %2021 = vmatpush1.msra.mxu0 0.0
  %2022 = vmatprep.subr.mxu0 0.0
  %2023 = vmatpush1.msra.mxu0 0.0
  %2024 = vmatprep.subr.mxu0 0.0
  %2025 = vmatpush1.msra.mxu0 0.0
  %2026 = vmatprep.subr.mxu0 0.0
  %2027 = vmatpush1.msra.mxu0 0.0
  %2028 = vmatprep.subr.mxu0 0.0
  %2029 = vmatpush1.msra.mxu0 0.0
  %2030 = vmatprep.subr.mxu0 0.0
  %2031 = vmatpush1.msra.mxu0 0.0
  %2032 = vmatprep.subr.mxu0 0.0
  %2033 = vmatpush1.msra.mxu0 0.0
  %2034 = vmatprep.subr.mxu0 0.0
  %2035 = vmatpush1.msra.mxu0 0.0
  %2036 = vmatprep.subr.mxu0 0.0
  %2037 = vmatpush1.msra.mxu0 0.0
  %2038 = vmatprep.subr.mxu0 0.0
  %2039 = vmatpush1.msra.mxu0 0.0
  %2040 = vmatprep.subr.mxu0 0.0
  %2041 = vmatpush1.msra.mxu0 0.0
  %2042 = vmatprep.subr.mxu0 0.0
  %2043 = vmatpush1.msra.mxu0 0.0
  %2044 = vmatprep.subr.mxu0 0.0
  %2045 = vmatpush1.msra.mxu0 0.0
  %2046 = vmatprep.subr.mxu0 %v1838
  %2047 = vmatpush1.msra.mxu0 %v1837
  %2048 = vmatprep.subr.mxu0 0.0
  %2049 = vmatpush2.msra.mxu0 0.0
  %2050 = vmatprep.subr.mxu0 0.0
  %2051 = vmatpush2.msra.mxu0 0.0
  %2052 = vmatprep.subr.mxu0 0.0
  %2053 = vmatpush2.msra.mxu0 0.0
  %2054 = vmatprep.subr.mxu0 0.0
  %2055 = vmatpush2.msra.mxu0 0.0
  %2056 = vmatprep.subr.mxu0 0.0
  %2057 = vmatpush2.msra.mxu0 0.0
  %2058 = vmatprep.subr.mxu0 0.0
  %2059 = vmatpush2.msra.mxu0 0.0
  %2060 = vmatprep.subr.mxu0 0.0
  %2061 = vmatpush2.msra.mxu0 0.0
  %2062 = vmatprep.subr.mxu0 0.0
  %2063 = vmatpush2.msra.mxu0 0.0
  %2064 = vmatprep.subr.mxu0 0.0
  %2065 = vmatpush2.msra.mxu0 0.0
  %2066 = vmatprep.subr.mxu0 0.0
  %2067 = vmatpush2.msra.mxu0 0.0
  %2068 = vmatprep.subr.mxu0 0.0
  %2069 = vmatpush2.msra.mxu0 0.0
  %2070 = vmatprep.subr.mxu0 0.0
  %2071 = vmatpush2.msra.mxu0 0.0
  %2072 = vmatprep.subr.mxu0 0.0
  %2073 = vmatpush2.msra.mxu0 0.0
  %2074 = vmatprep.subr.mxu0 0.0
  %2075 = vmatpush2.msra.mxu0 0.0
  %2076 = vmatprep.subr.mxu0 0.0
  %2077 = vmatpush2.msra.mxu0 0.0
  %2078 = vmatprep.subr.mxu0 0.0
  %2079 = vmatpush2.msra.mxu0 0.0
  %2080 = vmatprep.mubr.f32.mxu0 0.0
  %2081 = vmatmul.mubr.f32.gmra.mxu0 %v1872
  %v2082 = vpop.f32.mrf.mxu0
  %v2083 = vadd.f32 %v1860, %v2082
  %v2084 = vpop.f32.mrf.mxu0
  %v2085 = vadd.f32 %v1864, %v2084
  %2086 = vdwg.mxu0
  %v2087 = vld [vmem:[%s45] sm:$0xff]
  %v2088 = vld [vmem:[%s45 + $0x8] sm:$0xff]
  %v2089 = vld [vmem:[%s45 + $0x10] sm:$0xff]
  %v2090 = vld [vmem:[%s45 + $0x18] sm:$0xff]
  %v2091 = vld [vmem:[%s45 + $0x20] sm:$0xff]
  %v2092 = vld [vmem:[%s45 + $0x28] sm:$0xff]
  %v2093 = vld [vmem:[%s47] sm:$0x3f]
  %v2095 = vlaneseq
  %v2096 = vshrl.u32 %v2095, 7
  %v2097 = vsub.s32 0, %v2096
  %v2098 = vrot.slane %v2093, %v2097
  %v2099 = vlaneseq
  %v2100 = vshrl.u32 %v2099, 7
  %v2101 = vsub.s32 1, %v2100
  %v2102 = vrot.slane %v2093, %v2101
  %v2103 = vlaneseq
  %v2104 = vshrl.u32 %v2103, 7
  %v2105 = vsub.s32 2, %v2104
  %v2106 = vrot.slane %v2093, %v2105
  %v2107 = vlaneseq
  %v2108 = vshrl.u32 %v2107, 7
  %v2109 = vsub.s32 3, %v2108
  %v2110 = vrot.slane %v2093, %v2109
  %v2111 = vlaneseq
  %v2112 = vshrl.u32 %v2111, 7
  %v2113 = vsub.s32 4, %v2112
  %v2114 = vrot.slane %v2093, %v2113
  %v2115 = vlaneseq
  %v2116 = vshrl.u32 %v2115, 7
  %v2117 = vsub.s32 5, %v2116
  %v2118 = vrot.slane %v2093, %v2117
  %v2126 = vsel %vm137, %v375, 0
  %2128 = vmatprep.subr.mxu0 0.0
  %2129 = vmatpush1.msra.mxu0 0.0
  %2130 = vmatprep.subr.mxu0 0.0
  %2131 = vmatpush1.msra.mxu0 0.0
  %2132 = vmatprep.subr.mxu0 0.0
  %2133 = vmatpush1.msra.mxu0 0.0
  %2134 = vmatprep.subr.mxu0 0.0
  %2135 = vmatpush1.msra.mxu0 0.0
  %2136 = vmatprep.subr.mxu0 0.0
  %2137 = vmatpush1.msra.mxu0 0.0
  %2138 = vmatprep.subr.mxu0 0.0
  %2139 = vmatpush1.msra.mxu0 0.0
  %2140 = vmatprep.subr.mxu0 0.0
  %2141 = vmatpush1.msra.mxu0 0.0
  %2142 = vmatprep.subr.mxu0 0.0
  %2143 = vmatpush1.msra.mxu0 0.0
  %2144 = vmatprep.subr.mxu0 0.0
  %2145 = vmatpush1.msra.mxu0 0.0
  %2146 = vmatprep.subr.mxu0 0.0
  %2147 = vmatpush1.msra.mxu0 0.0
  %2148 = vmatprep.subr.mxu0 0.0
  %2149 = vmatpush1.msra.mxu0 0.0
  %2150 = vmatprep.subr.mxu0 0.0
  %2151 = vmatpush1.msra.mxu0 0.0
  %2152 = vmatprep.subr.mxu0 0.0
  %2153 = vmatpush1.msra.mxu0 0.0
  %2154 = vmatprep.subr.mxu0 0.0
  %2155 = vmatpush1.msra.mxu0 0.0
  %2156 = vmatprep.subr.mxu0 0.0
  %2157 = vmatpush1.msra.mxu0 0.0
  %2158 = vmatprep.subr.mxu0 %v2088
  %2159 = vmatpush1.msra.mxu0 %v2087
  %2160 = vmatprep.subr.mxu0 0.0
  %2161 = vmatpush2.msra.mxu0 0.0
  %2162 = vmatprep.subr.mxu0 0.0
  %2163 = vmatpush2.msra.mxu0 0.0
  %2164 = vmatprep.subr.mxu0 0.0
  %2165 = vmatpush2.msra.mxu0 0.0
  %2166 = vmatprep.subr.mxu0 0.0
  %2167 = vmatpush2.msra.mxu0 0.0
  %2168 = vmatprep.subr.mxu0 0.0
  %2169 = vmatpush2.msra.mxu0 0.0
  %2170 = vmatprep.subr.mxu0 0.0
  %2171 = vmatpush2.msra.mxu0 0.0
  %2172 = vmatprep.subr.mxu0 0.0
  %2173 = vmatpush2.msra.mxu0 0.0
  %2174 = vmatprep.subr.mxu0 0.0
  %2175 = vmatpush2.msra.mxu0 0.0
  %2176 = vmatprep.subr.mxu0 0.0
  %2177 = vmatpush2.msra.mxu0 0.0
  %2178 = vmatprep.subr.mxu0 0.0
  %2179 = vmatpush2.msra.mxu0 0.0
  %2180 = vmatprep.subr.mxu0 0.0
  %2181 = vmatpush2.msra.mxu0 0.0
  %2182 = vmatprep.subr.mxu0 0.0
  %2183 = vmatpush2.msra.mxu0 0.0
  %2184 = vmatprep.subr.mxu0 0.0
  %2185 = vmatpush2.msra.mxu0 0.0
  %2186 = vmatprep.subr.mxu0 0.0
  %2187 = vmatpush2.msra.mxu0 0.0
  %2188 = vmatprep.subr.mxu0 0.0
  %2189 = vmatpush2.msra.mxu0 0.0
  %2190 = vmatprep.subr.mxu0 0.0
  %2191 = vmatpush2.msra.mxu0 0.0
  %2192 = vmatprep.mubr.f32.mxu0 0.0
  %2193 = vmatmul.mubr.f32.gmra.mxu0 %v2126
  %v2194 = vpop.f32.mrf.mxu0
  %v2195 = vadd.f32 %v2098, %v2194
  %v2196 = vpop.f32.mrf.mxu0
  %v2197 = vadd.f32 %v2102, %v2196
  %2198 = vdwg.mxu0
  %2199 = vmatprep.subr.mxu0 0.0
  %2200 = vmatpush1.msra.mxu0 0.0
  %2201 = vmatprep.subr.mxu0 0.0
  %2202 = vmatpush1.msra.mxu0 0.0
  %2203 = vmatprep.subr.mxu0 0.0
  %2204 = vmatpush1.msra.mxu0 0.0
  %2205 = vmatprep.subr.mxu0 0.0
  %2206 = vmatpush1.msra.mxu0 0.0
  %2207 = vmatprep.subr.mxu0 0.0
  %2208 = vmatpush1.msra.mxu0 0.0
  %2209 = vmatprep.subr.mxu0 0.0
  %2210 = vmatpush1.msra.mxu0 0.0
  %2211 = vmatprep.subr.mxu0 0.0
  %2212 = vmatpush1.msra.mxu0 0.0
  %2213 = vmatprep.subr.mxu0 0.0
  %2214 = vmatpush1.msra.mxu0 0.0
  %2215 = vmatprep.subr.mxu0 0.0
  %2216 = vmatpush1.msra.mxu0 0.0
  %2217 = vmatprep.subr.mxu0 0.0
  %2218 = vmatpush1.msra.mxu0 0.0
  %2219 = vmatprep.subr.mxu0 0.0
  %2220 = vmatpush1.msra.mxu0 0.0
  %2221 = vmatprep.subr.mxu0 0.0
  %2222 = vmatpush1.msra.mxu0 0.0
  %2223 = vmatprep.subr.mxu0 0.0
  %2224 = vmatpush1.msra.mxu0 0.0
  %2225 = vmatprep.subr.mxu0 0.0
  %2226 = vmatpush1.msra.mxu0 0.0
  %2227 = vmatprep.subr.mxu0 0.0
  %2228 = vmatpush1.msra.mxu0 0.0
  %2229 = vmatprep.subr.mxu0 %v2090
  %2230 = vmatpush1.msra.mxu0 %v2089
  %2231 = vmatprep.subr.mxu0 0.0
  %2232 = vmatpush2.msra.mxu0 0.0
  %2233 = vmatprep.subr.mxu0 0.0
  %2234 = vmatpush2.msra.mxu0 0.0
  %2235 = vmatprep.subr.mxu0 0.0
  %2236 = vmatpush2.msra.mxu0 0.0
  %2237 = vmatprep.subr.mxu0 0.0
  %2238 = vmatpush2.msra.mxu0 0.0
  %2239 = vmatprep.subr.mxu0 0.0
  %2240 = vmatpush2.msra.mxu0 0.0
  %2241 = vmatprep.subr.mxu0 0.0
  %2242 = vmatpush2.msra.mxu0 0.0
  %2243 = vmatprep.subr.mxu0 0.0
  %2244 = vmatpush2.msra.mxu0 0.0
  %2245 = vmatprep.subr.mxu0 0.0
  %2246 = vmatpush2.msra.mxu0 0.0
  %2247 = vmatprep.subr.mxu0 0.0
  %2248 = vmatpush2.msra.mxu0 0.0
  %2249 = vmatprep.subr.mxu0 0.0
  %2250 = vmatpush2.msra.mxu0 0.0
  %2251 = vmatprep.subr.mxu0 0.0
  %2252 = vmatpush2.msra.mxu0 0.0
  %2253 = vmatprep.subr.mxu0 0.0
  %2254 = vmatpush2.msra.mxu0 0.0
  %2255 = vmatprep.subr.mxu0 0.0
  %2256 = vmatpush2.msra.mxu0 0.0
  %2257 = vmatprep.subr.mxu0 0.0
  %2258 = vmatpush2.msra.mxu0 0.0
  %2259 = vmatprep.subr.mxu0 0.0
  %2260 = vmatpush2.msra.mxu0 0.0
  %2261 = vmatprep.subr.mxu0 0.0
  %2262 = vmatpush2.msra.mxu0 0.0
  %2263 = vmatprep.mubr.f32.mxu0 0.0
  %2264 = vmatmul.mubr.f32.gmra.mxu0 %v2126
  %v2265 = vpop.f32.mrf.mxu0
  %v2266 = vadd.f32 %v2106, %v2265
  %v2267 = vpop.f32.mrf.mxu0
  %v2268 = vadd.f32 %v2110, %v2267
  %2269 = vdwg.mxu0
  %2270 = vmatprep.subr.mxu0 0.0
  %2271 = vmatpush1.msra.mxu0 0.0
  %2272 = vmatprep.subr.mxu0 0.0
  %2273 = vmatpush1.msra.mxu0 0.0
  %2274 = vmatprep.subr.mxu0 0.0
  %2275 = vmatpush1.msra.mxu0 0.0
  %2276 = vmatprep.subr.mxu0 0.0
  %2277 = vmatpush1.msra.mxu0 0.0
  %2278 = vmatprep.subr.mxu0 0.0
  %2279 = vmatpush1.msra.mxu0 0.0
  %2280 = vmatprep.subr.mxu0 0.0
  %2281 = vmatpush1.msra.mxu0 0.0
  %2282 = vmatprep.subr.mxu0 0.0
  %2283 = vmatpush1.msra.mxu0 0.0
  %2284 = vmatprep.subr.mxu0 0.0
  %2285 = vmatpush1.msra.mxu0 0.0
  %2286 = vmatprep.subr.mxu0 0.0
  %2287 = vmatpush1.msra.mxu0 0.0
  %2288 = vmatprep.subr.mxu0 0.0
  %2289 = vmatpush1.msra.mxu0 0.0
  %2290 = vmatprep.subr.mxu0 0.0
  %2291 = vmatpush1.msra.mxu0 0.0
  %2292 = vmatprep.subr.mxu0 0.0
  %2293 = vmatpush1.msra.mxu0 0.0
  %2294 = vmatprep.subr.mxu0 0.0
  %2295 = vmatpush1.msra.mxu0 0.0
  %2296 = vmatprep.subr.mxu0 0.0
  %2297 = vmatpush1.msra.mxu0 0.0
  %2298 = vmatprep.subr.mxu0 0.0
  %2299 = vmatpush1.msra.mxu0 0.0
  %2300 = vmatprep.subr.mxu0 %v2092
  %2301 = vmatpush1.msra.mxu0 %v2091
  %2302 = vmatprep.subr.mxu0 0.0
  %2303 = vmatpush2.msra.mxu0 0.0
  %2304 = vmatprep.subr.mxu0 0.0
  %2305 = vmatpush2.msra.mxu0 0.0
  %2306 = vmatprep.subr.mxu0 0.0
  %2307 = vmatpush2.msra.mxu0 0.0
  %2308 = vmatprep.subr.mxu0 0.0
  %2309 = vmatpush2.msra.mxu0 0.0
  %2310 = vmatprep.subr.mxu0 0.0
  %2311 = vmatpush2.msra.mxu0 0.0
  %2312 = vmatprep.subr.mxu0 0.0
  %2313 = vmatpush2.msra.mxu0 0.0
  %2314 = vmatprep.subr.mxu0 0.0
  %2315 = vmatpush2.msra.mxu0 0.0
  %2316 = vmatprep.subr.mxu0 0.0
  %2317 = vmatpush2.msra.mxu0 0.0
  %2318 = vmatprep.subr.mxu0 0.0
  %2319 = vmatpush2.msra.mxu0 0.0
  %2320 = vmatprep.subr.mxu0 0.0
  %2321 = vmatpush2.msra.mxu0 0.0
  %2322 = vmatprep.subr.mxu0 0.0
  %2323 = vmatpush2.msra.mxu0 0.0
  %2324 = vmatprep.subr.mxu0 0.0
  %2325 = vmatpush2.msra.mxu0 0.0
  %2326 = vmatprep.subr.mxu0 0.0
  %2327 = vmatpush2.msra.mxu0 0.0
  %2328 = vmatprep.subr.mxu0 0.0
  %2329 = vmatpush2.msra.mxu0 0.0
  %2330 = vmatprep.subr.mxu0 0.0
  %2331 = vmatpush2.msra.mxu0 0.0
  %2332 = vmatprep.subr.mxu0 0.0
  %2333 = vmatpush2.msra.mxu0 0.0
  %2334 = vmatprep.mubr.f32.mxu0 0.0
  %2335 = vmatmul.mubr.f32.gmra.mxu0 %v2126
  %v2336 = vpop.f32.mrf.mxu0
  %v2337 = vadd.f32 %v2114, %v2336
  %v2338 = vpop.f32.mrf.mxu0
  %v2339 = vadd.f32 %v2118, %v2338
  %2340 = vdwg.mxu0
  %v2341 = vmul.f32 %v1687, %v1941
  %v2342 = vmul.f32 %v1689, %v1943
  %v2343 = vmul.f32 %v1758, %v2012
  %v2344 = vmul.f32 %v1760, %v2014
  %v2345 = vmul.f32 %v1829, %v2083
  %v2346 = vmul.f32 %v1831, %v2085
  %v2347 = vmul.f32 %v2341, %v2195
  %v2348 = vmul.f32 %v2342, %v2197
  %v2349 = vmul.f32 %v2343, %v2266
  %v2350 = vmul.f32 %v2344, %v2268
  %v2351 = vmul.f32 %v2345, %v2337
  %v2352 = vmul.f32 %v2346, %v2339
  %v2353 = vld [vmem:[%s49] sm:$0xff]
  %v2354 = vld [vmem:[%s49 + $0x8] sm:$0xff]
  %v2355 = vld [vmem:[%s49 + $0x10] sm:$0xff]
  %v2356 = vld [vmem:[%s49 + $0x18] sm:$0xff]
  %v2357 = vld [vmem:[%s49 + $0x20] sm:$0xff]
  %v2358 = vld [vmem:[%s49 + $0x28] sm:$0xff]
  %v2359 = vld [vmem:[%s49 + $0x30] sm:$0xff]
  %v2360 = vld [vmem:[%s49 + $0x38] sm:$0xff]
  %v2361 = vld [vmem:[%s49 + $0x40] sm:$0xff]
  %v2362 = vld [vmem:[%s49 + $0x48] sm:$0xff]
  %v2363 = vld [vmem:[%s49 + $0x50] sm:$0xff]
  %v2364 = vld [vmem:[%s49 + $0x58] sm:$0xff]
  %v2365 = vld [vmem:[%s49 + $0x60] sm:$0xff]
  %v2366 = vld [vmem:[%s49 + $0x68] sm:$0xff]
  %v2367 = vld [vmem:[%s49 + $0x70] sm:$0xff]
  %v2368 = vld [vmem:[%s49 + $0x78] sm:$0xff]
  %v2369 = vld [vmem:[%s49 + $0x80] sm:$0xff]
  %v2370 = vld [vmem:[%s49 + $0x88] sm:$0xff]
  %v2371 = vld [vmem:[%s49 + $0x90] sm:$0xff]
  %v2372 = vld [vmem:[%s49 + $0x98] sm:$0xff]
  %v2373 = vld [vmem:[%s49 + $0xa0] sm:$0xff]
  %v2374 = vld [vmem:[%s49 + $0xa8] sm:$0xff]
  %v2375 = vld [vmem:[%s49 + $0xb0] sm:$0xff]
  %v2376 = vld [vmem:[%s49 + $0xb8] sm:$0xff]
  %v2377 = vld [vmem:[%s49 + $0xc0] sm:$0xff]
  %v2378 = vld [vmem:[%s49 + $0xc8] sm:$0xff]
  %v2379 = vld [vmem:[%s49 + $0xd0] sm:$0xff]
  %v2380 = vld [vmem:[%s49 + $0xd8] sm:$0xff]
  %v2381 = vld [vmem:[%s49 + $0xe0] sm:$0xff]
  %v2382 = vld [vmem:[%s49 + $0xe8] sm:$0xff]
  %v2383 = vld [vmem:[%s49 + $0xf0] sm:$0xff]
  %v2384 = vld [vmem:[%s49 + $0xf8] sm:$0xff]
  %v2385 = vld [vmem:[%s49 + $0x100] sm:$0xff]
  %v2386 = vld [vmem:[%s49 + $0x108] sm:$0xff]
  %v2387 = vld [vmem:[%s49 + $0x110] sm:$0xff]
  %v2388 = vld [vmem:[%s49 + $0x118] sm:$0xff]
  %v2389 = vld [vmem:[%s49 + $0x120] sm:$0xff]
  %v2390 = vld [vmem:[%s49 + $0x128] sm:$0xff]
  %v2391 = vld [vmem:[%s49 + $0x130] sm:$0xff]
  %v2392 = vld [vmem:[%s49 + $0x138] sm:$0xff]
  %v2393 = vld [vmem:[%s49 + $0x140] sm:$0xff]
  %v2394 = vld [vmem:[%s49 + $0x148] sm:$0xff]
  %v2395 = vld [vmem:[%s49 + $0x150] sm:$0xff]
  %v2396 = vld [vmem:[%s49 + $0x158] sm:$0xff]
  %v2397 = vld [vmem:[%s49 + $0x160] sm:$0xff]
  %v2398 = vld [vmem:[%s49 + $0x168] sm:$0xff]
  %v2399 = vld [vmem:[%s49 + $0x170] sm:$0xff]
  %v2400 = vld [vmem:[%s49 + $0x178] sm:$0xff]
  %v2401 = vld [vmem:[%s49 + $0x180] sm:$0xff]
  %v2402 = vld [vmem:[%s49 + $0x188] sm:$0xff]
  %v2403 = vld [vmem:[%s49 + $0x190] sm:$0xff]
  %v2404 = vld [vmem:[%s49 + $0x198] sm:$0xff]
  %v2405 = vld [vmem:[%s49 + $0x1a0] sm:$0xff]
  %v2406 = vld [vmem:[%s49 + $0x1a8] sm:$0xff]
  %v2407 = vld [vmem:[%s49 + $0x1b0] sm:$0xff]
  %v2408 = vld [vmem:[%s49 + $0x1b8] sm:$0xff]
  %v2409 = vld [vmem:[%s49 + $0x1c0] sm:$0xff]
  %v2410 = vld [vmem:[%s49 + $0x1c8] sm:$0xff]
  %v2411 = vld [vmem:[%s49 + $0x1d0] sm:$0xff]
  %v2412 = vld [vmem:[%s49 + $0x1d8] sm:$0xff]
  %v2413 = vld [vmem:[%s49 + $0x1e0] sm:$0xff]
  %v2414 = vld [vmem:[%s49 + $0x1e8] sm:$0xff]
  %v2415 = vld [vmem:[%s49 + $0x1f0] sm:$0xff]
  %v2416 = vld [vmem:[%s49 + $0x1f8] sm:$0xff]
  %v2417 = vld [vmem:[%s49 + $0x200] sm:$0xff]
  %v2418 = vld [vmem:[%s49 + $0x208] sm:$0xff]
  %v2419 = vld [vmem:[%s49 + $0x210] sm:$0xff]
  %v2420 = vld [vmem:[%s49 + $0x218] sm:$0xff]
  %v2421 = vld [vmem:[%s49 + $0x220] sm:$0xff]
  %v2422 = vld [vmem:[%s49 + $0x228] sm:$0xff]
  %v2423 = vld [vmem:[%s49 + $0x230] sm:$0xff]
  %v2424 = vld [vmem:[%s49 + $0x238] sm:$0xff]
  %v2425 = vld [vmem:[%s49 + $0x240] sm:$0xff]
  %v2426 = vld [vmem:[%s49 + $0x248] sm:$0xff]
  %v2427 = vld [vmem:[%s49 + $0x250] sm:$0xff]
  %v2428 = vld [vmem:[%s49 + $0x258] sm:$0xff]
  %v2429 = vld [vmem:[%s49 + $0x260] sm:$0xff]
  %v2430 = vld [vmem:[%s49 + $0x268] sm:$0xff]
  %v2431 = vld [vmem:[%s49 + $0x270] sm:$0xff]
  %v2432 = vld [vmem:[%s49 + $0x278] sm:$0xff]
  %v2433 = vld [vmem:[%s49 + $0x280] sm:$0xff]
  %v2434 = vld [vmem:[%s49 + $0x288] sm:$0xff]
  %v2435 = vld [vmem:[%s49 + $0x290] sm:$0xff]
  %v2436 = vld [vmem:[%s49 + $0x298] sm:$0xff]
  %v2437 = vld [vmem:[%s49 + $0x2a0] sm:$0xff]
  %v2438 = vld [vmem:[%s49 + $0x2a8] sm:$0xff]
  %v2439 = vld [vmem:[%s49 + $0x2b0] sm:$0xff]
  %v2440 = vld [vmem:[%s49 + $0x2b8] sm:$0xff]
  %v2441 = vld [vmem:[%s49 + $0x2c0] sm:$0xff]
  %v2442 = vld [vmem:[%s49 + $0x2c8] sm:$0xff]
  %v2443 = vld [vmem:[%s49 + $0x2d0] sm:$0xff]
  %v2444 = vld [vmem:[%s49 + $0x2d8] sm:$0x1]
  %v2445 = vld [vmem:[%s51] sm:$0x1]
  %v2447 = vlaneseq
  %v2448 = vshrl.u32 %v2447, 7
  %v2449 = vsub.s32 0, %v2448
  %v2450 = vrot.slane %v2445, %v2449
  %vm2452 = vcmask 728064
  %v2454 = vsel %vm2452, %v2352, 0
  %vm2456 = vcmask 1040384
  %v2458 = vsel %vm2456, %v2444, 0
  %2460 = vmatprep.subr.mxu0 0.0
  %2461 = vmatpush1.msra.mxu0 %v2368
  %2462 = vmatprep.subr.mxu0 0.0
  %2463 = vmatpush1.msra.mxu0 %v2367
  %2464 = vmatprep.subr.mxu0 0.0
  %2465 = vmatpush1.msra.mxu0 %v2366
  %2466 = vmatprep.subr.mxu0 0.0
  %2467 = vmatpush1.msra.mxu0 %v2365
  %2468 = vmatprep.subr.mxu0 0.0
  %2469 = vmatpush1.msra.mxu0 %v2364
  %2470 = vmatprep.subr.mxu0 0.0
  %2471 = vmatpush1.msra.mxu0 %v2363
  %2472 = vmatprep.subr.mxu0 0.0
  %2473 = vmatpush1.msra.mxu0 %v2362
  %2474 = vmatprep.subr.mxu0 0.0
  %2475 = vmatpush1.msra.mxu0 %v2361
  %2476 = vmatprep.subr.mxu0 0.0
  %2477 = vmatpush1.msra.mxu0 %v2360
  %2478 = vmatprep.subr.mxu0 0.0
  %2479 = vmatpush1.msra.mxu0 %v2359
  %2480 = vmatprep.subr.mxu0 0.0
  %2481 = vmatpush1.msra.mxu0 %v2358
  %2482 = vmatprep.subr.mxu0 0.0
  %2483 = vmatpush1.msra.mxu0 %v2357
  %2484 = vmatprep.subr.mxu0 0.0
  %2485 = vmatpush1.msra.mxu0 %v2356
  %2486 = vmatprep.subr.mxu0 0.0
  %2487 = vmatpush1.msra.mxu0 %v2355
  %2488 = vmatprep.subr.mxu0 0.0
  %2489 = vmatpush1.msra.mxu0 %v2354
  %2490 = vmatprep.subr.mxu0 0.0
  %2491 = vmatpush1.msra.mxu0 %v2353
  %2492 = vmatprep.subr.mxu0 0.0
  %2493 = vmatpush2.msra.mxu0 %v2384
  %2494 = vmatprep.subr.mxu0 0.0
  %2495 = vmatpush2.msra.mxu0 %v2383
  %2496 = vmatprep.subr.mxu0 0.0
  %2497 = vmatpush2.msra.mxu0 %v2382
  %2498 = vmatprep.subr.mxu0 0.0
  %2499 = vmatpush2.msra.mxu0 %v2381
  %2500 = vmatprep.subr.mxu0 0.0
  %2501 = vmatpush2.msra.mxu0 %v2380
  %2502 = vmatprep.subr.mxu0 0.0
  %2503 = vmatpush2.msra.mxu0 %v2379
  %2504 = vmatprep.subr.mxu0 0.0
  %2505 = vmatpush2.msra.mxu0 %v2378
  %2506 = vmatprep.subr.mxu0 0.0
  %2507 = vmatpush2.msra.mxu0 %v2377
  %2508 = vmatprep.subr.mxu0 0.0
  %2509 = vmatpush2.msra.mxu0 %v2376
  %2510 = vmatprep.subr.mxu0 0.0
  %2511 = vmatpush2.msra.mxu0 %v2375
  %2512 = vmatprep.subr.mxu0 0.0
  %2513 = vmatpush2.msra.mxu0 %v2374
  %2514 = vmatprep.subr.mxu0 0.0
  %2515 = vmatpush2.msra.mxu0 %v2373
  %2516 = vmatprep.subr.mxu0 0.0
  %2517 = vmatpush2.msra.mxu0 %v2372
  %2518 = vmatprep.subr.mxu0 0.0
  %2519 = vmatpush2.msra.mxu0 %v2371
  %2520 = vmatprep.subr.mxu0 0.0
  %2521 = vmatpush2.msra.mxu0 %v2370
  %2522 = vmatprep.subr.mxu0 0.0
  %2523 = vmatpush2.msra.mxu0 %v2369
  %2524 = vmatprep.mubr.f32.mxu0 %v2348
  %2525 = vmatmul.mubr.f32.gmra.mxu0 %v2347
  %v2526 = vpop.f32.mrf.mxu0
  %v2527 = vadd.f32 %v2450, %v2526
  %v2528 = vpop.f32.mrf.mxu0
  %2529 = vdwg.mxu0
  %2530 = vmatprep.subr.mxu0 0.0
  %2531 = vmatpush1.msra.mxu0 %v2400
  %2532 = vmatprep.subr.mxu0 0.0
  %2533 = vmatpush1.msra.mxu0 %v2399
  %2534 = vmatprep.subr.mxu0 0.0
  %2535 = vmatpush1.msra.mxu0 %v2398
  %2536 = vmatprep.subr.mxu0 0.0
  %2537 = vmatpush1.msra.mxu0 %v2397
  %2538 = vmatprep.subr.mxu0 0.0
  %2539 = vmatpush1.msra.mxu0 %v2396
  %2540 = vmatprep.subr.mxu0 0.0
  %2541 = vmatpush1.msra.mxu0 %v2395
  %2542 = vmatprep.subr.mxu0 0.0
  %2543 = vmatpush1.msra.mxu0 %v2394
  %2544 = vmatprep.subr.mxu0 0.0
  %2545 = vmatpush1.msra.mxu0 %v2393
  %2546 = vmatprep.subr.mxu0 0.0
  %2547 = vmatpush1.msra.mxu0 %v2392
  %2548 = vmatprep.subr.mxu0 0.0
  %2549 = vmatpush1.msra.mxu0 %v2391
  %2550 = vmatprep.subr.mxu0 0.0
  %2551 = vmatpush1.msra.mxu0 %v2390
  %2552 = vmatprep.subr.mxu0 0.0
  %2553 = vmatpush1.msra.mxu0 %v2389
  %2554 = vmatprep.subr.mxu0 0.0
  %2555 = vmatpush1.msra.mxu0 %v2388
  %2556 = vmatprep.subr.mxu0 0.0
  %2557 = vmatpush1.msra.mxu0 %v2387
  %2558 = vmatprep.subr.mxu0 0.0
  %2559 = vmatpush1.msra.mxu0 %v2386
  %2560 = vmatprep.subr.mxu0 0.0
  %2561 = vmatpush1.msra.mxu0 %v2385
  %2562 = vmatprep.subr.mxu0 0.0
  %2563 = vmatpush2.msra.mxu0 %v2416
  %2564 = vmatprep.subr.mxu0 0.0
  %2565 = vmatpush2.msra.mxu0 %v2415
  %2566 = vmatprep.subr.mxu0 0.0
  %2567 = vmatpush2.msra.mxu0 %v2414
  %2568 = vmatprep.subr.mxu0 0.0
  %2569 = vmatpush2.msra.mxu0 %v2413
  %2570 = vmatprep.subr.mxu0 0.0
  %2571 = vmatpush2.msra.mxu0 %v2412
  %2572 = vmatprep.subr.mxu0 0.0
  %2573 = vmatpush2.msra.mxu0 %v2411
  %2574 = vmatprep.subr.mxu0 0.0
  %2575 = vmatpush2.msra.mxu0 %v2410
  %2576 = vmatprep.subr.mxu0 0.0
  %2577 = vmatpush2.msra.mxu0 %v2409
  %2578 = vmatprep.subr.mxu0 0.0
  %2579 = vmatpush2.msra.mxu0 %v2408
  %2580 = vmatprep.subr.mxu0 0.0
  %2581 = vmatpush2.msra.mxu0 %v2407
  %2582 = vmatprep.subr.mxu0 0.0
  %2583 = vmatpush2.msra.mxu0 %v2406
  %2584 = vmatprep.subr.mxu0 0.0
  %2585 = vmatpush2.msra.mxu0 %v2405
  %2586 = vmatprep.subr.mxu0 0.0
  %2587 = vmatpush2.msra.mxu0 %v2404
  %2588 = vmatprep.subr.mxu0 0.0
  %2589 = vmatpush2.msra.mxu0 %v2403
  %2590 = vmatprep.subr.mxu0 0.0
  %2591 = vmatpush2.msra.mxu0 %v2402
  %2592 = vmatprep.subr.mxu0 0.0
  %2593 = vmatpush2.msra.mxu0 %v2401
  %2594 = vmatprep.mubr.f32.mxu0 %v2350
  %2595 = vmatmul.mubr.f32.gmra.mxu0 %v2349
  %v2596 = vpop.f32.mrf.mxu0
  %v2597 = vadd.f32 %v2527, %v2596
  %v2598 = vpop.f32.mrf.mxu0
  %2599 = vdwg.mxu0
  %2600 = vmatprep.subr.mxu0 0.0
  %2601 = vmatpush1.msra.mxu0 %v2432
  %2602 = vmatprep.subr.mxu0 0.0
  %2603 = vmatpush1.msra.mxu0 %v2431
  %2604 = vmatprep.subr.mxu0 0.0
  %2605 = vmatpush1.msra.mxu0 %v2430
  %2606 = vmatprep.subr.mxu0 0.0
  %2607 = vmatpush1.msra.mxu0 %v2429
  %2608 = vmatprep.subr.mxu0 0.0
  %2609 = vmatpush1.msra.mxu0 %v2428
  %2610 = vmatprep.subr.mxu0 0.0
  %2611 = vmatpush1.msra.mxu0 %v2427
  %2612 = vmatprep.subr.mxu0 0.0
  %2613 = vmatpush1.msra.mxu0 %v2426
  %2614 = vmatprep.subr.mxu0 0.0
  %2615 = vmatpush1.msra.mxu0 %v2425
  %2616 = vmatprep.subr.mxu0 0.0
  %2617 = vmatpush1.msra.mxu0 %v2424
  %2618 = vmatprep.subr.mxu0 0.0
  %2619 = vmatpush1.msra.mxu0 %v2423
  %2620 = vmatprep.subr.mxu0 0.0
  %2621 = vmatpush1.msra.mxu0 %v2422
  %2622 = vmatprep.subr.mxu0 0.0
  %2623 = vmatpush1.msra.mxu0 %v2421
  %2624 = vmatprep.subr.mxu0 0.0
  %2625 = vmatpush1.msra.mxu0 %v2420
  %2626 = vmatprep.subr.mxu0 0.0
  %2627 = vmatpush1.msra.mxu0 %v2419
  %2628 = vmatprep.subr.mxu0 0.0
  %2629 = vmatpush1.msra.mxu0 %v2418
  %2630 = vmatprep.subr.mxu0 0.0
  %2631 = vmatpush1.msra.mxu0 %v2417
  %2632 = vmatprep.subr.mxu0 0.0
  %2633 = vmatpush2.msra.mxu0 0.0
  %2634 = vmatprep.subr.mxu0 0.0
  %2635 = vmatpush2.msra.mxu0 0.0
  %2636 = vmatprep.subr.mxu0 0.0
  %2637 = vmatpush2.msra.mxu0 0.0
  %2638 = vmatprep.subr.mxu0 0.0
  %2639 = vmatpush2.msra.mxu0 0.0
  %2640 = vmatprep.subr.mxu0 0.0
  %2641 = vmatpush2.msra.mxu0 %v2458
  %2642 = vmatprep.subr.mxu0 0.0
  %2643 = vmatpush2.msra.mxu0 %v2443
  %2644 = vmatprep.subr.mxu0 0.0
  %2645 = vmatpush2.msra.mxu0 %v2442
  %2646 = vmatprep.subr.mxu0 0.0
  %2647 = vmatpush2.msra.mxu0 %v2441
  %2648 = vmatprep.subr.mxu0 0.0
  %2649 = vmatpush2.msra.mxu0 %v2440
  %2650 = vmatprep.subr.mxu0 0.0
  %2651 = vmatpush2.msra.mxu0 %v2439
  %2652 = vmatprep.subr.mxu0 0.0
  %2653 = vmatpush2.msra.mxu0 %v2438
  %2654 = vmatprep.subr.mxu0 0.0
  %2655 = vmatpush2.msra.mxu0 %v2437
  %2656 = vmatprep.subr.mxu0 0.0
  %2657 = vmatpush2.msra.mxu0 %v2436
  %2658 = vmatprep.subr.mxu0 0.0
  %2659 = vmatpush2.msra.mxu0 %v2435
  %2660 = vmatprep.subr.mxu0 0.0
  %2661 = vmatpush2.msra.mxu0 %v2434
  %2662 = vmatprep.subr.mxu0 0.0
  %2663 = vmatpush2.msra.mxu0 %v2433
  %2664 = vmatprep.mubr.f32.mxu0 %v2454
  %2665 = vmatmul.mubr.f32.gmra.mxu0 %v2351
  %v2666 = vpop.f32.mrf.mxu0
  %v2667 = vadd.f32 %v2597, %v2666
  %v2668 = vpop.f32.mrf.mxu0
  %2669 = vdwg.mxu0
  %v2670 = vmax.f32 %v2667, 0.0
  %v2671 = vld [vmem:[%s53] sm:$0xff]
  %v2672 = vld [vmem:[%s53 + $0x8] sm:$0xff]
  %v2673 = vld [vmem:[%s53 + $0x10] sm:$0xff]
  %v2674 = vld [vmem:[%s53 + $0x18] sm:$0xff]
  %v2675 = vld [vmem:[%s55] sm:$0x1]
  %v2677 = vlaneseq
  %v2678 = vshrl.u32 %v2677, 7
  %v2679 = vsub.s32 0, %v2678
  %v2680 = vrot.slane %v2675, %v2679
  %vm2682 = vcmask 261120
  %v2684 = vsel %vm2682, %v2670, 0
  %2686 = vmatprep.subr.mxu0 0.0
  %2687 = vmatpush1.msra.mxu0 0.0
  %2688 = vmatprep.subr.mxu0 0.0
  %2689 = vmatpush1.msra.mxu0 0.0
  %2690 = vmatprep.subr.mxu0 0.0
  %2691 = vmatpush1.msra.mxu0 0.0
  %2692 = vmatprep.subr.mxu0 0.0
  %2693 = vmatpush1.msra.mxu0 0.0
  %2694 = vmatprep.subr.mxu0 0.0
  %2695 = vmatpush1.msra.mxu0 0.0
  %2696 = vmatprep.subr.mxu0 0.0
  %2697 = vmatpush1.msra.mxu0 0.0
  %2698 = vmatprep.subr.mxu0 0.0
  %2699 = vmatpush1.msra.mxu0 0.0
  %2700 = vmatprep.subr.mxu0 0.0
  %2701 = vmatpush1.msra.mxu0 0.0
  %2702 = vmatprep.subr.mxu0 0.0
  %2703 = vmatpush1.msra.mxu0 0.0
  %2704 = vmatprep.subr.mxu0 0.0
  %2705 = vmatpush1.msra.mxu0 0.0
  %2706 = vmatprep.subr.mxu0 0.0
  %2707 = vmatpush1.msra.mxu0 0.0
  %2708 = vmatprep.subr.mxu0 0.0
  %2709 = vmatpush1.msra.mxu0 0.0
  %2710 = vmatprep.subr.mxu0 0.0
  %2711 = vmatpush1.msra.mxu0 %v2674
  %2712 = vmatprep.subr.mxu0 0.0
  %2713 = vmatpush1.msra.mxu0 %v2673
  %2714 = vmatprep.subr.mxu0 0.0
  %2715 = vmatpush1.msra.mxu0 %v2672
  %2716 = vmatprep.subr.mxu0 0.0
  %2717 = vmatpush1.msra.mxu0 %v2671
  %2718 = vmatprep.subr.mxu0 0.0
  %2719 = vmatpush2.msra.mxu0 0.0
  %2720 = vmatprep.subr.mxu0 0.0
  %2721 = vmatpush2.msra.mxu0 0.0
  %2722 = vmatprep.subr.mxu0 0.0
  %2723 = vmatpush2.msra.mxu0 0.0
  %2724 = vmatprep.subr.mxu0 0.0
  %2725 = vmatpush2.msra.mxu0 0.0
  %2726 = vmatprep.subr.mxu0 0.0
  %2727 = vmatpush2.msra.mxu0 0.0
  %2728 = vmatprep.subr.mxu0 0.0
  %2729 = vmatpush2.msra.mxu0 0.0
  %2730 = vmatprep.subr.mxu0 0.0
  %2731 = vmatpush2.msra.mxu0 0.0
  %2732 = vmatprep.subr.mxu0 0.0
  %2733 = vmatpush2.msra.mxu0 0.0
  %2734 = vmatprep.subr.mxu0 0.0
  %2735 = vmatpush2.msra.mxu0 0.0
  %2736 = vmatprep.subr.mxu0 0.0
  %2737 = vmatpush2.msra.mxu0 0.0
  %2738 = vmatprep.subr.mxu0 0.0
  %2739 = vmatpush2.msra.mxu0 0.0
  %2740 = vmatprep.subr.mxu0 0.0
  %2741 = vmatpush2.msra.mxu0 0.0
  %2742 = vmatprep.subr.mxu0 0.0
  %2743 = vmatpush2.msra.mxu0 0.0
  %2744 = vmatprep.subr.mxu0 0.0
  %2745 = vmatpush2.msra.mxu0 0.0
  %2746 = vmatprep.subr.mxu0 0.0
  %2747 = vmatpush2.msra.mxu0 0.0
  %2748 = vmatprep.subr.mxu0 0.0
  %2749 = vmatpush2.msra.mxu0 0.0
  %2750 = vmatprep.mubr.f32.mxu0 0.0
  %2751 = vmatmul.mubr.f32.gmra.mxu0 %v2684
  %v2752 = vpop.f32.mrf.mxu0
  %v2753 = vadd.f32 %v2680, %v2752
  %v2754 = vpop.f32.mrf.mxu0
  %2755 = vdwg.mxu0
  %v2756 = vmax.f32 %v2753, 0.0
  %v2757 = vld [vmem:[%s57] sm:$0xff]
  %v2758 = vld [vmem:[%s57 + $0x8] sm:$0xff]
  %v2759 = vld [vmem:[%s57 + $0x10] sm:$0xff]
  %v2760 = vld [vmem:[%s57 + $0x18] sm:$0xff]
  %v2761 = vld [vmem:[#allocation2] sm:$0x1]
  %v2763 = vlaneseq
  %v2764 = vshrl.u32 %v2763, 7
  %v2765 = vsub.s32 0, %v2764
  %v2766 = vrot.slane %v2761, %v2765
  %v2769 = vsel %vm2682, %v2756, 0
  %2771 = vmatprep.subr.mxu0 0.0
  %2772 = vmatpush1.msra.mxu0 0.0
  %2773 = vmatprep.subr.mxu0 0.0
  %2774 = vmatpush1.msra.mxu0 0.0
  %2775 = vmatprep.subr.mxu0 0.0
  %2776 = vmatpush1.msra.mxu0 0.0
  %2777 = vmatprep.subr.mxu0 0.0
  %2778 = vmatpush1.msra.mxu0 0.0
  %2779 = vmatprep.subr.mxu0 0.0
  %2780 = vmatpush1.msra.mxu0 0.0
  %2781 = vmatprep.subr.mxu0 0.0
  %2782 = vmatpush1.msra.mxu0 0.0
  %2783 = vmatprep.subr.mxu0 0.0
  %2784 = vmatpush1.msra.mxu0 0.0
  %2785 = vmatprep.subr.mxu0 0.0
  %2786 = vmatpush1.msra.mxu0 0.0
  %2787 = vmatprep.subr.mxu0 0.0
  %2788 = vmatpush1.msra.mxu0 0.0
  %2789 = vmatprep.subr.mxu0 0.0
  %2790 = vmatpush1.msra.mxu0 0.0
  %2791 = vmatprep.subr.mxu0 0.0
  %2792 = vmatpush1.msra.mxu0 0.0
  %2793 = vmatprep.subr.mxu0 0.0
  %2794 = vmatpush1.msra.mxu0 0.0
  %2795 = vmatprep.subr.mxu0 0.0
  %2796 = vmatpush1.msra.mxu0 %v2760
  %2797 = vmatprep.subr.mxu0 0.0
  %2798 = vmatpush1.msra.mxu0 %v2759
  %2799 = vmatprep.subr.mxu0 0.0
  %2800 = vmatpush1.msra.mxu0 %v2758
  %2801 = vmatprep.subr.mxu0 0.0
  %2802 = vmatpush1.msra.mxu0 %v2757
  %2803 = vmatprep.subr.mxu0 0.0
  %2804 = vmatpush2.msra.mxu0 0.0
  %2805 = vmatprep.subr.mxu0 0.0
  %2806 = vmatpush2.msra.mxu0 0.0
  %2807 = vmatprep.subr.mxu0 0.0
  %2808 = vmatpush2.msra.mxu0 0.0
  %2809 = vmatprep.subr.mxu0 0.0
  %2810 = vmatpush2.msra.mxu0 0.0
  %2811 = vmatprep.subr.mxu0 0.0
  %2812 = vmatpush2.msra.mxu0 0.0
  %2813 = vmatprep.subr.mxu0 0.0
  %2814 = vmatpush2.msra.mxu0 0.0
  %2815 = vmatprep.subr.mxu0 0.0
  %2816 = vmatpush2.msra.mxu0 0.0
  %2817 = vmatprep.subr.mxu0 0.0
  %2818 = vmatpush2.msra.mxu0 0.0
  %2819 = vmatprep.subr.mxu0 0.0
  %2820 = vmatpush2.msra.mxu0 0.0
  %2821 = vmatprep.subr.mxu0 0.0
  %2822 = vmatpush2.msra.mxu0 0.0
  %2823 = vmatprep.subr.mxu0 0.0
  %2824 = vmatpush2.msra.mxu0 0.0
  %2825 = vmatprep.subr.mxu0 0.0
  %2826 = vmatpush2.msra.mxu0 0.0
  %2827 = vmatprep.subr.mxu0 0.0
  %2828 = vmatpush2.msra.mxu0 0.0
  %2829 = vmatprep.subr.mxu0 0.0
  %2830 = vmatpush2.msra.mxu0 0.0
  %2831 = vmatprep.subr.mxu0 0.0
  %2832 = vmatpush2.msra.mxu0 0.0
  %2833 = vmatprep.subr.mxu0 0.0
  %2834 = vmatpush2.msra.mxu0 0.0
  %2835 = vmatprep.mubr.f32.mxu0 0.0
  %2836 = vmatmul.mubr.f32.gmra.mxu0 %v2769
  %v2837 = vpop.f32.mrf.mxu0
  %v2838 = vadd.f32 %v2766, %v2837
  %v2839 = vpop.f32.mrf.mxu0
  %2840 = vdwg.mxu0
  %v2841 = vxor.u32 %v2838, 2147483648
  %v2842 = vmul.f32 %v2841, 1.442695
  %v2843 = vpow.pop %v2842
  %v2844 = vadd.f32 %v2843, 1.0
  %v2845 = vrcp.pop %v2844
  %v2846 = vmul.f32 1.0, %v2845
  %v2847 = vmul.f32 %v2846, 6.0
  %v2848 = vsub.f32 %v2847, 3.0
  %vm2849 = vcmask 3072
  %2850 = vst.msk [vmem:[%s61] sm:$0xf] %vm2849, %v2848
  // Predicated region
  $region122: #{tfn_forward.1} parent=0 // pred_check
    _
  $region123: #{tfn_forward.1} parent=0 // pred_check_branch
    %2852 = sbr.rel (0) target = $region125
  $region124: #{tfn_forward.1} parent=0 // pred_region
    _
  $region125: #{tfn_forward.1} parent=0 // pred_fallthru
    _
  // Predicated region
  $region126: #{tfn_forward.1} parent=0 // pred_check
    _
  $region127: #{tfn_forward.1} parent=0 // pred_check_branch
    %2854 = sbr.rel (0) target = $region129
  $region128: #{tfn_forward.1} parent=0 // pred_region
    _
  $region129: #{tfn_forward.1} parent=0 // pred_fallthru
    _

</llo_original>
